<compile_context>
chip_gen: v6e
topology: v6e:2x2x1
jax: 0.10.0
libtpu: 0.0.40
codegen_flags: <defaults>
</compile_context>

<pallas_src>
import functools
import math

import jax
import jax.numpy as jnp
from jax.experimental import pallas as pl
from jax.experimental.pallas import tpu as pltpu

E_PAD = 128  # lane-dense width for the decoding-head output


# ---------------------------------------------------------------------------
# Pallas kernel: fused transformer stack + decoding head (one grid axis: batch)
# ---------------------------------------------------------------------------
def _layernorm(v, g, b, eps=1e-5):
    mu = jnp.mean(v, axis=-1, keepdims=True)
    var = jnp.mean((v - mu) ** 2, axis=-1, keepdims=True)
    return (v - mu) * jax.lax.rsqrt(var + eps) * g + b


def decoder_kernel(x_ref,
                   ln1g, ln1b, wq, wk, wv, bq, bk, bv, pw, pb,
                   ln2g, ln2b, f1w, f1b, f2w, f2b,
                   decw, decb,
                   feat_ref, dec_ref,
                   *, num_heads, tokens, valid_tokens):
    """One grid step = the FULL transformer + head applied to a (bb*T_pad, D) slab."""
    M, D = x_ref.shape
    T = tokens
    bb = M // T
    L = wq.shape[0]
    hd = D // num_heads
    scale = 1.0 / math.sqrt(hd)

    # padded key-slot mask (tokens were padded up to a multiple of 8 in the wrapper)
    kpos = jax.lax.broadcasted_iota(jnp.int32, (1, 1, T), 2)
    kvalid = kpos < valid_tokens

    x = x_ref[...].astype(jnp.float32)                       # (M, D) residual stream

    # L is a small static config; for deep decoders switch to lax.fori_loop with
    # dynamic leading-axis ref indexing (wq[l], ...) to bound code size.
    for li in range(L):
        # ---------------- attention (pre-norm) ----------------
        h = _layernorm(x, ln1g[li], ln1b[li]).astype(jnp.bfloat16)
        q = jnp.dot(h, wq[li], preferred_element_type=jnp.float32) + bq[li]
        k = jnp.dot(h, wk[li], preferred_element_type=jnp.float32) + bk[li]
        v = jnp.dot(h, wv[li], preferred_element_type=jnp.float32) + bv[li]

        heads = []
        for hh in range(num_heads):              # hd=16 < 128 lanes: heads are sub-lane,
            sl = slice(hh * hd, (hh + 1) * hd)   # keep a tiny static head loop
            qh = q[:, sl].astype(jnp.bfloat16).reshape(bb, T, hd)
            kh = k[:, sl].astype(jnp.bfloat16).reshape(bb, T, hd)
            vh = v[:, sl].astype(jnp.bfloat16).reshape(bb, T, hd)
            # batched over bb samples, contraction on the last dim (no k.T)
            s = jnp.einsum('bqd,bkd->bqk', qh, kh,
                           preferred_element_type=jnp.float32) * scale
            s = jnp.where(kvalid, s, -1e30)                  # mask padded key slots
            s = s - jnp.max(s, axis=-1, keepdims=True)
            pattn = jnp.exp(s)
            pattn = pattn * pl.reciprocal(jnp.sum(pattn, axis=-1, keepdims=True),
                                          approx=True)
            oh = jnp.einsum('bqk,bkd->bqd', pattn.astype(jnp.bfloat16), vh,
                            preferred_element_type=jnp.float32)
            heads.append(oh.reshape(M, hd))
        # TODO(synk): attn_drop / proj_drop (p=0.1) treated as inference-mode identity.
        o = jnp.concatenate(heads, axis=-1).astype(jnp.bfloat16)          # (M, D)
        x = x + jnp.dot(o, pw[li], preferred_element_type=jnp.float32) + pb[li]

        # ---------------- MLP (pre-norm) ----------------
        h2 = _layernorm(x, ln2g[li], ln2b[li]).astype(jnp.bfloat16)
        m = jnp.dot(h2, f1w[li], preferred_element_type=jnp.float32) + f1b[li]
        # TODO(synk): PyTorch nn.GELU is exact (erf); tanh approximation used for robust lowering.
        m = jax.nn.gelu(m, approximate=True)
        x = x + jnp.dot(m.astype(jnp.bfloat16), f2w[li],
                        preferred_element_type=jnp.float32) + f2b[li]

    # post-transformer features (cls token sliced in the wrapper) + lane-dense head
    feat_ref[...] = x.astype(feat_ref.dtype)
    dec = jnp.dot(x.astype(jnp.bfloat16), decw[...],
                  preferred_element_type=jnp.float32) + decb[...]
    dec_ref[...] = dec.astype(dec_ref.dtype)


# ---------------------------------------------------------------------------
# pallas_call wrapper
# ---------------------------------------------------------------------------
def decoder_transformer(x2d, p, num_heads, *, batch, tokens, valid_tokens, block_b=None):
    """x2d: (B*T_pad, D) f32, pos-embedding already added, padded token rows zeroed.

    Returns (feats (B*T_pad, D) f32, dec (B*T_pad, E_PAD) f32)."""
    rows, D = x2d.shape
    B, T_pad = batch, tokens
    assert rows == B * T_pad
    L = p["wq"].shape[0]
    H4 = p["fc1_w"].shape[2]
    E = p["dec_w"].shape[1]
    assert E <= E_PAD

    # lane-dense decoding head: zero-pad E -> 128 (wrapper slices [..., :E] after)
    dec_w = jnp.pad(p["dec_w"].astype(jnp.bfloat16), ((0, 0), (0, E_PAD - E)))
    dec_b = jnp.pad(p["dec_b"].astype(jnp.float32), ((0, 0), (0, E_PAD - E)))

    if block_b is None:
        # keep >=2 grid steps (v7x has 2 TensorCores) while targeting >=256 rows
        # per matmul for real batch sizes; VMEM is not a constraint at these shapes.
        bb = min(max(B // 2, 1), max(256 // T_pad, 1))
        while B % bb:
            bb -= 1
    else:
        bb = block_b
    assert B % bb == 0

    def resident(*shape):                 # full-array block, constant index_map:
        zeros = (0,) * len(shape)         # weights stay VMEM-resident across the grid
        return pl.BlockSpec(tuple(shape), lambda b: zeros)

    kern = functools.partial(decoder_kernel, num_heads=num_heads,
                             tokens=T_pad, valid_tokens=valid_tokens)
    feats, dec = pl.pallas_call(
        kern,
        out_shape=(jax.ShapeDtypeStruct((rows, D), jnp.float32),
                   jax.ShapeDtypeStruct((rows, E_PAD), jnp.float32)),
        grid=(B // bb,),
        in_specs=[
            pl.BlockSpec((bb * T_pad, D), lambda b: (b, 0)),          # activations
            resident(L, 1, D), resident(L, 1, D),                     # ln1 gamma / beta
            resident(L, D, D), resident(L, D, D), resident(L, D, D),  # wq, wk, wv (bf16)
            resident(L, 1, D), resident(L, 1, D), resident(L, 1, D),  # bq, bk, bv
            resident(L, D, D), resident(L, 1, D),                     # proj w / b
            resident(L, 1, D), resident(L, 1, D),                     # ln2 gamma / beta
            resident(L, D, H4), resident(L, 1, H4),                   # fc1 w / b
            resident(L, H4, D), resident(L, 1, D),                    # fc2 w / b
            resident(D, E_PAD), resident(1, E_PAD),                   # decoding head (padded)
        ],
        out_specs=(pl.BlockSpec((bb * T_pad, D), lambda b: (b, 0)),
                   pl.BlockSpec((bb * T_pad, E_PAD), lambda b: (b, 0))),
        compiler_params=pltpu.CompilerParams(
            dimension_semantics=("parallel",),
            vmem_limit_bytes=32 * 1024 * 1024),                       # safe on v5e/v6e/v7x
    )(x2d,
      p["ln1_g"], p["ln1_b"],
      p["wq"], p["wk"], p["wv"], p["bq"], p["bk"], p["bv"],
      p["proj_w"], p["proj_b"],
      p["ln2_g"], p["ln2_b"], p["fc1_w"], p["fc1_b"], p["fc2_w"], p["fc2_b"],
      dec_w, dec_b)
    return feats, dec


# ---------------------------------------------------------------------------
# Parameter init (deterministic, synthetic)
# ---------------------------------------------------------------------------
def init_params(key, cfg):
    D, E = cfg["emb_dim"], cfg["emb_ADT"]
    C, L = cfg["ADT_component"], cfg["decoder_layer"]
    H4 = 4 * D
    keys = iter(jax.random.split(key, 16))

    def w(shape, dtype=jnp.bfloat16):
        # trunc_normal_(std=0.02) approximated by a plain normal
        return (0.02 * jax.random.normal(next(keys), shape, jnp.float32)).astype(dtype)

    return {
        "mask_token": w((1, 1, D), jnp.float32),
        "pos_embedding": w((C + 1, 1, D), jnp.float32),
        # per-layer weights stacked on a leading L axis (VMEM-resident in the kernel);
        # matmul weights kept in bf16, LayerNorm/bias params in f32.
        "ln1_g": jnp.ones((L, 1, D), jnp.float32), "ln1_b": jnp.zeros((L, 1, D), jnp.float32),
        "wq": w((L, D, D)), "wk": w((L, D, D)), "wv": w((L, D, D)),
        "bq": jnp.zeros((L, 1, D), jnp.float32),
        "bk": jnp.zeros((L, 1, D), jnp.float32),
        "bv": jnp.zeros((L, 1, D), jnp.float32),
        "proj_w": w((L, D, D)), "proj_b": jnp.zeros((L, 1, D), jnp.float32),
        "ln2_g": jnp.ones((L, 1, D), jnp.float32), "ln2_b": jnp.zeros((L, 1, D), jnp.float32),
        "fc1_w": w((L, D, H4)), "fc1_b": jnp.zeros((L, 1, H4), jnp.float32),
        "fc2_w": w((L, H4, D)), "fc2_b": jnp.zeros((L, 1, D), jnp.float32),
        "dec_w": w((D, E), jnp.float32), "dec_b": jnp.zeros((1, E), jnp.float32),
    }


# ---------------------------------------------------------------------------
# Forward pass (mirrors ADT_Decoder.forward)
# ---------------------------------------------------------------------------
def adt_decoder_forward(params, features, backward_indexes, cfg):
    """features: (T_in, B, emb_dim); backward_indexes: (ADT_component, B) int."""
    T_in, B, D = features.shape
    C = backward_indexes.shape[0]
    T_full = C + 1
    E = cfg["emb_ADT"]

    # --- index plumbing (tiny), done once in batch-major layout ---
    bwd_full = jnp.concatenate(
        [jnp.zeros((1, B), backward_indexes.dtype), backward_indexes + 1], axis=0)  # (T_full, B)
    f = jnp.transpose(features, (1, 0, 2))                                           # (B, T_in, D)
    mask_tok = jnp.broadcast_to(params["mask_token"], (B, T_full - T_in, D)).astype(f.dtype)
    f = jnp.concatenate([f, mask_tok], axis=1)                                        # (B, T_full, D)
    idx = jnp.transpose(bwd_full).astype(jnp.int32)                                   # (B, T_full)
    f = jnp.take_along_axis(f, idx[:, :, None], axis=1)                               # take_indexes
    f = f + params["pos_embedding"][None, :, 0, :]                                    # pos add (wrapper)

    # pad tokens to a multiple of 8 (sublane alignment) and flatten batch into rows
    T_pad = ((T_full + 7) // 8) * 8
    f = jnp.pad(f, ((0, 0), (0, T_pad - T_full), (0, 0)))
    x2d = f.reshape(B * T_pad, D)

    # --- fused transformer + decoding head in ONE pallas_call ---
    feats, dec = decoder_transformer(x2d, params, cfg["decoder_head"],
                                     batch=B, tokens=T_pad, valid_tokens=T_full)

    cls = feats.reshape(B, T_pad, D)[:, 0, :]                                         # (B, D)
    dec_r = dec.reshape(B, T_pad, E_PAD)[:, 1:T_full, :E]                             # (B, C, E)
    patches = dec_r.reshape(B, 1, C * E)
    # mask: tokens masked in the encoder (shuffled position >= T_in-1), already in
    # original order == elementwise test on backward_indexes.
    mvals = (backward_indexes >= (T_in - 1)).astype(patches.dtype)                    # (C, B)
    mask = jnp.broadcast_to(jnp.transpose(mvals)[:, :, None], (B, C, E)).reshape(B, 1, C * E)
    all_cls = [cls]                                                                   # list, as in reference
    return patches, mask, all_cls


# ---------------------------------------------------------------------------
if __name__ == "__main__":
    cfg = dict(
        emb_dim=64,
        emb_ADT=10,
        ADT_component=11,
        ADT_tokens=110,      # == ADT_component * emb_ADT
        decoder_head=4,
        decoder_layer=2,
    )
    B = 2
    T_in = 9                 # visible tokens from the encoder (8) + cls token

    root = jax.random.PRNGKey(0)
    kp, kf, ki = jax.random.split(root, 3)
    params = init_params(kp, cfg)
    features = jax.random.normal(kf, (T_in, B, cfg["emb_dim"]), jnp.float32)
    # backward_indexes: per-batch permutation of the ADT tokens (encoder PatchShuffle)
    bwd = jnp.stack(
        [jax.random.permutation(k, cfg["ADT_component"])
         for k in jax.random.split(ki, B)], axis=1).astype(jnp.int32)                 # (C, B)

    patches, mask, all_cls = adt_decoder_forward(params, features, bwd, cfg)
    jax.block_until_ready(patches)
    jax.block_until_ready(mask)
    jax.block_until_ready(all_cls[0])

    assert patches.shape == (B, 1, cfg["ADT_tokens"])
    assert mask.shape == (B, 1, cfg["ADT_tokens"])
    assert all_cls[0].shape == (B, cfg["emb_dim"])
    print("KERNEL_OK")
</pallas_src>

<mosaic_0001>
module attributes {stable_mosaic.version = 11 : i64} {
  func.func @decoder_kernel(%arg0: i32, %arg1: memref<16x64xf32, #tpu.memory_space<vmem>>, %arg2: memref<2x1x64xf32, #tpu.memory_space<vmem>>, %arg3: memref<2x1x64xf32, #tpu.memory_space<vmem>>, %arg4: memref<2x64x64xbf16, #tpu.memory_space<vmem>>, %arg5: memref<2x64x64xbf16, #tpu.memory_space<vmem>>, %arg6: memref<2x64x64xbf16, #tpu.memory_space<vmem>>, %arg7: memref<2x1x64xf32, #tpu.memory_space<vmem>>, %arg8: memref<2x1x64xf32, #tpu.memory_space<vmem>>, %arg9: memref<2x1x64xf32, #tpu.memory_space<vmem>>, %arg10: memref<2x64x64xbf16, #tpu.memory_space<vmem>>, %arg11: memref<2x1x64xf32, #tpu.memory_space<vmem>>, %arg12: memref<2x1x64xf32, #tpu.memory_space<vmem>>, %arg13: memref<2x1x64xf32, #tpu.memory_space<vmem>>, %arg14: memref<2x64x256xbf16, #tpu.memory_space<vmem>>, %arg15: memref<2x1x256xf32, #tpu.memory_space<vmem>>, %arg16: memref<2x256x64xbf16, #tpu.memory_space<vmem>>, %arg17: memref<2x1x64xf32, #tpu.memory_space<vmem>>, %arg18: memref<64x128xbf16, #tpu.memory_space<vmem>>, %arg19: memref<1x128xf32, #tpu.memory_space<vmem>>, %arg20: memref<16x64xf32, #tpu.memory_space<vmem>>, %arg21: memref<16x128xf32, #tpu.memory_space<vmem>>) attributes {dimension_semantics = [#tpu.dimension_semantics<parallel>], iteration_bounds = array<i64: 2>, scalar_prefetch = 0 : i64, scratch_operands = 0 : i64, tpu.core_type = #tpu.core_type<tc>, window_params = [{transform_indices = @transform_0, window_bounds = array<i64: 16, 64>}, {pipeline_mode = #tpu.pipeline_mode<synchronous>, transform_indices = @transform_1, window_bounds = array<i64: 2, 1, 64>}, {pipeline_mode = #tpu.pipeline_mode<synchronous>, transform_indices = @transform_2, window_bounds = array<i64: 2, 1, 64>}, {pipeline_mode = #tpu.pipeline_mode<synchronous>, transform_indices = @transform_3, window_bounds = array<i64: 2, 64, 64>}, {pipeline_mode = #tpu.pipeline_mode<synchronous>, transform_indices = @transform_4, window_bounds = array<i64: 2, 64, 64>}, {pipeline_mode = #tpu.pipeline_mode<synchronous>, transform_indices = @transform_5, window_bounds = array<i64: 2, 64, 64>}, {pipeline_mode = #tpu.pipeline_mode<synchronous>, transform_indices = @transform_6, window_bounds = array<i64: 2, 1, 64>}, {pipeline_mode = #tpu.pipeline_mode<synchronous>, transform_indices = @transform_7, window_bounds = array<i64: 2, 1, 64>}, {pipeline_mode = #tpu.pipeline_mode<synchronous>, transform_indices = @transform_8, window_bounds = array<i64: 2, 1, 64>}, {pipeline_mode = #tpu.pipeline_mode<synchronous>, transform_indices = @transform_9, window_bounds = array<i64: 2, 64, 64>}, {pipeline_mode = #tpu.pipeline_mode<synchronous>, transform_indices = @transform_10, window_bounds = array<i64: 2, 1, 64>}, {pipeline_mode = #tpu.pipeline_mode<synchronous>, transform_indices = @transform_11, window_bounds = array<i64: 2, 1, 64>}, {pipeline_mode = #tpu.pipeline_mode<synchronous>, transform_indices = @transform_12, window_bounds = array<i64: 2, 1, 64>}, {pipeline_mode = #tpu.pipeline_mode<synchronous>, transform_indices = @transform_13, window_bounds = array<i64: 2, 64, 256>}, {pipeline_mode = #tpu.pipeline_mode<synchronous>, transform_indices = @transform_14, window_bounds = array<i64: 2, 1, 256>}, {pipeline_mode = #tpu.pipeline_mode<synchronous>, transform_indices = @transform_15, window_bounds = array<i64: 2, 256, 64>}, {pipeline_mode = #tpu.pipeline_mode<synchronous>, transform_indices = @transform_16, window_bounds = array<i64: 2, 1, 64>}, {pipeline_mode = #tpu.pipeline_mode<synchronous>, transform_indices = @transform_17, window_bounds = array<i64: 64, 128>}, {pipeline_mode = #tpu.pipeline_mode<synchronous>, transform_indices = @transform_18, window_bounds = array<i64: 1, 128>}, {transform_indices = @transform_19, window_bounds = array<i64: 16, 64>}, {transform_indices = @transform_20, window_bounds = array<i64: 16, 128>}]} {
    %0 = tpu.iota {dimensions = array<i32: 2>} : vector<1x1x16xi32>
    %c12_i32 = arith.constant 12 : i32
    %1 = vector.broadcast %c12_i32 : i32 to vector<1x1x16xi32>
    %2 = arith.cmpi slt, %0, %1 : vector<1x1x16xi32>
    %c0 = arith.constant 0 : index
    %c0_0 = arith.constant 0 : index
    %3 = vector.load %arg1[%c0, %c0_0] : memref<16x64xf32, #tpu.memory_space<vmem>>, vector<16x64xf32>
    %c0_1 = arith.constant 0 : index
    %c0_2 = arith.constant 0 : index
    %c0_3 = arith.constant 0 : index
    %4 = vector.load %arg2[%c0_1, %c0_2, %c0_3] : memref<2x1x64xf32, #tpu.memory_space<vmem>>, vector<1x1x64xf32>
    %5 = vector.shape_cast %4 : vector<1x1x64xf32> to vector<1x64xf32>
    %c0_4 = arith.constant 0 : index
    %c0_5 = arith.constant 0 : index
    %c0_6 = arith.constant 0 : index
    %6 = vector.load %arg3[%c0_4, %c0_5, %c0_6] : memref<2x1x64xf32, #tpu.memory_space<vmem>>, vector<1x1x64xf32>
    %7 = vector.shape_cast %6 : vector<1x1x64xf32> to vector<1x64xf32>
    %cst = arith.constant dense<0.000000e+00> : vector<16xf32>
    %8 = vector.multi_reduction <add>, %3, %cst [1] : vector<16x64xf32> to vector<16xf32>
    %9 = vector.shape_cast %8 : vector<16xf32> to vector<16x1xf32>
    %cst_7 = arith.constant 6.400000e+01 : f32
    %10 = vector.broadcast %cst_7 : f32 to vector<16x1xf32>
    %11 = arith.divf %9, %10 : vector<16x1xf32>
    %12 = vector.broadcast %11 : vector<16x1xf32> to vector<16x64xf32>
    %13 = arith.subf %3, %12 : vector<16x64xf32>
    %14 = arith.mulf %13, %13 : vector<16x64xf32>
    %cst_8 = arith.constant dense<0.000000e+00> : vector<16xf32>
    %15 = vector.multi_reduction <add>, %14, %cst_8 [1] : vector<16x64xf32> to vector<16xf32>
    %16 = vector.shape_cast %15 : vector<16xf32> to vector<16x1xf32>
    %cst_9 = arith.constant 6.400000e+01 : f32
    %17 = vector.broadcast %cst_9 : f32 to vector<16x1xf32>
    %18 = arith.divf %16, %17 : vector<16x1xf32>
    %19 = vector.broadcast %11 : vector<16x1xf32> to vector<16x64xf32>
    %20 = arith.subf %3, %19 : vector<16x64xf32>
    %cst_10 = arith.constant 9.99999974E-6 : f32
    %21 = vector.broadcast %cst_10 : f32 to vector<16x1xf32>
    %22 = arith.addf %18, %21 : vector<16x1xf32>
    %23 = math.rsqrt %22 : vector<16x1xf32>
    %24 = vector.broadcast %23 : vector<16x1xf32> to vector<16x64xf32>
    %25 = arith.mulf %20, %24 : vector<16x64xf32>
    %26 = vector.broadcast %5 : vector<1x64xf32> to vector<16x64xf32>
    %27 = arith.mulf %25, %26 : vector<16x64xf32>
    %28 = vector.broadcast %7 : vector<1x64xf32> to vector<16x64xf32>
    %29 = arith.addf %27, %28 : vector<16x64xf32>
    %30 = arith.truncf %29 : vector<16x64xf32> to vector<16x64xbf16>
    %c0_11 = arith.constant 0 : index
    %c0_12 = arith.constant 0 : index
    %c0_13 = arith.constant 0 : index
    %31 = vector.load %arg4[%c0_11, %c0_12, %c0_13] : memref<2x64x64xbf16, #tpu.memory_space<vmem>>, vector<1x64x64xbf16>
    %32 = vector.shape_cast %31 : vector<1x64x64xbf16> to vector<64x64xbf16>
    %cst_14 = arith.constant dense<0.000000e+00> : vector<16x64xf32>
    %33 = tpu.matmul %30, %32, %cst_14 {dimension_numbers = #tpu.dot_dimension_numbers<[1], [0], [0], [1], [0, 0, 1, 1], [], []>} : vector<16x64xbf16>, vector<64x64xbf16>, vector<16x64xf32> -> vector<16x64xf32>
    %c0_15 = arith.constant 0 : index
    %c0_16 = arith.constant 0 : index
    %c0_17 = arith.constant 0 : index
    %34 = vector.load %arg7[%c0_15, %c0_16, %c0_17] : memref<2x1x64xf32, #tpu.memory_space<vmem>>, vector<1x1x64xf32>
    %35 = vector.shape_cast %34 : vector<1x1x64xf32> to vector<1x64xf32>
    %36 = vector.broadcast %35 : vector<1x64xf32> to vector<16x64xf32>
    %37 = arith.addf %33, %36 : vector<16x64xf32>
    %c0_18 = arith.constant 0 : index
    %c0_19 = arith.constant 0 : index
    %c0_20 = arith.constant 0 : index
    %38 = vector.load %arg5[%c0_18, %c0_19, %c0_20] : memref<2x64x64xbf16, #tpu.memory_space<vmem>>, vector<1x64x64xbf16>
    %39 = vector.shape_cast %38 : vector<1x64x64xbf16> to vector<64x64xbf16>
    %cst_21 = arith.constant dense<0.000000e+00> : vector<16x64xf32>
    %40 = tpu.matmul %30, %39, %cst_21 {dimension_numbers = #tpu.dot_dimension_numbers<[1], [0], [0], [1], [0, 0, 1, 1], [], []>} : vector<16x64xbf16>, vector<64x64xbf16>, vector<16x64xf32> -> vector<16x64xf32>
    %c0_22 = arith.constant 0 : index
    %c0_23 = arith.constant 0 : index
    %c0_24 = arith.constant 0 : index
    %41 = vector.load %arg8[%c0_22, %c0_23, %c0_24] : memref<2x1x64xf32, #tpu.memory_space<vmem>>, vector<1x1x64xf32>
    %42 = vector.shape_cast %41 : vector<1x1x64xf32> to vector<1x64xf32>
    %43 = vector.broadcast %42 : vector<1x64xf32> to vector<16x64xf32>
    %44 = arith.addf %40, %43 : vector<16x64xf32>
    %c0_25 = arith.constant 0 : index
    %c0_26 = arith.constant 0 : index
    %c0_27 = arith.constant 0 : index
    %45 = vector.load %arg6[%c0_25, %c0_26, %c0_27] : memref<2x64x64xbf16, #tpu.memory_space<vmem>>, vector<1x64x64xbf16>
    %46 = vector.shape_cast %45 : vector<1x64x64xbf16> to vector<64x64xbf16>
    %cst_28 = arith.constant dense<0.000000e+00> : vector<16x64xf32>
    %47 = tpu.matmul %30, %46, %cst_28 {dimension_numbers = #tpu.dot_dimension_numbers<[1], [0], [0], [1], [0, 0, 1, 1], [], []>} : vector<16x64xbf16>, vector<64x64xbf16>, vector<16x64xf32> -> vector<16x64xf32>
    %c0_29 = arith.constant 0 : index
    %c0_30 = arith.constant 0 : index
    %c0_31 = arith.constant 0 : index
    %48 = vector.load %arg9[%c0_29, %c0_30, %c0_31] : memref<2x1x64xf32, #tpu.memory_space<vmem>>, vector<1x1x64xf32>
    %49 = vector.shape_cast %48 : vector<1x1x64xf32> to vector<1x64xf32>
    %50 = vector.broadcast %49 : vector<1x64xf32> to vector<16x64xf32>
    %51 = arith.addf %47, %50 : vector<16x64xf32>
    %52 = vector.extract_strided_slice %37 {offsets = [0, 0], sizes = [16, 16], strides = [1, 1]} : vector<16x64xf32> to vector<16x16xf32>
    %53 = arith.truncf %52 : vector<16x16xf32> to vector<16x16xbf16>
    %54 = vector.shape_cast %53 : vector<16x16xbf16> to vector<1x16x16xbf16>
    %55 = vector.extract_strided_slice %44 {offsets = [0, 0], sizes = [16, 16], strides = [1, 1]} : vector<16x64xf32> to vector<16x16xf32>
    %56 = arith.truncf %55 : vector<16x16xf32> to vector<16x16xbf16>
    %57 = vector.shape_cast %56 : vector<16x16xbf16> to vector<1x16x16xbf16>
    %58 = vector.extract_strided_slice %51 {offsets = [0, 0], sizes = [16, 16], strides = [1, 1]} : vector<16x64xf32> to vector<16x16xf32>
    %59 = arith.truncf %58 : vector<16x16xf32> to vector<16x16xbf16>
    %60 = vector.shape_cast %59 : vector<16x16xbf16> to vector<1x16x16xbf16>
    "tpu.trace_start"() <{level = 10 : i32, message = "bqd,bkd->bqk"}> : () -> ()
    %cst_32 = arith.constant dense<0.000000e+00> : vector<1x16x16xf32>
    %61 = tpu.matmul %54, %57, %cst_32 {dimension_numbers = #tpu.dot_dimension_numbers<[2], [2], [1], [1], [0, 0, 0, 1, 1, 1], [0], [0]>} : vector<1x16x16xbf16>, vector<1x16x16xbf16>, vector<1x16x16xf32> -> vector<1x16x16xf32>
    "tpu.trace_stop"() : () -> ()
    %cst_33 = arith.constant 2.500000e-01 : f32
    %62 = vector.broadcast %cst_33 : f32 to vector<1x16x16xf32>
    %63 = arith.mulf %61, %62 : vector<1x16x16xf32>
    %cst_34 = arith.constant -1.000000e+30 : f32
    %64 = vector.shape_cast %2 : vector<1x1x16xi1> to vector<1x1x16xi1>
    %65 = vector.broadcast %64 : vector<1x1x16xi1> to vector<1x16x16xi1>
    %66 = vector.broadcast %cst_34 : f32 to vector<1x16x16xf32>
    %67 = arith.select %65, %63, %66 : vector<1x16x16xi1>, vector<1x16x16xf32>
    %cst_35 = arith.constant dense<0xFF800000> : vector<1x16xf32>
    %68 = vector.multi_reduction <maximumf>, %67, %cst_35 [2] : vector<1x16x16xf32> to vector<1x16xf32>
    %69 = vector.shape_cast %68 : vector<1x16xf32> to vector<1x16x1xf32>
    %70 = vector.broadcast %69 : vector<1x16x1xf32> to vector<1x16x16xf32>
    %71 = arith.subf %67, %70 : vector<1x16x16xf32>
    %72 = math.exp %71 : vector<1x16x16xf32>
    %cst_36 = arith.constant dense<0.000000e+00> : vector<1x16xf32>
    %73 = vector.multi_reduction <add>, %72, %cst_36 [2] : vector<1x16x16xf32> to vector<1x16xf32>
    %74 = vector.shape_cast %73 : vector<1x16xf32> to vector<1x16x1xf32>
    %75 = tpu.reciprocal %74 {approx = true} : vector<1x16x1xf32> -> vector<1x16x1xf32>
    %76 = vector.broadcast %75 : vector<1x16x1xf32> to vector<1x16x16xf32>
    %77 = arith.mulf %72, %76 : vector<1x16x16xf32>
    %78 = arith.truncf %77 : vector<1x16x16xf32> to vector<1x16x16xbf16>
    "tpu.trace_start"() <{level = 10 : i32, message = "bqk,bkd->bqd"}> : () -> ()
    %cst_37 = arith.constant dense<0.000000e+00> : vector<1x16x16xf32>
    %79 = tpu.matmul %78, %60, %cst_37 {dimension_numbers = #tpu.dot_dimension_numbers<[2], [1], [1], [2], [0, 0, 0, 1, 1, 2], [0], [0]>} : vector<1x16x16xbf16>, vector<1x16x16xbf16>, vector<1x16x16xf32> -> vector<1x16x16xf32>
    "tpu.trace_stop"() : () -> ()
    %80 = vector.shape_cast %79 : vector<1x16x16xf32> to vector<16x16xf32>
    %81 = vector.extract_strided_slice %37 {offsets = [0, 16], sizes = [16, 16], strides = [1, 1]} : vector<16x64xf32> to vector<16x16xf32>
    %82 = arith.truncf %81 : vector<16x16xf32> to vector<16x16xbf16>
    %83 = vector.shape_cast %82 : vector<16x16xbf16> to vector<1x16x16xbf16>
    %84 = vector.extract_strided_slice %44 {offsets = [0, 16], sizes = [16, 16], strides = [1, 1]} : vector<16x64xf32> to vector<16x16xf32>
    %85 = arith.truncf %84 : vector<16x16xf32> to vector<16x16xbf16>
    %86 = vector.shape_cast %85 : vector<16x16xbf16> to vector<1x16x16xbf16>
    %87 = vector.extract_strided_slice %51 {offsets = [0, 16], sizes = [16, 16], strides = [1, 1]} : vector<16x64xf32> to vector<16x16xf32>
    %88 = arith.truncf %87 : vector<16x16xf32> to vector<16x16xbf16>
    %89 = vector.shape_cast %88 : vector<16x16xbf16> to vector<1x16x16xbf16>
    "tpu.trace_start"() <{level = 10 : i32, message = "bqd,bkd->bqk"}> : () -> ()
    %cst_38 = arith.constant dense<0.000000e+00> : vector<1x16x16xf32>
    %90 = tpu.matmul %83, %86, %cst_38 {dimension_numbers = #tpu.dot_dimension_numbers<[2], [2], [1], [1], [0, 0, 0, 1, 1, 1], [0], [0]>} : vector<1x16x16xbf16>, vector<1x16x16xbf16>, vector<1x16x16xf32> -> vector<1x16x16xf32>
    "tpu.trace_stop"() : () -> ()
    %cst_39 = arith.constant 2.500000e-01 : f32
    %91 = vector.broadcast %cst_39 : f32 to vector<1x16x16xf32>
    %92 = arith.mulf %90, %91 : vector<1x16x16xf32>
    %cst_40 = arith.constant -1.000000e+30 : f32
    %93 = vector.shape_cast %2 : vector<1x1x16xi1> to vector<1x1x16xi1>
    %94 = vector.broadcast %93 : vector<1x1x16xi1> to vector<1x16x16xi1>
    %95 = vector.broadcast %cst_40 : f32 to vector<1x16x16xf32>
    %96 = arith.select %94, %92, %95 : vector<1x16x16xi1>, vector<1x16x16xf32>
    %cst_41 = arith.constant dense<0xFF800000> : vector<1x16xf32>
    %97 = vector.multi_reduction <maximumf>, %96, %cst_41 [2] : vector<1x16x16xf32> to vector<1x16xf32>
    %98 = vector.shape_cast %97 : vector<1x16xf32> to vector<1x16x1xf32>
    %99 = vector.broadcast %98 : vector<1x16x1xf32> to vector<1x16x16xf32>
    %100 = arith.subf %96, %99 : vector<1x16x16xf32>
    %101 = math.exp %100 : vector<1x16x16xf32>
    %cst_42 = arith.constant dense<0.000000e+00> : vector<1x16xf32>
    %102 = vector.multi_reduction <add>, %101, %cst_42 [2] : vector<1x16x16xf32> to vector<1x16xf32>
    %103 = vector.shape_cast %102 : vector<1x16xf32> to vector<1x16x1xf32>
    %104 = tpu.reciprocal %103 {approx = true} : vector<1x16x1xf32> -> vector<1x16x1xf32>
    %105 = vector.broadcast %104 : vector<1x16x1xf32> to vector<1x16x16xf32>
    %106 = arith.mulf %101, %105 : vector<1x16x16xf32>
    %107 = arith.truncf %106 : vector<1x16x16xf32> to vector<1x16x16xbf16>
    "tpu.trace_start"() <{level = 10 : i32, message = "bqk,bkd->bqd"}> : () -> ()
    %cst_43 = arith.constant dense<0.000000e+00> : vector<1x16x16xf32>
    %108 = tpu.matmul %107, %89, %cst_43 {dimension_numbers = #tpu.dot_dimension_numbers<[2], [1], [1], [2], [0, 0, 0, 1, 1, 2], [0], [0]>} : vector<1x16x16xbf16>, vector<1x16x16xbf16>, vector<1x16x16xf32> -> vector<1x16x16xf32>
    "tpu.trace_stop"() : () -> ()
    %109 = vector.shape_cast %108 : vector<1x16x16xf32> to vector<16x16xf32>
    %110 = vector.extract_strided_slice %37 {offsets = [0, 32], sizes = [16, 16], strides = [1, 1]} : vector<16x64xf32> to vector<16x16xf32>
    %111 = arith.truncf %110 : vector<16x16xf32> to vector<16x16xbf16>
    %112 = vector.shape_cast %111 : vector<16x16xbf16> to vector<1x16x16xbf16>
    %113 = vector.extract_strided_slice %44 {offsets = [0, 32], sizes = [16, 16], strides = [1, 1]} : vector<16x64xf32> to vector<16x16xf32>
    %114 = arith.truncf %113 : vector<16x16xf32> to vector<16x16xbf16>
    %115 = vector.shape_cast %114 : vector<16x16xbf16> to vector<1x16x16xbf16>
    %116 = vector.extract_strided_slice %51 {offsets = [0, 32], sizes = [16, 16], strides = [1, 1]} : vector<16x64xf32> to vector<16x16xf32>
    %117 = arith.truncf %116 : vector<16x16xf32> to vector<16x16xbf16>
    %118 = vector.shape_cast %117 : vector<16x16xbf16> to vector<1x16x16xbf16>
    "tpu.trace_start"() <{level = 10 : i32, message = "bqd,bkd->bqk"}> : () -> ()
    %cst_44 = arith.constant dense<0.000000e+00> : vector<1x16x16xf32>
    %119 = tpu.matmul %112, %115, %cst_44 {dimension_numbers = #tpu.dot_dimension_numbers<[2], [2], [1], [1], [0, 0, 0, 1, 1, 1], [0], [0]>} : vector<1x16x16xbf16>, vector<1x16x16xbf16>, vector<1x16x16xf32> -> vector<1x16x16xf32>
    "tpu.trace_stop"() : () -> ()
    %cst_45 = arith.constant 2.500000e-01 : f32
    %120 = vector.broadcast %cst_45 : f32 to vector<1x16x16xf32>
    %121 = arith.mulf %119, %120 : vector<1x16x16xf32>
    %cst_46 = arith.constant -1.000000e+30 : f32
    %122 = vector.shape_cast %2 : vector<1x1x16xi1> to vector<1x1x16xi1>
    %123 = vector.broadcast %122 : vector<1x1x16xi1> to vector<1x16x16xi1>
    %124 = vector.broadcast %cst_46 : f32 to vector<1x16x16xf32>
    %125 = arith.select %123, %121, %124 : vector<1x16x16xi1>, vector<1x16x16xf32>
    %cst_47 = arith.constant dense<0xFF800000> : vector<1x16xf32>
    %126 = vector.multi_reduction <maximumf>, %125, %cst_47 [2] : vector<1x16x16xf32> to vector<1x16xf32>
    %127 = vector.shape_cast %126 : vector<1x16xf32> to vector<1x16x1xf32>
    %128 = vector.broadcast %127 : vector<1x16x1xf32> to vector<1x16x16xf32>
    %129 = arith.subf %125, %128 : vector<1x16x16xf32>
    %130 = math.exp %129 : vector<1x16x16xf32>
    %cst_48 = arith.constant dense<0.000000e+00> : vector<1x16xf32>
    %131 = vector.multi_reduction <add>, %130, %cst_48 [2] : vector<1x16x16xf32> to vector<1x16xf32>
    %132 = vector.shape_cast %131 : vector<1x16xf32> to vector<1x16x1xf32>
    %133 = tpu.reciprocal %132 {approx = true} : vector<1x16x1xf32> -> vector<1x16x1xf32>
    %134 = vector.broadcast %133 : vector<1x16x1xf32> to vector<1x16x16xf32>
    %135 = arith.mulf %130, %134 : vector<1x16x16xf32>
    %136 = arith.truncf %135 : vector<1x16x16xf32> to vector<1x16x16xbf16>
    "tpu.trace_start"() <{level = 10 : i32, message = "bqk,bkd->bqd"}> : () -> ()
    %cst_49 = arith.constant dense<0.000000e+00> : vector<1x16x16xf32>
    %137 = tpu.matmul %136, %118, %cst_49 {dimension_numbers = #tpu.dot_dimension_numbers<[2], [1], [1], [2], [0, 0, 0, 1, 1, 2], [0], [0]>} : vector<1x16x16xbf16>, vector<1x16x16xbf16>, vector<1x16x16xf32> -> vector<1x16x16xf32>
    "tpu.trace_stop"() : () -> ()
    %138 = vector.shape_cast %137 : vector<1x16x16xf32> to vector<16x16xf32>
    %139 = vector.extract_strided_slice %37 {offsets = [0, 48], sizes = [16, 16], strides = [1, 1]} : vector<16x64xf32> to vector<16x16xf32>
    %140 = arith.truncf %139 : vector<16x16xf32> to vector<16x16xbf16>
    %141 = vector.shape_cast %140 : vector<16x16xbf16> to vector<1x16x16xbf16>
    %142 = vector.extract_strided_slice %44 {offsets = [0, 48], sizes = [16, 16], strides = [1, 1]} : vector<16x64xf32> to vector<16x16xf32>
    %143 = arith.truncf %142 : vector<16x16xf32> to vector<16x16xbf16>
    %144 = vector.shape_cast %143 : vector<16x16xbf16> to vector<1x16x16xbf16>
    %145 = vector.extract_strided_slice %51 {offsets = [0, 48], sizes = [16, 16], strides = [1, 1]} : vector<16x64xf32> to vector<16x16xf32>
    %146 = arith.truncf %145 : vector<16x16xf32> to vector<16x16xbf16>
    %147 = vector.shape_cast %146 : vector<16x16xbf16> to vector<1x16x16xbf16>
    "tpu.trace_start"() <{level = 10 : i32, message = "bqd,bkd->bqk"}> : () -> ()
    %cst_50 = arith.constant dense<0.000000e+00> : vector<1x16x16xf32>
    %148 = tpu.matmul %141, %144, %cst_50 {dimension_numbers = #tpu.dot_dimension_numbers<[2], [2], [1], [1], [0, 0, 0, 1, 1, 1], [0], [0]>} : vector<1x16x16xbf16>, vector<1x16x16xbf16>, vector<1x16x16xf32> -> vector<1x16x16xf32>
    "tpu.trace_stop"() : () -> ()
    %cst_51 = arith.constant 2.500000e-01 : f32
    %149 = vector.broadcast %cst_51 : f32 to vector<1x16x16xf32>
    %150 = arith.mulf %148, %149 : vector<1x16x16xf32>
    %cst_52 = arith.constant -1.000000e+30 : f32
    %151 = vector.shape_cast %2 : vector<1x1x16xi1> to vector<1x1x16xi1>
    %152 = vector.broadcast %151 : vector<1x1x16xi1> to vector<1x16x16xi1>
    %153 = vector.broadcast %cst_52 : f32 to vector<1x16x16xf32>
    %154 = arith.select %152, %150, %153 : vector<1x16x16xi1>, vector<1x16x16xf32>
    %cst_53 = arith.constant dense<0xFF800000> : vector<1x16xf32>
    %155 = vector.multi_reduction <maximumf>, %154, %cst_53 [2] : vector<1x16x16xf32> to vector<1x16xf32>
    %156 = vector.shape_cast %155 : vector<1x16xf32> to vector<1x16x1xf32>
    %157 = vector.broadcast %156 : vector<1x16x1xf32> to vector<1x16x16xf32>
    %158 = arith.subf %154, %157 : vector<1x16x16xf32>
    %159 = math.exp %158 : vector<1x16x16xf32>
    %cst_54 = arith.constant dense<0.000000e+00> : vector<1x16xf32>
    %160 = vector.multi_reduction <add>, %159, %cst_54 [2] : vector<1x16x16xf32> to vector<1x16xf32>
    %161 = vector.shape_cast %160 : vector<1x16xf32> to vector<1x16x1xf32>
    %162 = tpu.reciprocal %161 {approx = true} : vector<1x16x1xf32> -> vector<1x16x1xf32>
    %163 = vector.broadcast %162 : vector<1x16x1xf32> to vector<1x16x16xf32>
    %164 = arith.mulf %159, %163 : vector<1x16x16xf32>
    %165 = arith.truncf %164 : vector<1x16x16xf32> to vector<1x16x16xbf16>
    "tpu.trace_start"() <{level = 10 : i32, message = "bqk,bkd->bqd"}> : () -> ()
    %cst_55 = arith.constant dense<0.000000e+00> : vector<1x16x16xf32>
    %166 = tpu.matmul %165, %147, %cst_55 {dimension_numbers = #tpu.dot_dimension_numbers<[2], [1], [1], [2], [0, 0, 0, 1, 1, 2], [0], [0]>} : vector<1x16x16xbf16>, vector<1x16x16xbf16>, vector<1x16x16xf32> -> vector<1x16x16xf32>
    "tpu.trace_stop"() : () -> ()
    %167 = vector.shape_cast %166 : vector<1x16x16xf32> to vector<16x16xf32>
    %168 = tpu.concatenate %80, %109, %138, %167 in 1 : vector<16x16xf32>, vector<16x16xf32>, vector<16x16xf32>, vector<16x16xf32> -> vector<16x64xf32>
    %169 = arith.truncf %168 : vector<16x64xf32> to vector<16x64xbf16>
    %c0_56 = arith.constant 0 : index
    %c0_57 = arith.constant 0 : index
    %c0_58 = arith.constant 0 : index
    %170 = vector.load %arg10[%c0_56, %c0_57, %c0_58] : memref<2x64x64xbf16, #tpu.memory_space<vmem>>, vector<1x64x64xbf16>
    %171 = vector.shape_cast %170 : vector<1x64x64xbf16> to vector<64x64xbf16>
    %cst_59 = arith.constant dense<0.000000e+00> : vector<16x64xf32>
    %172 = tpu.matmul %169, %171, %cst_59 {dimension_numbers = #tpu.dot_dimension_numbers<[1], [0], [0], [1], [0, 0, 1, 1], [], []>} : vector<16x64xbf16>, vector<64x64xbf16>, vector<16x64xf32> -> vector<16x64xf32>
    %173 = arith.addf %3, %172 : vector<16x64xf32>
    %c0_60 = arith.constant 0 : index
    %c0_61 = arith.constant 0 : index
    %c0_62 = arith.constant 0 : index
    %174 = vector.load %arg11[%c0_60, %c0_61, %c0_62] : memref<2x1x64xf32, #tpu.memory_space<vmem>>, vector<1x1x64xf32>
    %175 = vector.shape_cast %174 : vector<1x1x64xf32> to vector<1x64xf32>
    %176 = vector.broadcast %175 : vector<1x64xf32> to vector<16x64xf32>
    %177 = arith.addf %173, %176 : vector<16x64xf32>
    %c0_63 = arith.constant 0 : index
    %c0_64 = arith.constant 0 : index
    %c0_65 = arith.constant 0 : index
    %178 = vector.load %arg12[%c0_63, %c0_64, %c0_65] : memref<2x1x64xf32, #tpu.memory_space<vmem>>, vector<1x1x64xf32>
    %179 = vector.shape_cast %178 : vector<1x1x64xf32> to vector<1x64xf32>
    %c0_66 = arith.constant 0 : index
    %c0_67 = arith.constant 0 : index
    %c0_68 = arith.constant 0 : index
    %180 = vector.load %arg13[%c0_66, %c0_67, %c0_68] : memref<2x1x64xf32, #tpu.memory_space<vmem>>, vector<1x1x64xf32>
    %181 = vector.shape_cast %180 : vector<1x1x64xf32> to vector<1x64xf32>
    %cst_69 = arith.constant dense<0.000000e+00> : vector<16xf32>
    %182 = vector.multi_reduction <add>, %177, %cst_69 [1] : vector<16x64xf32> to vector<16xf32>
    %183 = vector.shape_cast %182 : vector<16xf32> to vector<16x1xf32>
    %cst_70 = arith.constant 6.400000e+01 : f32
    %184 = vector.broadcast %cst_70 : f32 to vector<16x1xf32>
    %185 = arith.divf %183, %184 : vector<16x1xf32>
    %186 = vector.broadcast %185 : vector<16x1xf32> to vector<16x64xf32>
    %187 = arith.subf %177, %186 : vector<16x64xf32>
    %188 = arith.mulf %187, %187 : vector<16x64xf32>
    %cst_71 = arith.constant dense<0.000000e+00> : vector<16xf32>
    %189 = vector.multi_reduction <add>, %188, %cst_71 [1] : vector<16x64xf32> to vector<16xf32>
    %190 = vector.shape_cast %189 : vector<16xf32> to vector<16x1xf32>
    %cst_72 = arith.constant 6.400000e+01 : f32
    %191 = vector.broadcast %cst_72 : f32 to vector<16x1xf32>
    %192 = arith.divf %190, %191 : vector<16x1xf32>
    %193 = vector.broadcast %185 : vector<16x1xf32> to vector<16x64xf32>
    %194 = arith.subf %177, %193 : vector<16x64xf32>
    %cst_73 = arith.constant 9.99999974E-6 : f32
    %195 = vector.broadcast %cst_73 : f32 to vector<16x1xf32>
    %196 = arith.addf %192, %195 : vector<16x1xf32>
    %197 = math.rsqrt %196 : vector<16x1xf32>
    %198 = vector.broadcast %197 : vector<16x1xf32> to vector<16x64xf32>
    %199 = arith.mulf %194, %198 : vector<16x64xf32>
    %200 = vector.broadcast %179 : vector<1x64xf32> to vector<16x64xf32>
    %201 = arith.mulf %199, %200 : vector<16x64xf32>
    %202 = vector.broadcast %181 : vector<1x64xf32> to vector<16x64xf32>
    %203 = arith.addf %201, %202 : vector<16x64xf32>
    %204 = arith.truncf %203 : vector<16x64xf32> to vector<16x64xbf16>
    %c0_74 = arith.constant 0 : index
    %c0_75 = arith.constant 0 : index
    %c0_76 = arith.constant 0 : index
    %205 = vector.load %arg14[%c0_74, %c0_75, %c0_76] : memref<2x64x256xbf16, #tpu.memory_space<vmem>>, vector<1x64x256xbf16>
    %206 = vector.shape_cast %205 : vector<1x64x256xbf16> to vector<64x256xbf16>
    %cst_77 = arith.constant dense<0.000000e+00> : vector<16x256xf32>
    %207 = tpu.matmul %204, %206, %cst_77 {dimension_numbers = #tpu.dot_dimension_numbers<[1], [0], [0], [1], [0, 0, 1, 1], [], []>} : vector<16x64xbf16>, vector<64x256xbf16>, vector<16x256xf32> -> vector<16x256xf32>
    %c0_78 = arith.constant 0 : index
    %c0_79 = arith.constant 0 : index
    %c0_80 = arith.constant 0 : index
    %208 = vector.load %arg15[%c0_78, %c0_79, %c0_80] : memref<2x1x256xf32, #tpu.memory_space<vmem>>, vector<1x1x256xf32>
    %209 = vector.shape_cast %208 : vector<1x1x256xf32> to vector<1x256xf32>
    %210 = vector.broadcast %209 : vector<1x256xf32> to vector<16x256xf32>
    %211 = arith.addf %207, %210 : vector<16x256xf32>
    %212 = arith.mulf %211, %211 : vector<16x256xf32>
    %213 = arith.mulf %211, %212 : vector<16x256xf32>
    %cst_81 = arith.constant 4.471500e-02 : f32
    %214 = vector.broadcast %cst_81 : f32 to vector<16x256xf32>
    %215 = arith.mulf %214, %213 : vector<16x256xf32>
    %216 = arith.addf %211, %215 : vector<16x256xf32>
    %cst_82 = arith.constant 0.797884583 : f32
    %217 = vector.broadcast %cst_82 : f32 to vector<16x256xf32>
    %218 = arith.mulf %217, %216 : vector<16x256xf32>
    %219 = math.tanh %218 : vector<16x256xf32>
    %cst_83 = arith.constant 1.000000e+00 : f32
    %220 = vector.broadcast %cst_83 : f32 to vector<16x256xf32>
    %221 = arith.addf %220, %219 : vector<16x256xf32>
    %cst_84 = arith.constant 5.000000e-01 : f32
    %222 = vector.broadcast %cst_84 : f32 to vector<16x256xf32>
    %223 = arith.mulf %222, %221 : vector<16x256xf32>
    %224 = arith.mulf %211, %223 : vector<16x256xf32>
    %225 = arith.truncf %224 : vector<16x256xf32> to vector<16x256xbf16>
    %c0_85 = arith.constant 0 : index
    %c0_86 = arith.constant 0 : index
    %c0_87 = arith.constant 0 : index
    %226 = vector.load %arg16[%c0_85, %c0_86, %c0_87] : memref<2x256x64xbf16, #tpu.memory_space<vmem>>, vector<1x256x64xbf16>
    %227 = vector.shape_cast %226 : vector<1x256x64xbf16> to vector<256x64xbf16>
    %cst_88 = arith.constant dense<0.000000e+00> : vector<16x64xf32>
    %228 = tpu.matmul %225, %227, %cst_88 {dimension_numbers = #tpu.dot_dimension_numbers<[1], [0], [0], [1], [0, 0, 1, 1], [], []>} : vector<16x256xbf16>, vector<256x64xbf16>, vector<16x64xf32> -> vector<16x64xf32>
    %229 = arith.addf %177, %228 : vector<16x64xf32>
    %c0_89 = arith.constant 0 : index
    %c0_90 = arith.constant 0 : index
    %c0_91 = arith.constant 0 : index
    %230 = vector.load %arg17[%c0_89, %c0_90, %c0_91] : memref<2x1x64xf32, #tpu.memory_space<vmem>>, vector<1x1x64xf32>
    %231 = vector.shape_cast %230 : vector<1x1x64xf32> to vector<1x64xf32>
    %232 = vector.broadcast %231 : vector<1x64xf32> to vector<16x64xf32>
    %233 = arith.addf %229, %232 : vector<16x64xf32>
    %c1 = arith.constant 1 : index
    %c0_92 = arith.constant 0 : index
    %c0_93 = arith.constant 0 : index
    %234 = vector.load %arg2[%c1, %c0_92, %c0_93] : memref<2x1x64xf32, #tpu.memory_space<vmem>>, vector<1x1x64xf32>
    %235 = vector.shape_cast %234 : vector<1x1x64xf32> to vector<1x64xf32>
    %c1_94 = arith.constant 1 : index
    %c0_95 = arith.constant 0 : index
    %c0_96 = arith.constant 0 : index
    %236 = vector.load %arg3[%c1_94, %c0_95, %c0_96] : memref<2x1x64xf32, #tpu.memory_space<vmem>>, vector<1x1x64xf32>
    %237 = vector.shape_cast %236 : vector<1x1x64xf32> to vector<1x64xf32>
    %cst_97 = arith.constant dense<0.000000e+00> : vector<16xf32>
    %238 = vector.multi_reduction <add>, %233, %cst_97 [1] : vector<16x64xf32> to vector<16xf32>
    %239 = vector.shape_cast %238 : vector<16xf32> to vector<16x1xf32>
    %cst_98 = arith.constant 6.400000e+01 : f32
    %240 = vector.broadcast %cst_98 : f32 to vector<16x1xf32>
    %241 = arith.divf %239, %240 : vector<16x1xf32>
    %242 = vector.broadcast %241 : vector<16x1xf32> to vector<16x64xf32>
    %243 = arith.subf %233, %242 : vector<16x64xf32>
    %244 = arith.mulf %243, %243 : vector<16x64xf32>
    %cst_99 = arith.constant dense<0.000000e+00> : vector<16xf32>
    %245 = vector.multi_reduction <add>, %244, %cst_99 [1] : vector<16x64xf32> to vector<16xf32>
    %246 = vector.shape_cast %245 : vector<16xf32> to vector<16x1xf32>
    %cst_100 = arith.constant 6.400000e+01 : f32
    %247 = vector.broadcast %cst_100 : f32 to vector<16x1xf32>
    %248 = arith.divf %246, %247 : vector<16x1xf32>
    %249 = vector.broadcast %241 : vector<16x1xf32> to vector<16x64xf32>
    %250 = arith.subf %233, %249 : vector<16x64xf32>
    %cst_101 = arith.constant 9.99999974E-6 : f32
    %251 = vector.broadcast %cst_101 : f32 to vector<16x1xf32>
    %252 = arith.addf %248, %251 : vector<16x1xf32>
    %253 = math.rsqrt %252 : vector<16x1xf32>
    %254 = vector.broadcast %253 : vector<16x1xf32> to vector<16x64xf32>
    %255 = arith.mulf %250, %254 : vector<16x64xf32>
    %256 = vector.broadcast %235 : vector<1x64xf32> to vector<16x64xf32>
    %257 = arith.mulf %255, %256 : vector<16x64xf32>
    %258 = vector.broadcast %237 : vector<1x64xf32> to vector<16x64xf32>
    %259 = arith.addf %257, %258 : vector<16x64xf32>
    %260 = arith.truncf %259 : vector<16x64xf32> to vector<16x64xbf16>
    %c1_102 = arith.constant 1 : index
    %c0_103 = arith.constant 0 : index
    %c0_104 = arith.constant 0 : index
    %261 = vector.load %arg4[%c1_102, %c0_103, %c0_104] : memref<2x64x64xbf16, #tpu.memory_space<vmem>>, vector<1x64x64xbf16>
    %262 = vector.shape_cast %261 : vector<1x64x64xbf16> to vector<64x64xbf16>
    %cst_105 = arith.constant dense<0.000000e+00> : vector<16x64xf32>
    %263 = tpu.matmul %260, %262, %cst_105 {dimension_numbers = #tpu.dot_dimension_numbers<[1], [0], [0], [1], [0, 0, 1, 1], [], []>} : vector<16x64xbf16>, vector<64x64xbf16>, vector<16x64xf32> -> vector<16x64xf32>
    %c1_106 = arith.constant 1 : index
    %c0_107 = arith.constant 0 : index
    %c0_108 = arith.constant 0 : index
    %264 = vector.load %arg7[%c1_106, %c0_107, %c0_108] : memref<2x1x64xf32, #tpu.memory_space<vmem>>, vector<1x1x64xf32>
    %265 = vector.shape_cast %264 : vector<1x1x64xf32> to vector<1x64xf32>
    %266 = vector.broadcast %265 : vector<1x64xf32> to vector<16x64xf32>
    %267 = arith.addf %263, %266 : vector<16x64xf32>
    %c1_109 = arith.constant 1 : index
    %c0_110 = arith.constant 0 : index
    %c0_111 = arith.constant 0 : index
    %268 = vector.load %arg5[%c1_109, %c0_110, %c0_111] : memref<2x64x64xbf16, #tpu.memory_space<vmem>>, vector<1x64x64xbf16>
    %269 = vector.shape_cast %268 : vector<1x64x64xbf16> to vector<64x64xbf16>
    %cst_112 = arith.constant dense<0.000000e+00> : vector<16x64xf32>
    %270 = tpu.matmul %260, %269, %cst_112 {dimension_numbers = #tpu.dot_dimension_numbers<[1], [0], [0], [1], [0, 0, 1, 1], [], []>} : vector<16x64xbf16>, vector<64x64xbf16>, vector<16x64xf32> -> vector<16x64xf32>
    %c1_113 = arith.constant 1 : index
    %c0_114 = arith.constant 0 : index
    %c0_115 = arith.constant 0 : index
    %271 = vector.load %arg8[%c1_113, %c0_114, %c0_115] : memref<2x1x64xf32, #tpu.memory_space<vmem>>, vector<1x1x64xf32>
    %272 = vector.shape_cast %271 : vector<1x1x64xf32> to vector<1x64xf32>
    %273 = vector.broadcast %272 : vector<1x64xf32> to vector<16x64xf32>
    %274 = arith.addf %270, %273 : vector<16x64xf32>
    %c1_116 = arith.constant 1 : index
    %c0_117 = arith.constant 0 : index
    %c0_118 = arith.constant 0 : index
    %275 = vector.load %arg6[%c1_116, %c0_117, %c0_118] : memref<2x64x64xbf16, #tpu.memory_space<vmem>>, vector<1x64x64xbf16>
    %276 = vector.shape_cast %275 : vector<1x64x64xbf16> to vector<64x64xbf16>
    %cst_119 = arith.constant dense<0.000000e+00> : vector<16x64xf32>
    %277 = tpu.matmul %260, %276, %cst_119 {dimension_numbers = #tpu.dot_dimension_numbers<[1], [0], [0], [1], [0, 0, 1, 1], [], []>} : vector<16x64xbf16>, vector<64x64xbf16>, vector<16x64xf32> -> vector<16x64xf32>
    %c1_120 = arith.constant 1 : index
    %c0_121 = arith.constant 0 : index
    %c0_122 = arith.constant 0 : index
    %278 = vector.load %arg9[%c1_120, %c0_121, %c0_122] : memref<2x1x64xf32, #tpu.memory_space<vmem>>, vector<1x1x64xf32>
    %279 = vector.shape_cast %278 : vector<1x1x64xf32> to vector<1x64xf32>
    %280 = vector.broadcast %279 : vector<1x64xf32> to vector<16x64xf32>
    %281 = arith.addf %277, %280 : vector<16x64xf32>
    %282 = vector.extract_strided_slice %267 {offsets = [0, 0], sizes = [16, 16], strides = [1, 1]} : vector<16x64xf32> to vector<16x16xf32>
    %283 = arith.truncf %282 : vector<16x16xf32> to vector<16x16xbf16>
    %284 = vector.shape_cast %283 : vector<16x16xbf16> to vector<1x16x16xbf16>
    %285 = vector.extract_strided_slice %274 {offsets = [0, 0], sizes = [16, 16], strides = [1, 1]} : vector<16x64xf32> to vector<16x16xf32>
    %286 = arith.truncf %285 : vector<16x16xf32> to vector<16x16xbf16>
    %287 = vector.shape_cast %286 : vector<16x16xbf16> to vector<1x16x16xbf16>
    %288 = vector.extract_strided_slice %281 {offsets = [0, 0], sizes = [16, 16], strides = [1, 1]} : vector<16x64xf32> to vector<16x16xf32>
    %289 = arith.truncf %288 : vector<16x16xf32> to vector<16x16xbf16>
    %290 = vector.shape_cast %289 : vector<16x16xbf16> to vector<1x16x16xbf16>
    "tpu.trace_start"() <{level = 10 : i32, message = "bqd,bkd->bqk"}> : () -> ()
    %cst_123 = arith.constant dense<0.000000e+00> : vector<1x16x16xf32>
    %291 = tpu.matmul %284, %287, %cst_123 {dimension_numbers = #tpu.dot_dimension_numbers<[2], [2], [1], [1], [0, 0, 0, 1, 1, 1], [0], [0]>} : vector<1x16x16xbf16>, vector<1x16x16xbf16>, vector<1x16x16xf32> -> vector<1x16x16xf32>
    "tpu.trace_stop"() : () -> ()
    %cst_124 = arith.constant 2.500000e-01 : f32
    %292 = vector.broadcast %cst_124 : f32 to vector<1x16x16xf32>
    %293 = arith.mulf %291, %292 : vector<1x16x16xf32>
    %cst_125 = arith.constant -1.000000e+30 : f32
    %294 = vector.shape_cast %2 : vector<1x1x16xi1> to vector<1x1x16xi1>
    %295 = vector.broadcast %294 : vector<1x1x16xi1> to vector<1x16x16xi1>
    %296 = vector.broadcast %cst_125 : f32 to vector<1x16x16xf32>
    %297 = arith.select %295, %293, %296 : vector<1x16x16xi1>, vector<1x16x16xf32>
    %cst_126 = arith.constant dense<0xFF800000> : vector<1x16xf32>
    %298 = vector.multi_reduction <maximumf>, %297, %cst_126 [2] : vector<1x16x16xf32> to vector<1x16xf32>
    %299 = vector.shape_cast %298 : vector<1x16xf32> to vector<1x16x1xf32>
    %300 = vector.broadcast %299 : vector<1x16x1xf32> to vector<1x16x16xf32>
    %301 = arith.subf %297, %300 : vector<1x16x16xf32>
    %302 = math.exp %301 : vector<1x16x16xf32>
    %cst_127 = arith.constant dense<0.000000e+00> : vector<1x16xf32>
    %303 = vector.multi_reduction <add>, %302, %cst_127 [2] : vector<1x16x16xf32> to vector<1x16xf32>
    %304 = vector.shape_cast %303 : vector<1x16xf32> to vector<1x16x1xf32>
    %305 = tpu.reciprocal %304 {approx = true} : vector<1x16x1xf32> -> vector<1x16x1xf32>
    %306 = vector.broadcast %305 : vector<1x16x1xf32> to vector<1x16x16xf32>
    %307 = arith.mulf %302, %306 : vector<1x16x16xf32>
    %308 = arith.truncf %307 : vector<1x16x16xf32> to vector<1x16x16xbf16>
    "tpu.trace_start"() <{level = 10 : i32, message = "bqk,bkd->bqd"}> : () -> ()
    %cst_128 = arith.constant dense<0.000000e+00> : vector<1x16x16xf32>
    %309 = tpu.matmul %308, %290, %cst_128 {dimension_numbers = #tpu.dot_dimension_numbers<[2], [1], [1], [2], [0, 0, 0, 1, 1, 2], [0], [0]>} : vector<1x16x16xbf16>, vector<1x16x16xbf16>, vector<1x16x16xf32> -> vector<1x16x16xf32>
    "tpu.trace_stop"() : () -> ()
    %310 = vector.shape_cast %309 : vector<1x16x16xf32> to vector<16x16xf32>
    %311 = vector.extract_strided_slice %267 {offsets = [0, 16], sizes = [16, 16], strides = [1, 1]} : vector<16x64xf32> to vector<16x16xf32>
    %312 = arith.truncf %311 : vector<16x16xf32> to vector<16x16xbf16>
    %313 = vector.shape_cast %312 : vector<16x16xbf16> to vector<1x16x16xbf16>
    %314 = vector.extract_strided_slice %274 {offsets = [0, 16], sizes = [16, 16], strides = [1, 1]} : vector<16x64xf32> to vector<16x16xf32>
    %315 = arith.truncf %314 : vector<16x16xf32> to vector<16x16xbf16>
    %316 = vector.shape_cast %315 : vector<16x16xbf16> to vector<1x16x16xbf16>
    %317 = vector.extract_strided_slice %281 {offsets = [0, 16], sizes = [16, 16], strides = [1, 1]} : vector<16x64xf32> to vector<16x16xf32>
    %318 = arith.truncf %317 : vector<16x16xf32> to vector<16x16xbf16>
    %319 = vector.shape_cast %318 : vector<16x16xbf16> to vector<1x16x16xbf16>
    "tpu.trace_start"() <{level = 10 : i32, message = "bqd,bkd->bqk"}> : () -> ()
    %cst_129 = arith.constant dense<0.000000e+00> : vector<1x16x16xf32>
    %320 = tpu.matmul %313, %316, %cst_129 {dimension_numbers = #tpu.dot_dimension_numbers<[2], [2], [1], [1], [0, 0, 0, 1, 1, 1], [0], [0]>} : vector<1x16x16xbf16>, vector<1x16x16xbf16>, vector<1x16x16xf32> -> vector<1x16x16xf32>
    "tpu.trace_stop"() : () -> ()
    %cst_130 = arith.constant 2.500000e-01 : f32
    %321 = vector.broadcast %cst_130 : f32 to vector<1x16x16xf32>
    %322 = arith.mulf %320, %321 : vector<1x16x16xf32>
    %cst_131 = arith.constant -1.000000e+30 : f32
    %323 = vector.shape_cast %2 : vector<1x1x16xi1> to vector<1x1x16xi1>
    %324 = vector.broadcast %323 : vector<1x1x16xi1> to vector<1x16x16xi1>
    %325 = vector.broadcast %cst_131 : f32 to vector<1x16x16xf32>
    %326 = arith.select %324, %322, %325 : vector<1x16x16xi1>, vector<1x16x16xf32>
    %cst_132 = arith.constant dense<0xFF800000> : vector<1x16xf32>
    %327 = vector.multi_reduction <maximumf>, %326, %cst_132 [2] : vector<1x16x16xf32> to vector<1x16xf32>
    %328 = vector.shape_cast %327 : vector<1x16xf32> to vector<1x16x1xf32>
    %329 = vector.broadcast %328 : vector<1x16x1xf32> to vector<1x16x16xf32>
    %330 = arith.subf %326, %329 : vector<1x16x16xf32>
    %331 = math.exp %330 : vector<1x16x16xf32>
    %cst_133 = arith.constant dense<0.000000e+00> : vector<1x16xf32>
    %332 = vector.multi_reduction <add>, %331, %cst_133 [2] : vector<1x16x16xf32> to vector<1x16xf32>
    %333 = vector.shape_cast %332 : vector<1x16xf32> to vector<1x16x1xf32>
    %334 = tpu.reciprocal %333 {approx = true} : vector<1x16x1xf32> -> vector<1x16x1xf32>
    %335 = vector.broadcast %334 : vector<1x16x1xf32> to vector<1x16x16xf32>
    %336 = arith.mulf %331, %335 : vector<1x16x16xf32>
    %337 = arith.truncf %336 : vector<1x16x16xf32> to vector<1x16x16xbf16>
    "tpu.trace_start"() <{level = 10 : i32, message = "bqk,bkd->bqd"}> : () -> ()
    %cst_134 = arith.constant dense<0.000000e+00> : vector<1x16x16xf32>
    %338 = tpu.matmul %337, %319, %cst_134 {dimension_numbers = #tpu.dot_dimension_numbers<[2], [1], [1], [2], [0, 0, 0, 1, 1, 2], [0], [0]>} : vector<1x16x16xbf16>, vector<1x16x16xbf16>, vector<1x16x16xf32> -> vector<1x16x16xf32>
    "tpu.trace_stop"() : () -> ()
    %339 = vector.shape_cast %338 : vector<1x16x16xf32> to vector<16x16xf32>
    %340 = vector.extract_strided_slice %267 {offsets = [0, 32], sizes = [16, 16], strides = [1, 1]} : vector<16x64xf32> to vector<16x16xf32>
    %341 = arith.truncf %340 : vector<16x16xf32> to vector<16x16xbf16>
    %342 = vector.shape_cast %341 : vector<16x16xbf16> to vector<1x16x16xbf16>
    %343 = vector.extract_strided_slice %274 {offsets = [0, 32], sizes = [16, 16], strides = [1, 1]} : vector<16x64xf32> to vector<16x16xf32>
    %344 = arith.truncf %343 : vector<16x16xf32> to vector<16x16xbf16>
    %345 = vector.shape_cast %344 : vector<16x16xbf16> to vector<1x16x16xbf16>
    %346 = vector.extract_strided_slice %281 {offsets = [0, 32], sizes = [16, 16], strides = [1, 1]} : vector<16x64xf32> to vector<16x16xf32>
    %347 = arith.truncf %346 : vector<16x16xf32> to vector<16x16xbf16>
    %348 = vector.shape_cast %347 : vector<16x16xbf16> to vector<1x16x16xbf16>
    "tpu.trace_start"() <{level = 10 : i32, message = "bqd,bkd->bqk"}> : () -> ()
    %cst_135 = arith.constant dense<0.000000e+00> : vector<1x16x16xf32>
    %349 = tpu.matmul %342, %345, %cst_135 {dimension_numbers = #tpu.dot_dimension_numbers<[2], [2], [1], [1], [0, 0, 0, 1, 1, 1], [0], [0]>} : vector<1x16x16xbf16>, vector<1x16x16xbf16>, vector<1x16x16xf32> -> vector<1x16x16xf32>
    "tpu.trace_stop"() : () -> ()
    %cst_136 = arith.constant 2.500000e-01 : f32
    %350 = vector.broadcast %cst_136 : f32 to vector<1x16x16xf32>
    %351 = arith.mulf %349, %350 : vector<1x16x16xf32>
    %cst_137 = arith.constant -1.000000e+30 : f32
    %352 = vector.shape_cast %2 : vector<1x1x16xi1> to vector<1x1x16xi1>
    %353 = vector.broadcast %352 : vector<1x1x16xi1> to vector<1x16x16xi1>
    %354 = vector.broadcast %cst_137 : f32 to vector<1x16x16xf32>
    %355 = arith.select %353, %351, %354 : vector<1x16x16xi1>, vector<1x16x16xf32>
    %cst_138 = arith.constant dense<0xFF800000> : vector<1x16xf32>
    %356 = vector.multi_reduction <maximumf>, %355, %cst_138 [2] : vector<1x16x16xf32> to vector<1x16xf32>
    %357 = vector.shape_cast %356 : vector<1x16xf32> to vector<1x16x1xf32>
    %358 = vector.broadcast %357 : vector<1x16x1xf32> to vector<1x16x16xf32>
    %359 = arith.subf %355, %358 : vector<1x16x16xf32>
    %360 = math.exp %359 : vector<1x16x16xf32>
    %cst_139 = arith.constant dense<0.000000e+00> : vector<1x16xf32>
    %361 = vector.multi_reduction <add>, %360, %cst_139 [2] : vector<1x16x16xf32> to vector<1x16xf32>
    %362 = vector.shape_cast %361 : vector<1x16xf32> to vector<1x16x1xf32>
    %363 = tpu.reciprocal %362 {approx = true} : vector<1x16x1xf32> -> vector<1x16x1xf32>
    %364 = vector.broadcast %363 : vector<1x16x1xf32> to vector<1x16x16xf32>
    %365 = arith.mulf %360, %364 : vector<1x16x16xf32>
    %366 = arith.truncf %365 : vector<1x16x16xf32> to vector<1x16x16xbf16>
    "tpu.trace_start"() <{level = 10 : i32, message = "bqk,bkd->bqd"}> : () -> ()
    %cst_140 = arith.constant dense<0.000000e+00> : vector<1x16x16xf32>
    %367 = tpu.matmul %366, %348, %cst_140 {dimension_numbers = #tpu.dot_dimension_numbers<[2], [1], [1], [2], [0, 0, 0, 1, 1, 2], [0], [0]>} : vector<1x16x16xbf16>, vector<1x16x16xbf16>, vector<1x16x16xf32> -> vector<1x16x16xf32>
    "tpu.trace_stop"() : () -> ()
    %368 = vector.shape_cast %367 : vector<1x16x16xf32> to vector<16x16xf32>
    %369 = vector.extract_strided_slice %267 {offsets = [0, 48], sizes = [16, 16], strides = [1, 1]} : vector<16x64xf32> to vector<16x16xf32>
    %370 = arith.truncf %369 : vector<16x16xf32> to vector<16x16xbf16>
    %371 = vector.shape_cast %370 : vector<16x16xbf16> to vector<1x16x16xbf16>
    %372 = vector.extract_strided_slice %274 {offsets = [0, 48], sizes = [16, 16], strides = [1, 1]} : vector<16x64xf32> to vector<16x16xf32>
    %373 = arith.truncf %372 : vector<16x16xf32> to vector<16x16xbf16>
    %374 = vector.shape_cast %373 : vector<16x16xbf16> to vector<1x16x16xbf16>
    %375 = vector.extract_strided_slice %281 {offsets = [0, 48], sizes = [16, 16], strides = [1, 1]} : vector<16x64xf32> to vector<16x16xf32>
    %376 = arith.truncf %375 : vector<16x16xf32> to vector<16x16xbf16>
    %377 = vector.shape_cast %376 : vector<16x16xbf16> to vector<1x16x16xbf16>
    "tpu.trace_start"() <{level = 10 : i32, message = "bqd,bkd->bqk"}> : () -> ()
    %cst_141 = arith.constant dense<0.000000e+00> : vector<1x16x16xf32>
    %378 = tpu.matmul %371, %374, %cst_141 {dimension_numbers = #tpu.dot_dimension_numbers<[2], [2], [1], [1], [0, 0, 0, 1, 1, 1], [0], [0]>} : vector<1x16x16xbf16>, vector<1x16x16xbf16>, vector<1x16x16xf32> -> vector<1x16x16xf32>
    "tpu.trace_stop"() : () -> ()
    %cst_142 = arith.constant 2.500000e-01 : f32
    %379 = vector.broadcast %cst_142 : f32 to vector<1x16x16xf32>
    %380 = arith.mulf %378, %379 : vector<1x16x16xf32>
    %cst_143 = arith.constant -1.000000e+30 : f32
    %381 = vector.shape_cast %2 : vector<1x1x16xi1> to vector<1x1x16xi1>
    %382 = vector.broadcast %381 : vector<1x1x16xi1> to vector<1x16x16xi1>
    %383 = vector.broadcast %cst_143 : f32 to vector<1x16x16xf32>
    %384 = arith.select %382, %380, %383 : vector<1x16x16xi1>, vector<1x16x16xf32>
    %cst_144 = arith.constant dense<0xFF800000> : vector<1x16xf32>
    %385 = vector.multi_reduction <maximumf>, %384, %cst_144 [2] : vector<1x16x16xf32> to vector<1x16xf32>
    %386 = vector.shape_cast %385 : vector<1x16xf32> to vector<1x16x1xf32>
    %387 = vector.broadcast %386 : vector<1x16x1xf32> to vector<1x16x16xf32>
    %388 = arith.subf %384, %387 : vector<1x16x16xf32>
    %389 = math.exp %388 : vector<1x16x16xf32>
    %cst_145 = arith.constant dense<0.000000e+00> : vector<1x16xf32>
    %390 = vector.multi_reduction <add>, %389, %cst_145 [2] : vector<1x16x16xf32> to vector<1x16xf32>
    %391 = vector.shape_cast %390 : vector<1x16xf32> to vector<1x16x1xf32>
    %392 = tpu.reciprocal %391 {approx = true} : vector<1x16x1xf32> -> vector<1x16x1xf32>
    %393 = vector.broadcast %392 : vector<1x16x1xf32> to vector<1x16x16xf32>
    %394 = arith.mulf %389, %393 : vector<1x16x16xf32>
    %395 = arith.truncf %394 : vector<1x16x16xf32> to vector<1x16x16xbf16>
    "tpu.trace_start"() <{level = 10 : i32, message = "bqk,bkd->bqd"}> : () -> ()
    %cst_146 = arith.constant dense<0.000000e+00> : vector<1x16x16xf32>
    %396 = tpu.matmul %395, %377, %cst_146 {dimension_numbers = #tpu.dot_dimension_numbers<[2], [1], [1], [2], [0, 0, 0, 1, 1, 2], [0], [0]>} : vector<1x16x16xbf16>, vector<1x16x16xbf16>, vector<1x16x16xf32> -> vector<1x16x16xf32>
    "tpu.trace_stop"() : () -> ()
    %397 = vector.shape_cast %396 : vector<1x16x16xf32> to vector<16x16xf32>
    %398 = tpu.concatenate %310, %339, %368, %397 in 1 : vector<16x16xf32>, vector<16x16xf32>, vector<16x16xf32>, vector<16x16xf32> -> vector<16x64xf32>
    %399 = arith.truncf %398 : vector<16x64xf32> to vector<16x64xbf16>
    %c1_147 = arith.constant 1 : index
    %c0_148 = arith.constant 0 : index
    %c0_149 = arith.constant 0 : index
    %400 = vector.load %arg10[%c1_147, %c0_148, %c0_149] : memref<2x64x64xbf16, #tpu.memory_space<vmem>>, vector<1x64x64xbf16>
    %401 = vector.shape_cast %400 : vector<1x64x64xbf16> to vector<64x64xbf16>
    %cst_150 = arith.constant dense<0.000000e+00> : vector<16x64xf32>
    %402 = tpu.matmul %399, %401, %cst_150 {dimension_numbers = #tpu.dot_dimension_numbers<[1], [0], [0], [1], [0, 0, 1, 1], [], []>} : vector<16x64xbf16>, vector<64x64xbf16>, vector<16x64xf32> -> vector<16x64xf32>
    %403 = arith.addf %233, %402 : vector<16x64xf32>
    %c1_151 = arith.constant 1 : index
    %c0_152 = arith.constant 0 : index
    %c0_153 = arith.constant 0 : index
    %404 = vector.load %arg11[%c1_151, %c0_152, %c0_153] : memref<2x1x64xf32, #tpu.memory_space<vmem>>, vector<1x1x64xf32>
    %405 = vector.shape_cast %404 : vector<1x1x64xf32> to vector<1x64xf32>
    %406 = vector.broadcast %405 : vector<1x64xf32> to vector<16x64xf32>
    %407 = arith.addf %403, %406 : vector<16x64xf32>
    %c1_154 = arith.constant 1 : index
    %c0_155 = arith.constant 0 : index
    %c0_156 = arith.constant 0 : index
    %408 = vector.load %arg12[%c1_154, %c0_155, %c0_156] : memref<2x1x64xf32, #tpu.memory_space<vmem>>, vector<1x1x64xf32>
    %409 = vector.shape_cast %408 : vector<1x1x64xf32> to vector<1x64xf32>
    %c1_157 = arith.constant 1 : index
    %c0_158 = arith.constant 0 : index
    %c0_159 = arith.constant 0 : index
    %410 = vector.load %arg13[%c1_157, %c0_158, %c0_159] : memref<2x1x64xf32, #tpu.memory_space<vmem>>, vector<1x1x64xf32>
    %411 = vector.shape_cast %410 : vector<1x1x64xf32> to vector<1x64xf32>
    %cst_160 = arith.constant dense<0.000000e+00> : vector<16xf32>
    %412 = vector.multi_reduction <add>, %407, %cst_160 [1] : vector<16x64xf32> to vector<16xf32>
    %413 = vector.shape_cast %412 : vector<16xf32> to vector<16x1xf32>
    %cst_161 = arith.constant 6.400000e+01 : f32
    %414 = vector.broadcast %cst_161 : f32 to vector<16x1xf32>
    %415 = arith.divf %413, %414 : vector<16x1xf32>
    %416 = vector.broadcast %415 : vector<16x1xf32> to vector<16x64xf32>
    %417 = arith.subf %407, %416 : vector<16x64xf32>
    %418 = arith.mulf %417, %417 : vector<16x64xf32>
    %cst_162 = arith.constant dense<0.000000e+00> : vector<16xf32>
    %419 = vector.multi_reduction <add>, %418, %cst_162 [1] : vector<16x64xf32> to vector<16xf32>
    %420 = vector.shape_cast %419 : vector<16xf32> to vector<16x1xf32>
    %cst_163 = arith.constant 6.400000e+01 : f32
    %421 = vector.broadcast %cst_163 : f32 to vector<16x1xf32>
    %422 = arith.divf %420, %421 : vector<16x1xf32>
    %423 = vector.broadcast %415 : vector<16x1xf32> to vector<16x64xf32>
    %424 = arith.subf %407, %423 : vector<16x64xf32>
    %cst_164 = arith.constant 9.99999974E-6 : f32
    %425 = vector.broadcast %cst_164 : f32 to vector<16x1xf32>
    %426 = arith.addf %422, %425 : vector<16x1xf32>
    %427 = math.rsqrt %426 : vector<16x1xf32>
    %428 = vector.broadcast %427 : vector<16x1xf32> to vector<16x64xf32>
    %429 = arith.mulf %424, %428 : vector<16x64xf32>
    %430 = vector.broadcast %409 : vector<1x64xf32> to vector<16x64xf32>
    %431 = arith.mulf %429, %430 : vector<16x64xf32>
    %432 = vector.broadcast %411 : vector<1x64xf32> to vector<16x64xf32>
    %433 = arith.addf %431, %432 : vector<16x64xf32>
    %434 = arith.truncf %433 : vector<16x64xf32> to vector<16x64xbf16>
    %c1_165 = arith.constant 1 : index
    %c0_166 = arith.constant 0 : index
    %c0_167 = arith.constant 0 : index
    %435 = vector.load %arg14[%c1_165, %c0_166, %c0_167] : memref<2x64x256xbf16, #tpu.memory_space<vmem>>, vector<1x64x256xbf16>
    %436 = vector.shape_cast %435 : vector<1x64x256xbf16> to vector<64x256xbf16>
    %cst_168 = arith.constant dense<0.000000e+00> : vector<16x256xf32>
    %437 = tpu.matmul %434, %436, %cst_168 {dimension_numbers = #tpu.dot_dimension_numbers<[1], [0], [0], [1], [0, 0, 1, 1], [], []>} : vector<16x64xbf16>, vector<64x256xbf16>, vector<16x256xf32> -> vector<16x256xf32>
    %c1_169 = arith.constant 1 : index
    %c0_170 = arith.constant 0 : index
    %c0_171 = arith.constant 0 : index
    %438 = vector.load %arg15[%c1_169, %c0_170, %c0_171] : memref<2x1x256xf32, #tpu.memory_space<vmem>>, vector<1x1x256xf32>
    %439 = vector.shape_cast %438 : vector<1x1x256xf32> to vector<1x256xf32>
    %440 = vector.broadcast %439 : vector<1x256xf32> to vector<16x256xf32>
    %441 = arith.addf %437, %440 : vector<16x256xf32>
    %442 = arith.mulf %441, %441 : vector<16x256xf32>
    %443 = arith.mulf %441, %442 : vector<16x256xf32>
    %cst_172 = arith.constant 4.471500e-02 : f32
    %444 = vector.broadcast %cst_172 : f32 to vector<16x256xf32>
    %445 = arith.mulf %444, %443 : vector<16x256xf32>
    %446 = arith.addf %441, %445 : vector<16x256xf32>
    %cst_173 = arith.constant 0.797884583 : f32
    %447 = vector.broadcast %cst_173 : f32 to vector<16x256xf32>
    %448 = arith.mulf %447, %446 : vector<16x256xf32>
    %449 = math.tanh %448 : vector<16x256xf32>
    %cst_174 = arith.constant 1.000000e+00 : f32
    %450 = vector.broadcast %cst_174 : f32 to vector<16x256xf32>
    %451 = arith.addf %450, %449 : vector<16x256xf32>
    %cst_175 = arith.constant 5.000000e-01 : f32
    %452 = vector.broadcast %cst_175 : f32 to vector<16x256xf32>
    %453 = arith.mulf %452, %451 : vector<16x256xf32>
    %454 = arith.mulf %441, %453 : vector<16x256xf32>
    %455 = arith.truncf %454 : vector<16x256xf32> to vector<16x256xbf16>
    %c1_176 = arith.constant 1 : index
    %c0_177 = arith.constant 0 : index
    %c0_178 = arith.constant 0 : index
    %456 = vector.load %arg16[%c1_176, %c0_177, %c0_178] : memref<2x256x64xbf16, #tpu.memory_space<vmem>>, vector<1x256x64xbf16>
    %457 = vector.shape_cast %456 : vector<1x256x64xbf16> to vector<256x64xbf16>
    %cst_179 = arith.constant dense<0.000000e+00> : vector<16x64xf32>
    %458 = tpu.matmul %455, %457, %cst_179 {dimension_numbers = #tpu.dot_dimension_numbers<[1], [0], [0], [1], [0, 0, 1, 1], [], []>} : vector<16x256xbf16>, vector<256x64xbf16>, vector<16x64xf32> -> vector<16x64xf32>
    %459 = arith.addf %407, %458 : vector<16x64xf32>
    %c1_180 = arith.constant 1 : index
    %c0_181 = arith.constant 0 : index
    %c0_182 = arith.constant 0 : index
    %460 = vector.load %arg17[%c1_180, %c0_181, %c0_182] : memref<2x1x64xf32, #tpu.memory_space<vmem>>, vector<1x1x64xf32>
    %461 = vector.shape_cast %460 : vector<1x1x64xf32> to vector<1x64xf32>
    %462 = vector.broadcast %461 : vector<1x64xf32> to vector<16x64xf32>
    %463 = arith.addf %459, %462 : vector<16x64xf32>
    %c0_183 = arith.constant 0 : index
    %c0_184 = arith.constant 0 : index
    %464 = vector.load %arg20[%c0_183, %c0_184] : memref<16x64xf32, #tpu.memory_space<vmem>>, vector<16x64xf32>
    tpu.vector_store %arg20[%c0_183, %c0_184], %463 {strides = array<i32>} : memref<16x64xf32, #tpu.memory_space<vmem>>, vector<16x64xf32>,
    %465 = arith.truncf %463 : vector<16x64xf32> to vector<16x64xbf16>
    %c0_185 = arith.constant 0 : index
    %c0_186 = arith.constant 0 : index
    %466 = vector.load %arg18[%c0_185, %c0_186] : memref<64x128xbf16, #tpu.memory_space<vmem>>, vector<64x128xbf16>
    %cst_187 = arith.constant dense<0.000000e+00> : vector<16x128xf32>
    %467 = tpu.matmul %465, %466, %cst_187 {dimension_numbers = #tpu.dot_dimension_numbers<[1], [0], [0], [1], [0, 0, 1, 1], [], []>} : vector<16x64xbf16>, vector<64x128xbf16>, vector<16x128xf32> -> vector<16x128xf32>
    %c0_188 = arith.constant 0 : index
    %c0_189 = arith.constant 0 : index
    %468 = vector.load %arg19[%c0_188, %c0_189] : memref<1x128xf32, #tpu.memory_space<vmem>>, vector<1x128xf32>
    %469 = vector.broadcast %468 : vector<1x128xf32> to vector<16x128xf32>
    %470 = arith.addf %467, %469 : vector<16x128xf32>
    %c0_190 = arith.constant 0 : index
    %c0_191 = arith.constant 0 : index
    %471 = vector.load %arg21[%c0_190, %c0_191] : memref<16x128xf32, #tpu.memory_space<vmem>>, vector<16x128xf32>
    tpu.vector_store %arg21[%c0_190, %c0_191], %470 {strides = array<i32>} : memref<16x128xf32, #tpu.memory_space<vmem>>, vector<16x128xf32>,
    return
  }
  func.func @transform_0(%arg0: i32) -> (i32, i32) {
    %c0_i32 = arith.constant 0 : i32
    %c0_i32_0 = arith.constant 0 : i32
    return %arg0, %c0_i32 : i32, i32
  }
  func.func @transform_1(%arg0: i32) -> (i32, i32, i32) {
    %c0_i32 = arith.constant 0 : i32
    %c0_i32_0 = arith.constant 0 : i32
    %c0_i32_1 = arith.constant 0 : i32
    %c0_i32_2 = arith.constant 0 : i32
    return %c0_i32, %c0_i32_0, %c0_i32_1 : i32, i32, i32
  }
  func.func @transform_2(%arg0: i32) -> (i32, i32, i32) {
    %c0_i32 = arith.constant 0 : i32
    %c0_i32_0 = arith.constant 0 : i32
    %c0_i32_1 = arith.constant 0 : i32
    %c0_i32_2 = arith.constant 0 : i32
    return %c0_i32, %c0_i32_0, %c0_i32_1 : i32, i32, i32
  }
  func.func @transform_3(%arg0: i32) -> (i32, i32, i32) {
    %c0_i32 = arith.constant 0 : i32
    %c0_i32_0 = arith.constant 0 : i32
    %c0_i32_1 = arith.constant 0 : i32
    %c0_i32_2 = arith.constant 0 : i32
    return %c0_i32, %c0_i32_0, %c0_i32_1 : i32, i32, i32
  }
  func.func @transform_4(%arg0: i32) -> (i32, i32, i32) {
    %c0_i32 = arith.constant 0 : i32
    %c0_i32_0 = arith.constant 0 : i32
    %c0_i32_1 = arith.constant 0 : i32
    %c0_i32_2 = arith.constant 0 : i32
    return %c0_i32, %c0_i32_0, %c0_i32_1 : i32, i32, i32
  }
  func.func @transform_5(%arg0: i32) -> (i32, i32, i32) {
    %c0_i32 = arith.constant 0 : i32
    %c0_i32_0 = arith.constant 0 : i32
    %c0_i32_1 = arith.constant 0 : i32
    %c0_i32_2 = arith.constant 0 : i32
    return %c0_i32, %c0_i32_0, %c0_i32_1 : i32, i32, i32
  }
  func.func @transform_6(%arg0: i32) -> (i32, i32, i32) {
    %c0_i32 = arith.constant 0 : i32
    %c0_i32_0 = arith.constant 0 : i32
    %c0_i32_1 = arith.constant 0 : i32
    %c0_i32_2 = arith.constant 0 : i32
    return %c0_i32, %c0_i32_0, %c0_i32_1 : i32, i32, i32
  }
  func.func @transform_7(%arg0: i32) -> (i32, i32, i32) {
    %c0_i32 = arith.constant 0 : i32
    %c0_i32_0 = arith.constant 0 : i32
    %c0_i32_1 = arith.constant 0 : i32
    %c0_i32_2 = arith.constant 0 : i32
    return %c0_i32, %c0_i32_0, %c0_i32_1 : i32, i32, i32
  }
  func.func @transform_8(%arg0: i32) -> (i32, i32, i32) {
    %c0_i32 = arith.constant 0 : i32
    %c0_i32_0 = arith.constant 0 : i32
    %c0_i32_1 = arith.constant 0 : i32
    %c0_i32_2 = arith.constant 0 : i32
    return %c0_i32, %c0_i32_0, %c0_i32_1 : i32, i32, i32
  }
  func.func @transform_9(%arg0: i32) -> (i32, i32, i32) {
    %c0_i32 = arith.constant 0 : i32
    %c0_i32_0 = arith.constant 0 : i32
    %c0_i32_1 = arith.constant 0 : i32
    %c0_i32_2 = arith.constant 0 : i32
    return %c0_i32, %c0_i32_0, %c0_i32_1 : i32, i32, i32
  }
  func.func @transform_10(%arg0: i32) -> (i32, i32, i32) {
    %c0_i32 = arith.constant 0 : i32
    %c0_i32_0 = arith.constant 0 : i32
    %c0_i32_1 = arith.constant 0 : i32
    %c0_i32_2 = arith.constant 0 : i32
    return %c0_i32, %c0_i32_0, %c0_i32_1 : i32, i32, i32
  }
  func.func @transform_11(%arg0: i32) -> (i32, i32, i32) {
    %c0_i32 = arith.constant 0 : i32
    %c0_i32_0 = arith.constant 0 : i32
    %c0_i32_1 = arith.constant 0 : i32
    %c0_i32_2 = arith.constant 0 : i32
    return %c0_i32, %c0_i32_0, %c0_i32_1 : i32, i32, i32
  }
  func.func @transform_12(%arg0: i32) -> (i32, i32, i32) {
    %c0_i32 = arith.constant 0 : i32
    %c0_i32_0 = arith.constant 0 : i32
    %c0_i32_1 = arith.constant 0 : i32
    %c0_i32_2 = arith.constant 0 : i32
    return %c0_i32, %c0_i32_0, %c0_i32_1 : i32, i32, i32
  }
  func.func @transform_13(%arg0: i32) -> (i32, i32, i32) {
    %c0_i32 = arith.constant 0 : i32
    %c0_i32_0 = arith.constant 0 : i32
    %c0_i32_1 = arith.constant 0 : i32
    %c0_i32_2 = arith.constant 0 : i32
    return %c0_i32, %c0_i32_0, %c0_i32_1 : i32, i32, i32
  }
  func.func @transform_14(%arg0: i32) -> (i32, i32, i32) {
    %c0_i32 = arith.constant 0 : i32
    %c0_i32_0 = arith.constant 0 : i32
    %c0_i32_1 = arith.constant 0 : i32
    %c0_i32_2 = arith.constant 0 : i32
    return %c0_i32, %c0_i32_0, %c0_i32_1 : i32, i32, i32
  }
  func.func @transform_15(%arg0: i32) -> (i32, i32, i32) {
    %c0_i32 = arith.constant 0 : i32
    %c0_i32_0 = arith.constant 0 : i32
    %c0_i32_1 = arith.constant 0 : i32
    %c0_i32_2 = arith.constant 0 : i32
    return %c0_i32, %c0_i32_0, %c0_i32_1 : i32, i32, i32
  }
  func.func @transform_16(%arg0: i32) -> (i32, i32, i32) {
    %c0_i32 = arith.constant 0 : i32
    %c0_i32_0 = arith.constant 0 : i32
    %c0_i32_1 = arith.constant 0 : i32
    %c0_i32_2 = arith.constant 0 : i32
    return %c0_i32, %c0_i32_0, %c0_i32_1 : i32, i32, i32
  }
  func.func @transform_17(%arg0: i32) -> (i32, i32) {
    %c0_i32 = arith.constant 0 : i32
    %c0_i32_0 = arith.constant 0 : i32
    %c0_i32_1 = arith.constant 0 : i32
    return %c0_i32, %c0_i32_0 : i32, i32
  }
  func.func @transform_18(%arg0: i32) -> (i32, i32) {
    %c0_i32 = arith.constant 0 : i32
    %c0_i32_0 = arith.constant 0 : i32
    %c0_i32_1 = arith.constant 0 : i32
    return %c0_i32, %c0_i32_0 : i32, i32
  }
  func.func @transform_19(%arg0: i32) -> (i32, i32) {
    %c0_i32 = arith.constant 0 : i32
    %c0_i32_0 = arith.constant 0 : i32
    return %arg0, %c0_i32 : i32, i32
  }
  func.func @transform_20(%arg0: i32) -> (i32, i32) {
    %c0_i32 = arith.constant 0 : i32
    %c0_i32_0 = arith.constant 0 : i32
    return %arg0, %c0_i32 : i32, i32
  }
}

</mosaic_0001>

<llo_original>
// kernel: tpu_custom_call.1
$region0: #{tpu_custom_call.1}
  #allocation0 [shape = 'u32[]', space=smem, size = 0x4, offset = 0x4, fixed_abs, tag = 'smem constant byte address 0x4 - core index']
  #allocation1 [shape = 'u32[144,128]{1,0:T(1,128)}', space=vmem, size = 0x12000, scoped, tag = 'internal scratch']
  %s0 = inlined_call_operand.hbm [shape: f32[32,64], index: 0, kind: input, shape index: {}]
  %s1 = inlined_call_operand.hbm [shape: f32[2,1,64], index: 1, kind: input, shape index: {}]
  %s2 = inlined_call_operand.hbm [shape: f32[2,1,64], index: 2, kind: input, shape index: {}]
  %s3 = inlined_call_operand.vmem [shape: bf16[2,64,64], index: 3, kind: input, shape index: {}]
  %s4 = inlined_call_operand.vmem [shape: bf16[2,64,64], index: 4, kind: input, shape index: {}]
  %s5 = inlined_call_operand.vmem [shape: bf16[2,64,64], index: 5, kind: input, shape index: {}]
  %s6 = inlined_call_operand.vmem [shape: f32[2,1,64], index: 6, kind: input, shape index: {}]
  %s7 = inlined_call_operand.vmem [shape: f32[2,1,64], index: 7, kind: input, shape index: {}]
  %s8 = inlined_call_operand.vmem [shape: f32[2,1,64], index: 8, kind: input, shape index: {}]
  %s9 = inlined_call_operand.vmem [shape: bf16[2,64,64], index: 9, kind: input, shape index: {}]
  %s10 = inlined_call_operand.vmem [shape: f32[2,1,64], index: 10, kind: input, shape index: {}]
  %s11 = inlined_call_operand.vmem [shape: f32[2,1,64], index: 11, kind: input, shape index: {}]
  %s12 = inlined_call_operand.vmem [shape: f32[2,1,64], index: 12, kind: input, shape index: {}]
  %s13 = inlined_call_operand.vmem [shape: bf16[2,64,256], index: 13, kind: input, shape index: {}]
  %s14 = inlined_call_operand.vmem [shape: f32[2,1,256], index: 14, kind: input, shape index: {}]
  %s15 = inlined_call_operand.vmem [shape: bf16[2,256,64], index: 15, kind: input, shape index: {}]
  %s16 = inlined_call_operand.vmem [shape: f32[2,1,64], index: 16, kind: input, shape index: {}]
  %s17 = inlined_call_operand.hbm [shape: bf16[64,128], index: 17, kind: input, shape index: {}]
  %s18 = inlined_call_operand.vmem [shape: f32[1,128], index: 18, kind: input, shape index: {}]
  %s19 = inlined_call_operand.hbm [shape: f32[32,64], index: 19, kind: output, shape index: {0}]
  %s20 = inlined_call_operand.hbm [shape: f32[32,128], index: 20, kind: output, shape index: {1}]
  %21 = xla_tuple %s19, %s20
  %s22 = sld [smem:[#allocation0]]
  $region133: #{tpu_custom_call.1} parent=0
    _
  %s24 = ssub.s32 1, %s22
  %s25 = scalar_select 0, %s24, %s22
  $region1: #{tpu_custom_call.1} parent=0
    #allocation2 [shape = 'u8[16384]{0}', space=vmem, size = 0x4000, scoped, tag = 'input window, operand 0']
    #allocation3 [shape = 's32[2]{0}', space=sflag, size = 0x8, scoped, tag = 'scoped memory for tpu_custom_call.1']
    #allocation4 [shape = 's32[2]{0}', space=sflag, size = 0x8, scoped, tag = 'scoped memory for tpu_custom_call.1']
    #allocation5 [shape = 'u8[1024]{0}', space=vmem, size = 0x400, scoped, tag = 'input window, operand 1, single buffered']
    #allocation6 [shape = 's32[1]{0}', space=sflag, size = 0x4, scoped, tag = 'scoped memory for tpu_custom_call.1']
    #allocation7 [shape = 'u8[1024]{0}', space=vmem, size = 0x400, scoped, tag = 'input window, operand 2, single buffered']
    #allocation8 [shape = 'u8[16384]{0}', space=vmem, size = 0x4000, scoped, tag = 'input window, operand 17, single buffered']
    #allocation9 [shape = 's32[1]{0}', space=sflag, size = 0x4, scoped, tag = 'scoped memory for tpu_custom_call.1']
    #allocation10 [shape = 'u8[16384]{0}', space=vmem, size = 0x4000, scoped, tag = 'output window, operand 0']
    #allocation11 [shape = 'u8[16384]{0}', space=vmem, size = 0x4000, scoped, tag = 'output window, operand 1']
    #allocation12 [shape = 's32[2]{0}', space=sflag, size = 0x8, scoped, tag = 'scoped memory for tpu_custom_call.1']
    %26 = vsyncpa [#allocation3], 0
    %s27 = scalar_lea.sflag [#allocation3], 1
    %28 = vsyncpa %s27, 0
    %29 = vsyncpa [#allocation6], 0
    %30 = vsyncpa [#allocation9], 0
    %31 = vsyncpa [#allocation4], 0
    %s32 = scalar_lea.sflag [#allocation4], 1
    %33 = vsyncpa %s32, 0
    %34 = vsyncpa [#allocation12], 0
    %s35 = scalar_lea.sflag [#allocation12], 1
    %36 = vsyncpa %s35, 0
    loop: start=0, step=1, limit=4
    $region2: #{tpu_custom_call.1} parent=1 // loop_pre_header
      _
    $region3: #{tpu_custom_call.1} parent=1 // loop_header
      %s38 = sphi 0, %s42
      %p39 = scmp.ge.s32.totalorder %s38, 4
      %s48 = sphi 0, %s50
      %s51 = sphi 0, %s48
      %s52 = sphi 0, %s51
      %s68 = sphi 0, %s52
      %s72 = sphi 0, %s72
      %s74 = sphi 0, %s72
      %s75 = sphi 0, %s74
      %s89 = sphi 0, %s75
      %s93 = sphi 0, %s93
      %s95 = sphi 0, %s93
      %s96 = sphi 0, %s95
      %s110 = sphi 0, %s96
      %s114 = sphi 0, %s114
      %s116 = sphi 0, %s114
      %s117 = sphi 0, %s116
      %s131 = sphi 0, %s117
      %s135 = sphi 0, %s135
      %s137 = sphi 0, %s135
      %s138 = sphi 0, %s137
      %s152 = sphi 0, %s138
      %s156 = sphi 0, %s156
      %s158 = sphi 0, %s156
      %s159 = sphi 0, %s158
      %s173 = sphi 0, %s159
      %s177 = sphi 0, %s177
      %s179 = sphi 0, %s177
      %s180 = sphi 0, %s179
      %s194 = sphi 0, %s180
      %s198 = sphi 0, %s198
      %s200 = sphi 0, %s198
      %s201 = sphi 0, %s200
      %s215 = sphi 0, %s201
      %s219 = sphi 0, %s219
      %s221 = sphi 0, %s219
      %s222 = sphi 0, %s221
      %s236 = sphi 0, %s222
      %s240 = sphi 0, %s240
      %s242 = sphi 0, %s240
      %s243 = sphi 0, %s242
      %s257 = sphi 0, %s243
      %s261 = sphi 0, %s261
      %s263 = sphi 0, %s261
      %s264 = sphi 0, %s263
      %s278 = sphi 0, %s264
      %s282 = sphi 0, %s282
      %s284 = sphi 0, %s282
      %s285 = sphi 0, %s284
      %s299 = sphi 0, %s285
      %s303 = sphi 0, %s303
      %s305 = sphi 0, %s303
      %s306 = sphi 0, %s305
      %s320 = sphi 0, %s306
      %s324 = sphi 0, %s324
      %s326 = sphi 0, %s324
      %s327 = sphi 0, %s326
      %s341 = sphi 0, %s327
      %s345 = sphi 0, %s345
      %s347 = sphi 0, %s345
      %s348 = sphi 0, %s347
      %s362 = sphi 0, %s348
      %s366 = sphi 0, %s366
      %s368 = sphi 0, %s366
      %s369 = sphi 0, %s368
      %s383 = sphi 0, %s369
      %s387 = sphi 0, %s387
      %s389 = sphi 0, %s387
      %s390 = sphi 0, %s389
      %s404 = sphi 0, %s390
      %s408 = sphi 0, %s408
      %s410 = sphi 0, %s408
      %s411 = sphi 0, %s410
      %s425 = sphi 0, %s411
      %s429 = sphi 0, %s429
      %s431 = sphi 0, %s429
      %s432 = sphi 0, %s431
      %s446 = sphi 0, %s432
      %s452 = sphi 0, %s454
      %s455 = sphi 0, %s452
      %s456 = sphi 0, %s455
      %s472 = sphi 0, %s456
      %s478 = sphi 0, %s480
      %s481 = sphi 0, %s478
      %s482 = sphi 0, %s481
      %s498 = sphi 0, %s482
    $region4: #{tpu_custom_call.1} parent=1 // loop_header_branch
      %41 = sbr.rel (%p39) target = $region8
    $region5: #{tpu_custom_call.1} parent=1 // loop_body
      %s43 = ssub.s32 %s38, 1
      %s44 = ssub.s32 %s38, 2
      %s45 = sadd.s32 %s38, 1
      %s46 = ssub.s32 %s38, %s45
      %p47 = scmp.eq.s32.totalorder %s46, 0
      %s49 = sadd.s32 %s48, 1
      %s50 = scalar_select %p47, %s48, %s49
      %p53 = pneg %p47
      %p54 = scmp.eq.s32.totalorder %s38, 1
      %p55 = por %p53, %p54
      %p56 = scmp.ne.s32.totalorder %s48, %s51
      %p57 = scmp.eq.s32.totalorder %s38, 0
      %p58 = por %p56, %p57
      %p59 = scmp.ne.s32.totalorder %s48, %s51
      %p60 = scmp.eq.s32.totalorder %s43, 1
      %p61 = por %p59, %p60
      %p62 = scmp.ne.s32.totalorder %s51, %s52
      %p63 = scmp.eq.s32.totalorder %s43, 0
      %p64 = por %p62, %p63
      %p65 = scmp.ne.s32.totalorder %s51, %s52
      %p66 = scmp.eq.s32.totalorder %s44, 1
      %p67 = por %p65, %p66
      %p69 = scmp.ne.s32.totalorder %s52, %s68
      %p70 = scmp.eq.s32.totalorder %s44, 0
      %p71 = por %p69, %p70
      %s73 = sadd.s32 %s72, 1
      %p76 = scmp.eq.s32.totalorder %s38, 1
      %p77 = scmp.ne.s32.totalorder %s72, %s74
      %p78 = scmp.eq.s32.totalorder %s38, 0
      %p79 = por %p77, %p78
      %p80 = scmp.ne.s32.totalorder %s72, %s74
      %p81 = scmp.eq.s32.totalorder %s43, 1
      %p82 = por %p80, %p81
      %p83 = scmp.ne.s32.totalorder %s74, %s75
      %p84 = scmp.eq.s32.totalorder %s43, 0
      %p85 = por %p83, %p84
      %p86 = scmp.ne.s32.totalorder %s74, %s75
      %p87 = scmp.eq.s32.totalorder %s44, 1
      %p88 = por %p86, %p87
      %p90 = scmp.ne.s32.totalorder %s75, %s89
      %p91 = scmp.eq.s32.totalorder %s44, 0
      %p92 = por %p90, %p91
      %s94 = sadd.s32 %s93, 1
      %p97 = scmp.eq.s32.totalorder %s38, 1
      %p98 = scmp.ne.s32.totalorder %s93, %s95
      %p99 = scmp.eq.s32.totalorder %s38, 0
      %p100 = por %p98, %p99
      %p101 = scmp.ne.s32.totalorder %s93, %s95
      %p102 = scmp.eq.s32.totalorder %s43, 1
      %p103 = por %p101, %p102
      %p104 = scmp.ne.s32.totalorder %s95, %s96
      %p105 = scmp.eq.s32.totalorder %s43, 0
      %p106 = por %p104, %p105
      %p107 = scmp.ne.s32.totalorder %s95, %s96
      %p108 = scmp.eq.s32.totalorder %s44, 1
      %p109 = por %p107, %p108
      %p111 = scmp.ne.s32.totalorder %s96, %s110
      %p112 = scmp.eq.s32.totalorder %s44, 0
      %p113 = por %p111, %p112
      %s115 = sadd.s32 %s114, 1
      %p118 = scmp.eq.s32.totalorder %s38, 1
      %p119 = scmp.ne.s32.totalorder %s114, %s116
      %p120 = scmp.eq.s32.totalorder %s38, 0
      %p121 = por %p119, %p120
      %p122 = scmp.ne.s32.totalorder %s114, %s116
      %p123 = scmp.eq.s32.totalorder %s43, 1
      %p124 = por %p122, %p123
      %p125 = scmp.ne.s32.totalorder %s116, %s117
      %p126 = scmp.eq.s32.totalorder %s43, 0
      %p127 = por %p125, %p126
      %p128 = scmp.ne.s32.totalorder %s116, %s117
      %p129 = scmp.eq.s32.totalorder %s44, 1
      %p130 = por %p128, %p129
      %p132 = scmp.ne.s32.totalorder %s117, %s131
      %p133 = scmp.eq.s32.totalorder %s44, 0
      %p134 = por %p132, %p133
      %s136 = sadd.s32 %s135, 1
      %p139 = scmp.eq.s32.totalorder %s38, 1
      %p140 = scmp.ne.s32.totalorder %s135, %s137
      %p141 = scmp.eq.s32.totalorder %s38, 0
      %p142 = por %p140, %p141
      %p143 = scmp.ne.s32.totalorder %s135, %s137
      %p144 = scmp.eq.s32.totalorder %s43, 1
      %p145 = por %p143, %p144
      %p146 = scmp.ne.s32.totalorder %s137, %s138
      %p147 = scmp.eq.s32.totalorder %s43, 0
      %p148 = por %p146, %p147
      %p149 = scmp.ne.s32.totalorder %s137, %s138
      %p150 = scmp.eq.s32.totalorder %s44, 1
      %p151 = por %p149, %p150
      %p153 = scmp.ne.s32.totalorder %s138, %s152
      %p154 = scmp.eq.s32.totalorder %s44, 0
      %p155 = por %p153, %p154
      %s157 = sadd.s32 %s156, 1
      %p160 = scmp.eq.s32.totalorder %s38, 1
      %p161 = scmp.ne.s32.totalorder %s156, %s158
      %p162 = scmp.eq.s32.totalorder %s38, 0
      %p163 = por %p161, %p162
      %p164 = scmp.ne.s32.totalorder %s156, %s158
      %p165 = scmp.eq.s32.totalorder %s43, 1
      %p166 = por %p164, %p165
      %p167 = scmp.ne.s32.totalorder %s158, %s159
      %p168 = scmp.eq.s32.totalorder %s43, 0
      %p169 = por %p167, %p168
      %p170 = scmp.ne.s32.totalorder %s158, %s159
      %p171 = scmp.eq.s32.totalorder %s44, 1
      %p172 = por %p170, %p171
      %p174 = scmp.ne.s32.totalorder %s159, %s173
      %p175 = scmp.eq.s32.totalorder %s44, 0
      %p176 = por %p174, %p175
      %s178 = sadd.s32 %s177, 1
      %p181 = scmp.eq.s32.totalorder %s38, 1
      %p182 = scmp.ne.s32.totalorder %s177, %s179
      %p183 = scmp.eq.s32.totalorder %s38, 0
      %p184 = por %p182, %p183
      %p185 = scmp.ne.s32.totalorder %s177, %s179
      %p186 = scmp.eq.s32.totalorder %s43, 1
      %p187 = por %p185, %p186
      %p188 = scmp.ne.s32.totalorder %s179, %s180
      %p189 = scmp.eq.s32.totalorder %s43, 0
      %p190 = por %p188, %p189
      %p191 = scmp.ne.s32.totalorder %s179, %s180
      %p192 = scmp.eq.s32.totalorder %s44, 1
      %p193 = por %p191, %p192
      %p195 = scmp.ne.s32.totalorder %s180, %s194
      %p196 = scmp.eq.s32.totalorder %s44, 0
      %p197 = por %p195, %p196
      %s199 = sadd.s32 %s198, 1
      %p202 = scmp.eq.s32.totalorder %s38, 1
      %p203 = scmp.ne.s32.totalorder %s198, %s200
      %p204 = scmp.eq.s32.totalorder %s38, 0
      %p205 = por %p203, %p204
      %p206 = scmp.ne.s32.totalorder %s198, %s200
      %p207 = scmp.eq.s32.totalorder %s43, 1
      %p208 = por %p206, %p207
      %p209 = scmp.ne.s32.totalorder %s200, %s201
      %p210 = scmp.eq.s32.totalorder %s43, 0
      %p211 = por %p209, %p210
      %p212 = scmp.ne.s32.totalorder %s200, %s201
      %p213 = scmp.eq.s32.totalorder %s44, 1
      %p214 = por %p212, %p213
      %p216 = scmp.ne.s32.totalorder %s201, %s215
      %p217 = scmp.eq.s32.totalorder %s44, 0
      %p218 = por %p216, %p217
      %s220 = sadd.s32 %s219, 1
      %p223 = scmp.eq.s32.totalorder %s38, 1
      %p224 = scmp.ne.s32.totalorder %s219, %s221
      %p225 = scmp.eq.s32.totalorder %s38, 0
      %p226 = por %p224, %p225
      %p227 = scmp.ne.s32.totalorder %s219, %s221
      %p228 = scmp.eq.s32.totalorder %s43, 1
      %p229 = por %p227, %p228
      %p230 = scmp.ne.s32.totalorder %s221, %s222
      %p231 = scmp.eq.s32.totalorder %s43, 0
      %p232 = por %p230, %p231
      %p233 = scmp.ne.s32.totalorder %s221, %s222
      %p234 = scmp.eq.s32.totalorder %s44, 1
      %p235 = por %p233, %p234
      %p237 = scmp.ne.s32.totalorder %s222, %s236
      %p238 = scmp.eq.s32.totalorder %s44, 0
      %p239 = por %p237, %p238
      %s241 = sadd.s32 %s240, 1
      %p244 = scmp.eq.s32.totalorder %s38, 1
      %p245 = scmp.ne.s32.totalorder %s240, %s242
      %p246 = scmp.eq.s32.totalorder %s38, 0
      %p247 = por %p245, %p246
      %p248 = scmp.ne.s32.totalorder %s240, %s242
      %p249 = scmp.eq.s32.totalorder %s43, 1
      %p250 = por %p248, %p249
      %p251 = scmp.ne.s32.totalorder %s242, %s243
      %p252 = scmp.eq.s32.totalorder %s43, 0
      %p253 = por %p251, %p252
      %p254 = scmp.ne.s32.totalorder %s242, %s243
      %p255 = scmp.eq.s32.totalorder %s44, 1
      %p256 = por %p254, %p255
      %p258 = scmp.ne.s32.totalorder %s243, %s257
      %p259 = scmp.eq.s32.totalorder %s44, 0
      %p260 = por %p258, %p259
      %s262 = sadd.s32 %s261, 1
      %p265 = scmp.eq.s32.totalorder %s38, 1
      %p266 = scmp.ne.s32.totalorder %s261, %s263
      %p267 = scmp.eq.s32.totalorder %s38, 0
      %p268 = por %p266, %p267
      %p269 = scmp.ne.s32.totalorder %s261, %s263
      %p270 = scmp.eq.s32.totalorder %s43, 1
      %p271 = por %p269, %p270
      %p272 = scmp.ne.s32.totalorder %s263, %s264
      %p273 = scmp.eq.s32.totalorder %s43, 0
      %p274 = por %p272, %p273
      %p275 = scmp.ne.s32.totalorder %s263, %s264
      %p276 = scmp.eq.s32.totalorder %s44, 1
      %p277 = por %p275, %p276
      %p279 = scmp.ne.s32.totalorder %s264, %s278
      %p280 = scmp.eq.s32.totalorder %s44, 0
      %p281 = por %p279, %p280
      %s283 = sadd.s32 %s282, 1
      %p286 = scmp.eq.s32.totalorder %s38, 1
      %p287 = scmp.ne.s32.totalorder %s282, %s284
      %p288 = scmp.eq.s32.totalorder %s38, 0
      %p289 = por %p287, %p288
      %p290 = scmp.ne.s32.totalorder %s282, %s284
      %p291 = scmp.eq.s32.totalorder %s43, 1
      %p292 = por %p290, %p291
      %p293 = scmp.ne.s32.totalorder %s284, %s285
      %p294 = scmp.eq.s32.totalorder %s43, 0
      %p295 = por %p293, %p294
      %p296 = scmp.ne.s32.totalorder %s284, %s285
      %p297 = scmp.eq.s32.totalorder %s44, 1
      %p298 = por %p296, %p297
      %p300 = scmp.ne.s32.totalorder %s285, %s299
      %p301 = scmp.eq.s32.totalorder %s44, 0
      %p302 = por %p300, %p301
      %s304 = sadd.s32 %s303, 1
      %p307 = scmp.eq.s32.totalorder %s38, 1
      %p308 = scmp.ne.s32.totalorder %s303, %s305
      %p309 = scmp.eq.s32.totalorder %s38, 0
      %p310 = por %p308, %p309
      %p311 = scmp.ne.s32.totalorder %s303, %s305
      %p312 = scmp.eq.s32.totalorder %s43, 1
      %p313 = por %p311, %p312
      %p314 = scmp.ne.s32.totalorder %s305, %s306
      %p315 = scmp.eq.s32.totalorder %s43, 0
      %p316 = por %p314, %p315
      %p317 = scmp.ne.s32.totalorder %s305, %s306
      %p318 = scmp.eq.s32.totalorder %s44, 1
      %p319 = por %p317, %p318
      %p321 = scmp.ne.s32.totalorder %s306, %s320
      %p322 = scmp.eq.s32.totalorder %s44, 0
      %p323 = por %p321, %p322
      %s325 = sadd.s32 %s324, 1
      %p328 = scmp.eq.s32.totalorder %s38, 1
      %p329 = scmp.ne.s32.totalorder %s324, %s326
      %p330 = scmp.eq.s32.totalorder %s38, 0
      %p331 = por %p329, %p330
      %p332 = scmp.ne.s32.totalorder %s324, %s326
      %p333 = scmp.eq.s32.totalorder %s43, 1
      %p334 = por %p332, %p333
      %p335 = scmp.ne.s32.totalorder %s326, %s327
      %p336 = scmp.eq.s32.totalorder %s43, 0
      %p337 = por %p335, %p336
      %p338 = scmp.ne.s32.totalorder %s326, %s327
      %p339 = scmp.eq.s32.totalorder %s44, 1
      %p340 = por %p338, %p339
      %p342 = scmp.ne.s32.totalorder %s327, %s341
      %p343 = scmp.eq.s32.totalorder %s44, 0
      %p344 = por %p342, %p343
      %s346 = sadd.s32 %s345, 1
      %p349 = scmp.eq.s32.totalorder %s38, 1
      %p350 = scmp.ne.s32.totalorder %s345, %s347
      %p351 = scmp.eq.s32.totalorder %s38, 0
      %p352 = por %p350, %p351
      %p353 = scmp.ne.s32.totalorder %s345, %s347
      %p354 = scmp.eq.s32.totalorder %s43, 1
      %p355 = por %p353, %p354
      %p356 = scmp.ne.s32.totalorder %s347, %s348
      %p357 = scmp.eq.s32.totalorder %s43, 0
      %p358 = por %p356, %p357
      %p359 = scmp.ne.s32.totalorder %s347, %s348
      %p360 = scmp.eq.s32.totalorder %s44, 1
      %p361 = por %p359, %p360
      %p363 = scmp.ne.s32.totalorder %s348, %s362
      %p364 = scmp.eq.s32.totalorder %s44, 0
      %p365 = por %p363, %p364
      %s367 = sadd.s32 %s366, 1
      %p370 = scmp.eq.s32.totalorder %s38, 1
      %p371 = scmp.ne.s32.totalorder %s366, %s368
      %p372 = scmp.eq.s32.totalorder %s38, 0
      %p373 = por %p371, %p372
      %p374 = scmp.ne.s32.totalorder %s366, %s368
      %p375 = scmp.eq.s32.totalorder %s43, 1
      %p376 = por %p374, %p375
      %p377 = scmp.ne.s32.totalorder %s368, %s369
      %p378 = scmp.eq.s32.totalorder %s43, 0
      %p379 = por %p377, %p378
      %p380 = scmp.ne.s32.totalorder %s368, %s369
      %p381 = scmp.eq.s32.totalorder %s44, 1
      %p382 = por %p380, %p381
      %p384 = scmp.ne.s32.totalorder %s369, %s383
      %p385 = scmp.eq.s32.totalorder %s44, 0
      %p386 = por %p384, %p385
      %s388 = sadd.s32 %s387, 1
      %p391 = scmp.eq.s32.totalorder %s38, 1
      %p392 = scmp.ne.s32.totalorder %s387, %s389
      %p393 = scmp.eq.s32.totalorder %s38, 0
      %p394 = por %p392, %p393
      %p395 = scmp.ne.s32.totalorder %s387, %s389
      %p396 = scmp.eq.s32.totalorder %s43, 1
      %p397 = por %p395, %p396
      %p398 = scmp.ne.s32.totalorder %s389, %s390
      %p399 = scmp.eq.s32.totalorder %s43, 0
      %p400 = por %p398, %p399
      %p401 = scmp.ne.s32.totalorder %s389, %s390
      %p402 = scmp.eq.s32.totalorder %s44, 1
      %p403 = por %p401, %p402
      %p405 = scmp.ne.s32.totalorder %s390, %s404
      %p406 = scmp.eq.s32.totalorder %s44, 0
      %p407 = por %p405, %p406
      %s409 = sadd.s32 %s408, 1
      %p412 = scmp.eq.s32.totalorder %s38, 1
      %p413 = scmp.ne.s32.totalorder %s408, %s410
      %p414 = scmp.eq.s32.totalorder %s38, 0
      %p415 = por %p413, %p414
      %p416 = scmp.ne.s32.totalorder %s408, %s410
      %p417 = scmp.eq.s32.totalorder %s43, 1
      %p418 = por %p416, %p417
      %p419 = scmp.ne.s32.totalorder %s410, %s411
      %p420 = scmp.eq.s32.totalorder %s43, 0
      %p421 = por %p419, %p420
      %p422 = scmp.ne.s32.totalorder %s410, %s411
      %p423 = scmp.eq.s32.totalorder %s44, 1
      %p424 = por %p422, %p423
      %p426 = scmp.ne.s32.totalorder %s411, %s425
      %p427 = scmp.eq.s32.totalorder %s44, 0
      %p428 = por %p426, %p427
      %s430 = sadd.s32 %s429, 1
      %p433 = scmp.eq.s32.totalorder %s38, 1
      %p434 = scmp.ne.s32.totalorder %s429, %s431
      %p435 = scmp.eq.s32.totalorder %s38, 0
      %p436 = por %p434, %p435
      %p437 = scmp.ne.s32.totalorder %s429, %s431
      %p438 = scmp.eq.s32.totalorder %s43, 1
      %p439 = por %p437, %p438
      %p440 = scmp.ne.s32.totalorder %s431, %s432
      %p441 = scmp.eq.s32.totalorder %s43, 0
      %p442 = por %p440, %p441
      %p443 = scmp.ne.s32.totalorder %s431, %s432
      %p444 = scmp.eq.s32.totalorder %s44, 1
      %p445 = por %p443, %p444
      %p447 = scmp.ne.s32.totalorder %s432, %s446
      %p448 = scmp.eq.s32.totalorder %s44, 0
      %p449 = por %p447, %p448
      %s450 = ssub.s32 %s38, %s45
      %p451 = scmp.eq.s32.totalorder %s450, 0
      %s453 = sadd.s32 %s452, 1
      %s454 = scalar_select %p451, %s452, %s453
      %p457 = pneg %p451
      %p458 = scmp.eq.s32.totalorder %s38, 1
      %p459 = por %p457, %p458
      %p460 = scmp.ne.s32.totalorder %s452, %s455
      %p461 = scmp.eq.s32.totalorder %s38, 0
      %p462 = por %p460, %p461
      %p463 = scmp.ne.s32.totalorder %s452, %s455
      %p464 = scmp.eq.s32.totalorder %s43, 1
      %p465 = por %p463, %p464
      %p466 = scmp.ne.s32.totalorder %s455, %s456
      %p467 = scmp.eq.s32.totalorder %s43, 0
      %p468 = por %p466, %p467
      %p469 = scmp.ne.s32.totalorder %s455, %s456
      %p470 = scmp.eq.s32.totalorder %s44, 1
      %p471 = por %p469, %p470
      %p473 = scmp.ne.s32.totalorder %s456, %s472
      %p474 = scmp.eq.s32.totalorder %s44, 0
      %p475 = por %p473, %p474
      %s476 = ssub.s32 %s38, %s45
      %p477 = scmp.eq.s32.totalorder %s476, 0
      %s479 = sadd.s32 %s478, 1
      %s480 = scalar_select %p477, %s478, %s479
      %p483 = pneg %p477
      %p484 = scmp.eq.s32.totalorder %s38, 1
      %p485 = por %p483, %p484
      %p486 = scmp.ne.s32.totalorder %s478, %s481
      %p487 = scmp.eq.s32.totalorder %s38, 0
      %p488 = por %p486, %p487
      %p489 = scmp.ne.s32.totalorder %s478, %s481
      %p490 = scmp.eq.s32.totalorder %s43, 1
      %p491 = por %p489, %p490
      %p492 = scmp.ne.s32.totalorder %s481, %s482
      %p493 = scmp.eq.s32.totalorder %s43, 0
      %p494 = por %p492, %p493
      %p495 = scmp.ne.s32.totalorder %s481, %s482
      %p496 = scmp.eq.s32.totalorder %s44, 1
      %p497 = por %p495, %p496
      %p499 = scmp.ne.s32.totalorder %s482, %s498
      %p500 = scmp.eq.s32.totalorder %s44, 0
      %p501 = por %p499, %p500
      %p502 = scmp.le.s32.totalorder 1, %s38
      %p503 = scmp.lt.s32.totalorder %s38, 3
      %p504 = pnand %p502, %p503
      %p505 = pneg %p504
      // Predicated region
      $region9: #{tpu_custom_call.1} parent=5 // pred_check
        _
      $region10: #{tpu_custom_call.1} parent=5 // pred_check_branch
        %507 = sbr.rel (%p504) target = $region12
      $region11: #{tpu_custom_call.1} parent=5 // pred_region
        %s508 = ssub.s32 %s38, 1
        // Predicated region
        $region13: #{tpu_custom_call.1} parent=11 // pred_check
          %p509 = pneg %p85
        $region14: #{tpu_custom_call.1} parent=11 // pred_check_branch
          %511 = sbr.rel (%p509) target = $region16
        $region15: #{tpu_custom_call.1} parent=11 // pred_region
          %s513 = ssub.s32 32, 32
          %514 = vsyncadd [#allocation6], %s513
          %s515 = sshll.u32 [#allocation5], 4
          %s516 = int_to_ptr.vmem [resolvable:$true] %s515
          %521 = dma.hbm_to_vmem [thread:$0]  %s1, 32, %s516, [#allocation6], 16, 16, 1
        $region16: #{tpu_custom_call.1} parent=11 // pred_fallthru
          _
        // Predicated region
        $region17: #{tpu_custom_call.1} parent=11 // pred_check
          %p522 = pneg %p106
        $region18: #{tpu_custom_call.1} parent=11 // pred_check_branch
          %524 = sbr.rel (%p522) target = $region20
        $region19: #{tpu_custom_call.1} parent=11 // pred_region
          %s526 = ssub.s32 32, 32
          %527 = vsyncadd [#allocation6], %s526
          %s528 = sshll.u32 [#allocation7], 4
          %s529 = int_to_ptr.vmem [resolvable:$true] %s528
          %534 = dma.hbm_to_vmem [thread:$0]  %s2, 32, %s529, [#allocation6], 16, 16, 1
        $region20: #{tpu_custom_call.1} parent=11 // pred_fallthru
          _
        // Predicated region
        $region21: #{tpu_custom_call.1} parent=11 // pred_check
          %p535 = pneg %p127
        $region22: #{tpu_custom_call.1} parent=11 // pred_check_branch
          %537 = sbr.rel (%p535) target = $region24
        $region23: #{tpu_custom_call.1} parent=11 // pred_region
          _
        $region24: #{tpu_custom_call.1} parent=11 // pred_fallthru
          _
        // Predicated region
        $region25: #{tpu_custom_call.1} parent=11 // pred_check
          %p538 = pneg %p148
        $region26: #{tpu_custom_call.1} parent=11 // pred_check_branch
          %540 = sbr.rel (%p538) target = $region28
        $region27: #{tpu_custom_call.1} parent=11 // pred_region
          _
        $region28: #{tpu_custom_call.1} parent=11 // pred_fallthru
          _
        // Predicated region
        $region29: #{tpu_custom_call.1} parent=11 // pred_check
          %p541 = pneg %p169
        $region30: #{tpu_custom_call.1} parent=11 // pred_check_branch
          %543 = sbr.rel (%p541) target = $region32
        $region31: #{tpu_custom_call.1} parent=11 // pred_region
          _
        $region32: #{tpu_custom_call.1} parent=11 // pred_fallthru
          _
        // Predicated region
        $region33: #{tpu_custom_call.1} parent=11 // pred_check
          %p544 = pneg %p190
        $region34: #{tpu_custom_call.1} parent=11 // pred_check_branch
          %546 = sbr.rel (%p544) target = $region36
        $region35: #{tpu_custom_call.1} parent=11 // pred_region
          _
        $region36: #{tpu_custom_call.1} parent=11 // pred_fallthru
          _
        // Predicated region
        $region37: #{tpu_custom_call.1} parent=11 // pred_check
          %p547 = pneg %p211
        $region38: #{tpu_custom_call.1} parent=11 // pred_check_branch
          %549 = sbr.rel (%p547) target = $region40
        $region39: #{tpu_custom_call.1} parent=11 // pred_region
          _
        $region40: #{tpu_custom_call.1} parent=11 // pred_fallthru
          _
        // Predicated region
        $region41: #{tpu_custom_call.1} parent=11 // pred_check
          %p550 = pneg %p232
        $region42: #{tpu_custom_call.1} parent=11 // pred_check_branch
          %552 = sbr.rel (%p550) target = $region44
        $region43: #{tpu_custom_call.1} parent=11 // pred_region
          _
        $region44: #{tpu_custom_call.1} parent=11 // pred_fallthru
          _
        // Predicated region
        $region45: #{tpu_custom_call.1} parent=11 // pred_check
          %p553 = pneg %p253
        $region46: #{tpu_custom_call.1} parent=11 // pred_check_branch
          %555 = sbr.rel (%p553) target = $region48
        $region47: #{tpu_custom_call.1} parent=11 // pred_region
          _
        $region48: #{tpu_custom_call.1} parent=11 // pred_fallthru
          _
        // Predicated region
        $region49: #{tpu_custom_call.1} parent=11 // pred_check
          %p556 = pneg %p274
        $region50: #{tpu_custom_call.1} parent=11 // pred_check_branch
          %558 = sbr.rel (%p556) target = $region52
        $region51: #{tpu_custom_call.1} parent=11 // pred_region
          _
        $region52: #{tpu_custom_call.1} parent=11 // pred_fallthru
          _
        // Predicated region
        $region53: #{tpu_custom_call.1} parent=11 // pred_check
          %p559 = pneg %p295
        $region54: #{tpu_custom_call.1} parent=11 // pred_check_branch
          %561 = sbr.rel (%p559) target = $region56
        $region55: #{tpu_custom_call.1} parent=11 // pred_region
          _
        $region56: #{tpu_custom_call.1} parent=11 // pred_fallthru
          _
        // Predicated region
        $region57: #{tpu_custom_call.1} parent=11 // pred_check
          %p562 = pneg %p316
        $region58: #{tpu_custom_call.1} parent=11 // pred_check_branch
          %564 = sbr.rel (%p562) target = $region60
        $region59: #{tpu_custom_call.1} parent=11 // pred_region
          _
        $region60: #{tpu_custom_call.1} parent=11 // pred_fallthru
          _
        // Predicated region
        $region61: #{tpu_custom_call.1} parent=11 // pred_check
          %p565 = pneg %p337
        $region62: #{tpu_custom_call.1} parent=11 // pred_check_branch
          %567 = sbr.rel (%p565) target = $region64
        $region63: #{tpu_custom_call.1} parent=11 // pred_region
          _
        $region64: #{tpu_custom_call.1} parent=11 // pred_fallthru
          _
        // Predicated region
        $region65: #{tpu_custom_call.1} parent=11 // pred_check
          %p568 = pneg %p358
        $region66: #{tpu_custom_call.1} parent=11 // pred_check_branch
          %570 = sbr.rel (%p568) target = $region68
        $region67: #{tpu_custom_call.1} parent=11 // pred_region
          _
        $region68: #{tpu_custom_call.1} parent=11 // pred_fallthru
          _
        // Predicated region
        $region69: #{tpu_custom_call.1} parent=11 // pred_check
          %p571 = pneg %p379
        $region70: #{tpu_custom_call.1} parent=11 // pred_check_branch
          %573 = sbr.rel (%p571) target = $region72
        $region71: #{tpu_custom_call.1} parent=11 // pred_region
          _
        $region72: #{tpu_custom_call.1} parent=11 // pred_fallthru
          _
        // Predicated region
        $region73: #{tpu_custom_call.1} parent=11 // pred_check
          %p574 = pneg %p400
        $region74: #{tpu_custom_call.1} parent=11 // pred_check_branch
          %576 = sbr.rel (%p574) target = $region76
        $region75: #{tpu_custom_call.1} parent=11 // pred_region
          _
        $region76: #{tpu_custom_call.1} parent=11 // pred_fallthru
          _
        // Predicated region
        $region77: #{tpu_custom_call.1} parent=11 // pred_check
          %p577 = pneg %p421
        $region78: #{tpu_custom_call.1} parent=11 // pred_check_branch
          %579 = sbr.rel (%p577) target = $region80
        $region79: #{tpu_custom_call.1} parent=11 // pred_region
          %s581 = ssub.s32 512, 512
          %582 = vsyncadd [#allocation9], %s581
          %s583 = sshll.u32 [#allocation8], 4
          %s584 = int_to_ptr.vmem [resolvable:$true] %s583
          %589 = dma.hbm_to_vmem [thread:$0]  %s17, 512, %s584, [#allocation9], 64, 64, 4
        $region80: #{tpu_custom_call.1} parent=11 // pred_fallthru
          _
        // Predicated region
        $region81: #{tpu_custom_call.1} parent=11 // pred_check
          %p590 = pneg %p442
        $region82: #{tpu_custom_call.1} parent=11 // pred_check_branch
          %592 = sbr.rel (%p590) target = $region84
        $region83: #{tpu_custom_call.1} parent=11 // pred_region
          _
        $region84: #{tpu_custom_call.1} parent=11 // pred_fallthru
          _
      $region12: #{tpu_custom_call.1} parent=5 // pred_fallthru
        _
      %p593 = scmp.lt.s32.totalorder %s38, 2
      // Predicated region
      $region85: #{tpu_custom_call.1} parent=5 // pred_check
        %p594 = pneg %p593
      $region86: #{tpu_custom_call.1} parent=5 // pred_check_branch
        %596 = sbr.rel (%p594) target = $region88
      $region87: #{tpu_custom_call.1} parent=5 // pred_region
        // Predicated region
        $region89: #{tpu_custom_call.1} parent=87 // pred_check
          %p597 = pneg %p58
        $region90: #{tpu_custom_call.1} parent=87 // pred_check_branch
          %599 = sbr.rel (%p597) target = $region92
        $region91: #{tpu_custom_call.1} parent=87 // pred_region
          %s600 = sand.u32 %s48, 1
          %s601 = scalar_lea.sflag [#allocation3], %s600
          %s602 = sand.u32 %s48, 1
          %s603 = smul.addr %s602, 16
          %s604 = scalar_lea.vmem [#allocation2], %s603
          %s605 = smul.u32 2, %s38
          %s607 = ssub.s32 256, 256
          %608 = vsyncadd %s601, %s607
          %s609 = smul.addr %s605, 128
          %s610 = scalar_lea.hbm %s0, %s609
          %s611 = sshll.u32 %s604, 4
          %s612 = int_to_ptr.vmem [resolvable:$true] %s611
          %617 = dma.hbm_to_vmem [thread:$0]  %s610, 256, %s612, %s601, 128, 128, 8
        $region92: #{tpu_custom_call.1} parent=87 // pred_fallthru
          _
      $region88: #{tpu_custom_call.1} parent=5 // pred_fallthru
        _
      %p618 = scmp.le.s32.totalorder 1, %s38
      %p619 = scmp.lt.s32.totalorder %s38, 3
      %p620 = pnand %p618, %p619
      %p621 = pneg %p620
      // Predicated region
      $region93: #{tpu_custom_call.1} parent=5 // pred_check
        _
      $region94: #{tpu_custom_call.1} parent=5 // pred_check_branch
        %623 = sbr.rel (%p620) target = $region96
      $region95: #{tpu_custom_call.1} parent=5 // pred_region
        %s624 = ssub.s32 %s38, 1
        %s625 = sand.u32 %s51, 1
        %s626 = scalar_lea.sflag [#allocation3], %s625
        %s627 = sand.u32 %s51, 1
        %s628 = smul.addr %s627, 16
        %s629 = scalar_lea.vmem [#allocation2], %s628
        // Predicated region
        $region97: #{tpu_custom_call.1} parent=95 // pred_check
          %p630 = pneg %p64
        $region98: #{tpu_custom_call.1} parent=95 // pred_check_branch
          %632 = sbr.rel (%p630) target = $region100
        $region99: #{tpu_custom_call.1} parent=95 // pred_region
          %633 = dma.done %s626, 256
        $region100: #{tpu_custom_call.1} parent=95 // pred_fallthru
          _
        // Predicated region
        $region101: #{tpu_custom_call.1} parent=95 // pred_check
          %p634 = pneg %p85
        $region102: #{tpu_custom_call.1} parent=95 // pred_check_branch
          %636 = sbr.rel (%p634) target = $region104
        $region103: #{tpu_custom_call.1} parent=95 // pred_region
          %637 = dma.done [#allocation6], 32
        $region104: #{tpu_custom_call.1} parent=95 // pred_fallthru
          _
        // Predicated region
        $region105: #{tpu_custom_call.1} parent=95 // pred_check
          %p638 = pneg %p106
        $region106: #{tpu_custom_call.1} parent=95 // pred_check_branch
          %640 = sbr.rel (%p638) target = $region108
        $region107: #{tpu_custom_call.1} parent=95 // pred_region
          %641 = dma.done [#allocation6], 32
        $region108: #{tpu_custom_call.1} parent=95 // pred_fallthru
          _
        // Predicated region
        $region109: #{tpu_custom_call.1} parent=95 // pred_check
          %p642 = pneg %p421
        $region110: #{tpu_custom_call.1} parent=95 // pred_check_branch
          %644 = sbr.rel (%p642) target = $region112
        $region111: #{tpu_custom_call.1} parent=95 // pred_region
          %645 = dma.done [#allocation9], 512
        $region112: #{tpu_custom_call.1} parent=95 // pred_fallthru
          _
        %s646 = sand.u32 %s51, 1
        %s647 = scalar_lea.sflag [#allocation3], %s646
        %s648 = sand.u32 %s51, 1
        %s649 = smul.addr %s648, 16
        %s650 = scalar_lea.vmem [#allocation2], %s649
        %p651 = pneg %p64
        %p652 = pneg %p61
        %p653 = pneg %p85
        %p654 = pneg %p82
        %p655 = pneg %p106
        %p656 = pneg %p103
        %p657 = pneg %p127
        %p658 = pneg %p124
        %p659 = pneg %p148
        %p660 = pneg %p145
        %p661 = pneg %p169
        %p662 = pneg %p166
        %p663 = pneg %p190
        %p664 = pneg %p187
        %p665 = pneg %p211
        %p666 = pneg %p208
        %p667 = pneg %p232
        %p668 = pneg %p229
        %p669 = pneg %p253
        %p670 = pneg %p250
        %p671 = pneg %p274
        %p672 = pneg %p271
        %p673 = pneg %p295
        %p674 = pneg %p292
        %p675 = pneg %p316
        %p676 = pneg %p313
        %p677 = pneg %p337
        %p678 = pneg %p334
        %p679 = pneg %p358
        %p680 = pneg %p355
        %p681 = pneg %p379
        %p682 = pneg %p376
        %p683 = pneg %p400
        %p684 = pneg %p397
        %p685 = pneg %p421
        %p686 = pneg %p418
        %p687 = pneg %p442
        %p688 = pneg %p439
        %p689 = pneg %p468
        %p690 = pneg %p465
        %s691 = sand.u32 %s455, 1
        %s692 = scalar_lea.sflag [#allocation4], %s691
        %s693 = sand.u32 %s455, 1
        %s694 = smul.addr %s693, 16
        %s695 = scalar_lea.vmem [#allocation10], %s694
        %p696 = pneg %p494
        %p697 = pneg %p491
        %s698 = sand.u32 %s481, 1
        %s699 = scalar_lea.sflag [#allocation12], %s698
        %s700 = sand.u32 %s481, 1
        %s701 = smul.addr %s700, 16
        %s702 = scalar_lea.vmem [#allocation11], %s701
        %s703 = smul.u32 2, %s43
        %s704 = smul.u32 2, %s43
        %s705 = smul.u32 2, %s43
        %v707 = vlaneseq
        %v708 = vand.u32 %v707, 127
        %vm709 = vcmp.lt.s32.totalorder %v708, 12
        %v710 = vld [vmem:[%s629] sm:$0xff]
        %v711 = vld [vmem:[%s629 + $0x8] sm:$0xff]
        %v712 = vld [vmem:[#allocation5] sm:$0x1]
        %v713 = vld [vmem:[#allocation7] sm:$0x1]
        %vm714 = vcmask 523264
        %v715 = vsel %vm714, %v710, 0.0
        %716 = vadd.xlane.f32.xlu0 %v715
        %v717 = vpop.xlane.xlu0 %716
        %v718 = vsel %vm714, %v711, 0.0
        %719 = vadd.xlane.f32.xlu0 %v718
        %v720 = vpop.xlane.xlu0 %719
        %v721 = vrcp.pop 64.0
        %v722 = vmul.f32 %v717, %v721
        %v723 = vmul.f32 %v720, %v721
        %v724 = vsub.f32 %v710, %v722
        %v725 = vsub.f32 %v711, %v723
        %v726 = vmul.f32 %v724, %v724
        %v727 = vmul.f32 %v725, %v725
        %v728 = vsel %vm714, %v726, 0.0
        %729 = vadd.xlane.f32.xlu0 %v728
        %v730 = vpop.xlane.xlu0 %729
        %v731 = vsel %vm714, %v727, 0.0
        %732 = vadd.xlane.f32.xlu0 %v731
        %v733 = vpop.xlane.xlu0 %732
        %v734 = vmul.f32 %v730, %v721
        %v735 = vmul.f32 %v733, %v721
        %v736 = vadd.f32 %v734, 1e-05
        %v737 = vadd.f32 %v735, 1e-05
        %v738 = vrsqrt.pop %v736
        %v739 = vrsqrt.pop %v737
        %v740 = vmul.f32 %v724, %v738
        %v741 = vmul.f32 %v725, %v739
        %v743 = vlaneseq
        %v744 = vshrl.u32 %v743, 7
        %v745 = vsub.s32 0, %v744
        %v746 = vrot.slane %v712, %v745
        %v748 = vmul.f32 %v740, %v746
        %v749 = vmul.f32 %v741, %v746
        %v751 = vlaneseq
        %v752 = vshrl.u32 %v751, 7
        %v753 = vsub.s32 0, %v752
        %v754 = vrot.slane %v713, %v753
        %v756 = vadd.f32 %v748, %v754
        %v757 = vadd.f32 %v749, %v754
        %v758 = vpack.c.bf16 %v757, %v756
        %v759 = vld [vmem:[%s3] sm:$0xf]
        %v760 = vld [vmem:[%s3 + $0x4] sm:$0xf]
        %v761 = vld [vmem:[%s3 + $0x8] sm:$0xf]
        %v762 = vld [vmem:[%s3 + $0xc] sm:$0xf]
        %v763 = vld [vmem:[%s3 + $0x10] sm:$0xf]
        %v764 = vld [vmem:[%s3 + $0x14] sm:$0xf]
        %v765 = vld [vmem:[%s3 + $0x18] sm:$0xf]
        %v766 = vld [vmem:[%s3 + $0x1c] sm:$0xf]
        %v767 = vld [vmem:[%s6] sm:$0x1]
        %v769 = vlaneseq
        %v770 = vshrl.u32 %v769, 7
        %v771 = vsub.s32 0, %v770
        %v772 = vrot.slane %v767, %v771
        %v782 = vunpack.c.l.b16 %v759
        %v783 = vunpack.c.l.b16 %v760
        %v784 = vunpack.c.l.b16 %v761
        %v785 = vunpack.c.l.b16 %v762
        %v786 = vunpack.c.l.b16 %v763
        %v787 = vunpack.c.l.b16 %v764
        %v788 = vunpack.c.l.b16 %v765
        %v789 = vunpack.c.l.b16 %v766
        %v790 = vpack.c.b16 %v783, %v782
        %v791 = vpack.c.b16 %v785, %v784
        %v792 = vpack.c.b16 %v787, %v786
        %v793 = vpack.c.b16 %v789, %v788
        %v799 = vsel %vm714, %v758, 0
        %801 = vmatprep.subr.bf16.mxu0 0
        %802 = vmatpush1.bf16.msra.mxu0 0
        %803 = vmatprep.subr.bf16.mxu0 0
        %804 = vmatpush1.bf16.msra.mxu0 0
        %805 = vmatprep.subr.bf16.mxu0 0
        %806 = vmatpush1.bf16.msra.mxu0 0
        %807 = vmatprep.subr.bf16.mxu0 0
        %808 = vmatpush1.bf16.msra.mxu0 0
        %809 = vmatprep.subr.bf16.mxu0 0
        %810 = vmatpush1.bf16.msra.mxu0 %v793
        %811 = vmatprep.subr.bf16.mxu0 0
        %812 = vmatpush1.bf16.msra.mxu0 %v792
        %813 = vmatprep.subr.bf16.mxu0 0
        %814 = vmatpush1.bf16.msra.mxu0 %v791
        %815 = vmatprep.subr.bf16.mxu0 0
        %816 = vmatpush1.bf16.msra.mxu0 %v790
        %817 = vmatprep.subr.bf16.mxu0 0
        %818 = vmatpush2.bf16.msra.mxu0 0
        %819 = vmatprep.subr.bf16.mxu0 0
        %820 = vmatpush2.bf16.msra.mxu0 0
        %821 = vmatprep.subr.bf16.mxu0 0
        %822 = vmatpush2.bf16.msra.mxu0 0
        %823 = vmatprep.subr.bf16.mxu0 0
        %824 = vmatpush2.bf16.msra.mxu0 0
        %825 = vmatprep.subr.bf16.mxu0 0
        %826 = vmatpush2.bf16.msra.mxu0 0
        %827 = vmatprep.subr.bf16.mxu0 0
        %828 = vmatpush2.bf16.msra.mxu0 0
        %829 = vmatprep.subr.bf16.mxu0 0
        %830 = vmatpush2.bf16.msra.mxu0 0
        %831 = vmatprep.subr.bf16.mxu0 0
        %832 = vmatpush2.bf16.msra.mxu0 0
        %833 = vmatprep.mubr.bf16.mxu0 0
        %834 = vmatmul.mubr.bf16.gmra.mxu0 %v799
        %v835 = vpop.f32.mrf.mxu0
        %v836 = vadd.f32 %v772, %v835
        %v837 = vpop.f32.mrf.mxu0
        %v838 = vpop.f32.mrf.mxu0
        %v839 = vadd.f32 %v772, %v838
        %v840 = vpop.f32.mrf.mxu0
        %841 = vdwg.mxu0
        %v842 = vld [vmem:[%s4] sm:$0xf]
        %v843 = vld [vmem:[%s4 + $0x4] sm:$0xf]
        %v844 = vld [vmem:[%s4 + $0x8] sm:$0xf]
        %v845 = vld [vmem:[%s4 + $0xc] sm:$0xf]
        %v846 = vld [vmem:[%s4 + $0x10] sm:$0xf]
        %v847 = vld [vmem:[%s4 + $0x14] sm:$0xf]
        %v848 = vld [vmem:[%s4 + $0x18] sm:$0xf]
        %v849 = vld [vmem:[%s4 + $0x1c] sm:$0xf]
        %v850 = vld [vmem:[%s7] sm:$0x1]
        %v852 = vlaneseq
        %v853 = vshrl.u32 %v852, 7
        %v854 = vsub.s32 0, %v853
        %v855 = vrot.slane %v850, %v854
        %v865 = vunpack.c.l.b16 %v842
        %v866 = vunpack.c.l.b16 %v843
        %v867 = vunpack.c.l.b16 %v844
        %v868 = vunpack.c.l.b16 %v845
        %v869 = vunpack.c.l.b16 %v846
        %v870 = vunpack.c.l.b16 %v847
        %v871 = vunpack.c.l.b16 %v848
        %v872 = vunpack.c.l.b16 %v849
        %v873 = vpack.c.b16 %v866, %v865
        %v874 = vpack.c.b16 %v868, %v867
        %v875 = vpack.c.b16 %v870, %v869
        %v876 = vpack.c.b16 %v872, %v871
        %881 = vmatprep.subr.bf16.mxu0 0
        %882 = vmatpush1.bf16.msra.mxu0 0
        %883 = vmatprep.subr.bf16.mxu0 0
        %884 = vmatpush1.bf16.msra.mxu0 0
        %885 = vmatprep.subr.bf16.mxu0 0
        %886 = vmatpush1.bf16.msra.mxu0 0
        %887 = vmatprep.subr.bf16.mxu0 0
        %888 = vmatpush1.bf16.msra.mxu0 0
        %889 = vmatprep.subr.bf16.mxu0 0
        %890 = vmatpush1.bf16.msra.mxu0 %v876
        %891 = vmatprep.subr.bf16.mxu0 0
        %892 = vmatpush1.bf16.msra.mxu0 %v875
        %893 = vmatprep.subr.bf16.mxu0 0
        %894 = vmatpush1.bf16.msra.mxu0 %v874
        %895 = vmatprep.subr.bf16.mxu0 0
        %896 = vmatpush1.bf16.msra.mxu0 %v873
        %897 = vmatprep.subr.bf16.mxu0 0
        %898 = vmatpush2.bf16.msra.mxu0 0
        %899 = vmatprep.subr.bf16.mxu0 0
        %900 = vmatpush2.bf16.msra.mxu0 0
        %901 = vmatprep.subr.bf16.mxu0 0
        %902 = vmatpush2.bf16.msra.mxu0 0
        %903 = vmatprep.subr.bf16.mxu0 0
        %904 = vmatpush2.bf16.msra.mxu0 0
        %905 = vmatprep.subr.bf16.mxu0 0
        %906 = vmatpush2.bf16.msra.mxu0 0
        %907 = vmatprep.subr.bf16.mxu0 0
        %908 = vmatpush2.bf16.msra.mxu0 0
        %909 = vmatprep.subr.bf16.mxu0 0
        %910 = vmatpush2.bf16.msra.mxu0 0
        %911 = vmatprep.subr.bf16.mxu0 0
        %912 = vmatpush2.bf16.msra.mxu0 0
        %913 = vmatprep.mubr.bf16.mxu0 0
        %914 = vmatmul.mubr.bf16.gmra.mxu0 %v799
        %v915 = vpop.f32.mrf.mxu0
        %v916 = vadd.f32 %v855, %v915
        %v917 = vpop.f32.mrf.mxu0
        %v918 = vpop.f32.mrf.mxu0
        %v919 = vadd.f32 %v855, %v918
        %v920 = vpop.f32.mrf.mxu0
        %921 = vdwg.mxu0
        %v922 = vld [vmem:[%s5] sm:$0xf]
        %v923 = vld [vmem:[%s5 + $0x4] sm:$0xf]
        %v924 = vld [vmem:[%s5 + $0x8] sm:$0xf]
        %v925 = vld [vmem:[%s5 + $0xc] sm:$0xf]
        %v926 = vld [vmem:[%s5 + $0x10] sm:$0xf]
        %v927 = vld [vmem:[%s5 + $0x14] sm:$0xf]
        %v928 = vld [vmem:[%s5 + $0x18] sm:$0xf]
        %v929 = vld [vmem:[%s5 + $0x1c] sm:$0xf]
        %v930 = vld [vmem:[%s8] sm:$0x1]
        %v932 = vlaneseq
        %v933 = vshrl.u32 %v932, 7
        %v934 = vsub.s32 0, %v933
        %v935 = vrot.slane %v930, %v934
        %v945 = vunpack.c.l.b16 %v922
        %v946 = vunpack.c.l.b16 %v923
        %v947 = vunpack.c.l.b16 %v924
        %v948 = vunpack.c.l.b16 %v925
        %v949 = vunpack.c.l.b16 %v926
        %v950 = vunpack.c.l.b16 %v927
        %v951 = vunpack.c.l.b16 %v928
        %v952 = vunpack.c.l.b16 %v929
        %v953 = vpack.c.b16 %v946, %v945
        %v954 = vpack.c.b16 %v948, %v947
        %v955 = vpack.c.b16 %v950, %v949
        %v956 = vpack.c.b16 %v952, %v951
        %961 = vmatprep.subr.bf16.mxu0 0
        %962 = vmatpush1.bf16.msra.mxu0 0
        %963 = vmatprep.subr.bf16.mxu0 0
        %964 = vmatpush1.bf16.msra.mxu0 0
        %965 = vmatprep.subr.bf16.mxu0 0
        %966 = vmatpush1.bf16.msra.mxu0 0
        %967 = vmatprep.subr.bf16.mxu0 0
        %968 = vmatpush1.bf16.msra.mxu0 0
        %969 = vmatprep.subr.bf16.mxu0 0
        %970 = vmatpush1.bf16.msra.mxu0 %v956
        %971 = vmatprep.subr.bf16.mxu0 0
        %972 = vmatpush1.bf16.msra.mxu0 %v955
        %973 = vmatprep.subr.bf16.mxu0 0
        %974 = vmatpush1.bf16.msra.mxu0 %v954
        %975 = vmatprep.subr.bf16.mxu0 0
        %976 = vmatpush1.bf16.msra.mxu0 %v953
        %977 = vmatprep.subr.bf16.mxu0 0
        %978 = vmatpush2.bf16.msra.mxu0 0
        %979 = vmatprep.subr.bf16.mxu0 0
        %980 = vmatpush2.bf16.msra.mxu0 0
        %981 = vmatprep.subr.bf16.mxu0 0
        %982 = vmatpush2.bf16.msra.mxu0 0
        %983 = vmatprep.subr.bf16.mxu0 0
        %984 = vmatpush2.bf16.msra.mxu0 0
        %985 = vmatprep.subr.bf16.mxu0 0
        %986 = vmatpush2.bf16.msra.mxu0 0
        %987 = vmatprep.subr.bf16.mxu0 0
        %988 = vmatpush2.bf16.msra.mxu0 0
        %989 = vmatprep.subr.bf16.mxu0 0
        %990 = vmatpush2.bf16.msra.mxu0 0
        %991 = vmatprep.subr.bf16.mxu0 0
        %992 = vmatpush2.bf16.msra.mxu0 0
        %993 = vmatprep.mubr.bf16.mxu0 0
        %994 = vmatmul.mubr.bf16.gmra.mxu0 %v799
        %v995 = vpop.f32.mrf.mxu0
        %v996 = vadd.f32 %v935, %v995
        %v997 = vpop.f32.mrf.mxu0
        %v998 = vpop.f32.mrf.mxu0
        %v999 = vadd.f32 %v935, %v998
        %v1000 = vpop.f32.mrf.mxu0
        %1001 = vdwg.mxu0
        %v1002 = vpack.c.bf16 %v839, %v836
        %v1003 = vpack.c.bf16 %v919, %v916
        %v1004 = vpack.c.bf16 %v999, %v996
        %vm1005 = vcmask 130048
        %v1007 = vsel %vm1005, %v1002, 0
        %v1010 = vsel %vm1005, %v1003, 0
        %1012 = vmatprep.subr.bf16.mxu0 0
        %1013 = vmatpush1.bf16.xpose.msra.mxu0 0
        %1014 = vmatprep.subr.bf16.mxu0 0
        %1015 = vmatpush1.bf16.xpose.msra.mxu0 0
        %1016 = vmatprep.subr.bf16.mxu0 0
        %1017 = vmatpush1.bf16.xpose.msra.mxu0 0
        %1018 = vmatprep.subr.bf16.mxu0 0
        %1019 = vmatpush1.bf16.xpose.msra.mxu0 0
        %1020 = vmatprep.subr.bf16.mxu0 0
        %1021 = vmatpush1.bf16.xpose.msra.mxu0 0
        %1022 = vmatprep.subr.bf16.mxu0 0
        %1023 = vmatpush1.bf16.xpose.msra.mxu0 0
        %1024 = vmatprep.subr.bf16.mxu0 0
        %1025 = vmatpush1.bf16.xpose.msra.mxu0 0
        %1026 = vmatprep.subr.bf16.mxu0 0
        %1027 = vmatpush1.bf16.xpose.msra.mxu0 %v1010
        %1028 = vmatprep.subr.bf16.mxu0 0
        %1029 = vmatpush2.bf16.xpose.msra.mxu0 0
        %1030 = vmatprep.subr.bf16.mxu0 0
        %1031 = vmatpush2.bf16.xpose.msra.mxu0 0
        %1032 = vmatprep.subr.bf16.mxu0 0
        %1033 = vmatpush2.bf16.xpose.msra.mxu0 0
        %1034 = vmatprep.subr.bf16.mxu0 0
        %1035 = vmatpush2.bf16.xpose.msra.mxu0 0
        %1036 = vmatprep.subr.bf16.mxu0 0
        %1037 = vmatpush2.bf16.xpose.msra.mxu0 0
        %1038 = vmatprep.subr.bf16.mxu0 0
        %1039 = vmatpush2.bf16.xpose.msra.mxu0 0
        %1040 = vmatprep.subr.bf16.mxu0 0
        %1041 = vmatpush2.bf16.xpose.msra.mxu0 0
        %1042 = vmatprep.subr.bf16.mxu0 0
        %1043 = vmatpush2.bf16.xpose.msra.mxu0 0
        %1044 = vmatprep.mubr.bf16.mxu0 0
        %1045 = vmatmul.mubr.bf16.gmra.mxu0 %v1007
        %v1046 = vpop.f32.mrf.mxu0
        %v1047 = vadd.f32 0.0, %v1046
        %v1048 = vpop.f32.mrf.mxu0
        %v1049 = vpop.f32.mrf.mxu0
        %v1050 = vadd.f32 0.0, %v1049
        %v1051 = vpop.f32.mrf.mxu0
        %1052 = vdwg.mxu0
        %v1053 = vmul.f32 %v1047, 0.25
        %v1054 = vmul.f32 %v1050, 0.25
        %v1055 = vsel %vm709, 1, 0
        %vm1056 = vcmp.eq.s32.totalorder %v1055, 1
        %v1057 = vsel %vm1056, %v1053, -1e+30
        %v1058 = vsel %vm1056, %v1054, -1e+30
        %v1059 = vsel %vm1005, %v1057, -inf
        %1060 = vmax.xlane.f32.xlu0 %v1059
        %v1061 = vpop.xlane.xlu0 %1060
        %v1062 = vsel %vm1005, %v1058, -inf
        %1063 = vmax.xlane.f32.xlu0 %v1062
        %v1064 = vpop.xlane.xlu0 %1063
        %v1065 = vsub.f32 %v1057, %v1061
        %v1066 = vsub.f32 %v1058, %v1064
        %v1067 = vmul.f32 %v1065, 1.442695
        %v1068 = vpow.pop %v1067
        %v1069 = vmul.f32 %v1066, 1.442695
        %v1070 = vpow.pop %v1069
        %v1071 = vsel %vm1005, %v1068, 0.0
        %1072 = vadd.xlane.f32.xlu0 %v1071
        %v1073 = vpop.xlane.xlu0 %1072
        %v1074 = vsel %vm1005, %v1070, 0.0
        %1075 = vadd.xlane.f32.xlu0 %v1074
        %v1076 = vpop.xlane.xlu0 %1075
        %v1077 = vrcp.pop %v1073
        %v1078 = vrcp.pop %v1076
        %v1079 = vmul.f32 %v1068, %v1077
        %v1080 = vmul.f32 %v1070, %v1078
        %v1081 = vpack.c.bf16 %v1080, %v1079
        %v1083 = vsel %vm1005, %v1081, 0
        %1085 = vmatprep.subr.bf16.mxu0 0
        %1086 = vmatpush1.bf16.msra.mxu0 0
        %1087 = vmatprep.subr.bf16.mxu0 0
        %1088 = vmatpush1.bf16.msra.mxu0 0
        %1089 = vmatprep.subr.bf16.mxu0 0
        %1090 = vmatpush1.bf16.msra.mxu0 0
        %1091 = vmatprep.subr.bf16.mxu0 0
        %1092 = vmatpush1.bf16.msra.mxu0 0
        %1093 = vmatprep.subr.bf16.mxu0 0
        %1094 = vmatpush1.bf16.msra.mxu0 0
        %1095 = vmatprep.subr.bf16.mxu0 0
        %1096 = vmatpush1.bf16.msra.mxu0 0
        %1097 = vmatprep.subr.bf16.mxu0 0
        %1098 = vmatpush1.bf16.msra.mxu0 0
        %1099 = vmatprep.subr.bf16.mxu0 0
        %1100 = vmatpush1.bf16.msra.mxu0 %v1004
        %1101 = vmatprep.subr.bf16.mxu0 0
        %1102 = vmatpush2.bf16.msra.mxu0 0
        %1103 = vmatprep.subr.bf16.mxu0 0
        %1104 = vmatpush2.bf16.msra.mxu0 0
        %1105 = vmatprep.subr.bf16.mxu0 0
        %1106 = vmatpush2.bf16.msra.mxu0 0
        %1107 = vmatprep.subr.bf16.mxu0 0
        %1108 = vmatpush2.bf16.msra.mxu0 0
        %1109 = vmatprep.subr.bf16.mxu0 0
        %1110 = vmatpush2.bf16.msra.mxu0 0
        %1111 = vmatprep.subr.bf16.mxu0 0
        %1112 = vmatpush2.bf16.msra.mxu0 0
        %1113 = vmatprep.subr.bf16.mxu0 0
        %1114 = vmatpush2.bf16.msra.mxu0 0
        %1115 = vmatprep.subr.bf16.mxu0 0
        %1116 = vmatpush2.bf16.msra.mxu0 0
        %1117 = vmatprep.mubr.bf16.mxu0 0
        %1118 = vmatmul.mubr.bf16.gmra.mxu0 %v1083
        %v1119 = vpop.f32.mrf.mxu0
        %v1120 = vadd.f32 0.0, %v1119
        %v1121 = vpop.f32.mrf.mxu0
        %v1122 = vpop.f32.mrf.mxu0
        %v1123 = vadd.f32 0.0, %v1122
        %v1124 = vpop.f32.mrf.mxu0
        %1125 = vdwg.mxu0
        %1127 = vrot.lane.b32.xlu0 %v1002, 112
        %v1128 = vpop.permute.xlu0 %1127
        %1130 = vrot.lane.b32.xlu0 %v1003, 112
        %v1131 = vpop.permute.xlu0 %1130
        %v1133 = vsel %vm1005, %v1128, 0
        %v1136 = vsel %vm1005, %v1131, 0
        %1138 = vmatprep.subr.bf16.mxu0 0
        %1139 = vmatpush1.bf16.xpose.msra.mxu0 0
        %1140 = vmatprep.subr.bf16.mxu0 0
        %1141 = vmatpush1.bf16.xpose.msra.mxu0 0
        %1142 = vmatprep.subr.bf16.mxu0 0
        %1143 = vmatpush1.bf16.xpose.msra.mxu0 0
        %1144 = vmatprep.subr.bf16.mxu0 0
        %1145 = vmatpush1.bf16.xpose.msra.mxu0 0
        %1146 = vmatprep.subr.bf16.mxu0 0
        %1147 = vmatpush1.bf16.xpose.msra.mxu0 0
        %1148 = vmatprep.subr.bf16.mxu0 0
        %1149 = vmatpush1.bf16.xpose.msra.mxu0 0
        %1150 = vmatprep.subr.bf16.mxu0 0
        %1151 = vmatpush1.bf16.xpose.msra.mxu0 0
        %1152 = vmatprep.subr.bf16.mxu0 0
        %1153 = vmatpush1.bf16.xpose.msra.mxu0 %v1136
        %1154 = vmatprep.subr.bf16.mxu0 0
        %1155 = vmatpush2.bf16.xpose.msra.mxu0 0
        %1156 = vmatprep.subr.bf16.mxu0 0
        %1157 = vmatpush2.bf16.xpose.msra.mxu0 0
        %1158 = vmatprep.subr.bf16.mxu0 0
        %1159 = vmatpush2.bf16.xpose.msra.mxu0 0
        %1160 = vmatprep.subr.bf16.mxu0 0
        %1161 = vmatpush2.bf16.xpose.msra.mxu0 0
        %1162 = vmatprep.subr.bf16.mxu0 0
        %1163 = vmatpush2.bf16.xpose.msra.mxu0 0
        %1164 = vmatprep.subr.bf16.mxu0 0
        %1165 = vmatpush2.bf16.xpose.msra.mxu0 0
        %1166 = vmatprep.subr.bf16.mxu0 0
        %1167 = vmatpush2.bf16.xpose.msra.mxu0 0
        %1168 = vmatprep.subr.bf16.mxu0 0
        %1169 = vmatpush2.bf16.xpose.msra.mxu0 0
        %1170 = vmatprep.mubr.bf16.mxu0 0
        %1171 = vmatmul.mubr.bf16.gmra.mxu0 %v1133
        %v1172 = vpop.f32.mrf.mxu0
        %v1173 = vadd.f32 0.0, %v1172
        %v1174 = vpop.f32.mrf.mxu0
        %v1175 = vpop.f32.mrf.mxu0
        %v1176 = vadd.f32 0.0, %v1175
        %v1177 = vpop.f32.mrf.mxu0
        %1178 = vdwg.mxu0
        %v1179 = vmul.f32 %v1173, 0.25
        %v1180 = vmul.f32 %v1176, 0.25
        %v1181 = vsel %vm1056, %v1179, -1e+30
        %v1182 = vsel %vm1056, %v1180, -1e+30
        %v1183 = vsel %vm1005, %v1181, -inf
        %1184 = vmax.xlane.f32.xlu0 %v1183
        %v1185 = vpop.xlane.xlu0 %1184
        %v1186 = vsel %vm1005, %v1182, -inf
        %1187 = vmax.xlane.f32.xlu0 %v1186
        %v1188 = vpop.xlane.xlu0 %1187
        %v1189 = vsub.f32 %v1181, %v1185
        %v1190 = vsub.f32 %v1182, %v1188
        %v1191 = vmul.f32 %v1189, 1.442695
        %v1192 = vpow.pop %v1191
        %v1193 = vmul.f32 %v1190, 1.442695
        %v1194 = vpow.pop %v1193
        %v1195 = vsel %vm1005, %v1192, 0.0
        %1196 = vadd.xlane.f32.xlu0 %v1195
        %v1197 = vpop.xlane.xlu0 %1196
        %v1198 = vsel %vm1005, %v1194, 0.0
        %1199 = vadd.xlane.f32.xlu0 %v1198
        %v1200 = vpop.xlane.xlu0 %1199
        %v1201 = vrcp.pop %v1197
        %v1202 = vrcp.pop %v1200
        %v1203 = vmul.f32 %v1192, %v1201
        %v1204 = vmul.f32 %v1194, %v1202
        %v1205 = vpack.c.bf16 %v1204, %v1203
        %1207 = vrot.lane.b32.xlu0 %v1004, 112
        %v1208 = vpop.permute.xlu0 %1207
        %v1211 = vsel %vm1005, %v1205, 0
        %1213 = vmatprep.subr.bf16.mxu0 0
        %1214 = vmatpush1.bf16.msra.mxu0 0
        %1215 = vmatprep.subr.bf16.mxu0 0
        %1216 = vmatpush1.bf16.msra.mxu0 0
        %1217 = vmatprep.subr.bf16.mxu0 0
        %1218 = vmatpush1.bf16.msra.mxu0 0
        %1219 = vmatprep.subr.bf16.mxu0 0
        %1220 = vmatpush1.bf16.msra.mxu0 0
        %1221 = vmatprep.subr.bf16.mxu0 0
        %1222 = vmatpush1.bf16.msra.mxu0 0
        %1223 = vmatprep.subr.bf16.mxu0 0
        %1224 = vmatpush1.bf16.msra.mxu0 0
        %1225 = vmatprep.subr.bf16.mxu0 0
        %1226 = vmatpush1.bf16.msra.mxu0 0
        %1227 = vmatprep.subr.bf16.mxu0 0
        %1228 = vmatpush1.bf16.msra.mxu0 %v1208
        %1229 = vmatprep.subr.bf16.mxu0 0
        %1230 = vmatpush2.bf16.msra.mxu0 0
        %1231 = vmatprep.subr.bf16.mxu0 0
        %1232 = vmatpush2.bf16.msra.mxu0 0
        %1233 = vmatprep.subr.bf16.mxu0 0
        %1234 = vmatpush2.bf16.msra.mxu0 0
        %1235 = vmatprep.subr.bf16.mxu0 0
        %1236 = vmatpush2.bf16.msra.mxu0 0
        %1237 = vmatprep.subr.bf16.mxu0 0
        %1238 = vmatpush2.bf16.msra.mxu0 0
        %1239 = vmatprep.subr.bf16.mxu0 0
        %1240 = vmatpush2.bf16.msra.mxu0 0
        %1241 = vmatprep.subr.bf16.mxu0 0
        %1242 = vmatpush2.bf16.msra.mxu0 0
        %1243 = vmatprep.subr.bf16.mxu0 0
        %1244 = vmatpush2.bf16.msra.mxu0 0
        %1245 = vmatprep.mubr.bf16.mxu0 0
        %1246 = vmatmul.mubr.bf16.gmra.mxu0 %v1211
        %v1247 = vpop.f32.mrf.mxu0
        %v1248 = vadd.f32 0.0, %v1247
        %v1249 = vpop.f32.mrf.mxu0
        %v1250 = vpop.f32.mrf.mxu0
        %v1251 = vadd.f32 0.0, %v1250
        %v1252 = vpop.f32.mrf.mxu0
        %1253 = vdwg.mxu0
        %1254 = vrot.lane.b32.xlu0 %v1002, 96
        %v1255 = vpop.permute.xlu0 %1254
        %1256 = vrot.lane.b32.xlu0 %v1003, 96
        %v1257 = vpop.permute.xlu0 %1256
        %v1259 = vsel %vm1005, %v1255, 0
        %v1262 = vsel %vm1005, %v1257, 0
        %1264 = vmatprep.subr.bf16.mxu0 0
        %1265 = vmatpush1.bf16.xpose.msra.mxu0 0
        %1266 = vmatprep.subr.bf16.mxu0 0
        %1267 = vmatpush1.bf16.xpose.msra.mxu0 0
        %1268 = vmatprep.subr.bf16.mxu0 0
        %1269 = vmatpush1.bf16.xpose.msra.mxu0 0
        %1270 = vmatprep.subr.bf16.mxu0 0
        %1271 = vmatpush1.bf16.xpose.msra.mxu0 0
        %1272 = vmatprep.subr.bf16.mxu0 0
        %1273 = vmatpush1.bf16.xpose.msra.mxu0 0
        %1274 = vmatprep.subr.bf16.mxu0 0
        %1275 = vmatpush1.bf16.xpose.msra.mxu0 0
        %1276 = vmatprep.subr.bf16.mxu0 0
        %1277 = vmatpush1.bf16.xpose.msra.mxu0 0
        %1278 = vmatprep.subr.bf16.mxu0 0
        %1279 = vmatpush1.bf16.xpose.msra.mxu0 %v1262
        %1280 = vmatprep.subr.bf16.mxu0 0
        %1281 = vmatpush2.bf16.xpose.msra.mxu0 0
        %1282 = vmatprep.subr.bf16.mxu0 0
        %1283 = vmatpush2.bf16.xpose.msra.mxu0 0
        %1284 = vmatprep.subr.bf16.mxu0 0
        %1285 = vmatpush2.bf16.xpose.msra.mxu0 0
        %1286 = vmatprep.subr.bf16.mxu0 0
        %1287 = vmatpush2.bf16.xpose.msra.mxu0 0
        %1288 = vmatprep.subr.bf16.mxu0 0
        %1289 = vmatpush2.bf16.xpose.msra.mxu0 0
        %1290 = vmatprep.subr.bf16.mxu0 0
        %1291 = vmatpush2.bf16.xpose.msra.mxu0 0
        %1292 = vmatprep.subr.bf16.mxu0 0
        %1293 = vmatpush2.bf16.xpose.msra.mxu0 0
        %1294 = vmatprep.subr.bf16.mxu0 0
        %1295 = vmatpush2.bf16.xpose.msra.mxu0 0
        %1296 = vmatprep.mubr.bf16.mxu0 0
        %1297 = vmatmul.mubr.bf16.gmra.mxu0 %v1259
        %v1298 = vpop.f32.mrf.mxu0
        %v1299 = vadd.f32 0.0, %v1298
        %v1300 = vpop.f32.mrf.mxu0
        %v1301 = vpop.f32.mrf.mxu0
        %v1302 = vadd.f32 0.0, %v1301
        %v1303 = vpop.f32.mrf.mxu0
        %1304 = vdwg.mxu0
        %v1305 = vmul.f32 %v1299, 0.25
        %v1306 = vmul.f32 %v1302, 0.25
        %v1307 = vsel %vm1056, %v1305, -1e+30
        %v1308 = vsel %vm1056, %v1306, -1e+30
        %v1309 = vsel %vm1005, %v1307, -inf
        %1310 = vmax.xlane.f32.xlu0 %v1309
        %v1311 = vpop.xlane.xlu0 %1310
        %v1312 = vsel %vm1005, %v1308, -inf
        %1313 = vmax.xlane.f32.xlu0 %v1312
        %v1314 = vpop.xlane.xlu0 %1313
        %v1315 = vsub.f32 %v1307, %v1311
        %v1316 = vsub.f32 %v1308, %v1314
        %v1317 = vmul.f32 %v1315, 1.442695
        %v1318 = vpow.pop %v1317
        %v1319 = vmul.f32 %v1316, 1.442695
        %v1320 = vpow.pop %v1319
        %v1321 = vsel %vm1005, %v1318, 0.0
        %1322 = vadd.xlane.f32.xlu0 %v1321
        %v1323 = vpop.xlane.xlu0 %1322
        %v1324 = vsel %vm1005, %v1320, 0.0
        %1325 = vadd.xlane.f32.xlu0 %v1324
        %v1326 = vpop.xlane.xlu0 %1325
        %v1327 = vrcp.pop %v1323
        %v1328 = vrcp.pop %v1326
        %v1329 = vmul.f32 %v1318, %v1327
        %v1330 = vmul.f32 %v1320, %v1328
        %v1331 = vpack.c.bf16 %v1330, %v1329
        %1332 = vrot.lane.b32.xlu0 %v1004, 96
        %v1333 = vpop.permute.xlu0 %1332
        %v1336 = vsel %vm1005, %v1331, 0
        %1338 = vmatprep.subr.bf16.mxu0 0
        %1339 = vmatpush1.bf16.msra.mxu0 0
        %1340 = vmatprep.subr.bf16.mxu0 0
        %1341 = vmatpush1.bf16.msra.mxu0 0
        %1342 = vmatprep.subr.bf16.mxu0 0
        %1343 = vmatpush1.bf16.msra.mxu0 0
        %1344 = vmatprep.subr.bf16.mxu0 0
        %1345 = vmatpush1.bf16.msra.mxu0 0
        %1346 = vmatprep.subr.bf16.mxu0 0
        %1347 = vmatpush1.bf16.msra.mxu0 0
        %1348 = vmatprep.subr.bf16.mxu0 0
        %1349 = vmatpush1.bf16.msra.mxu0 0
        %1350 = vmatprep.subr.bf16.mxu0 0
        %1351 = vmatpush1.bf16.msra.mxu0 0
        %1352 = vmatprep.subr.bf16.mxu0 0
        %1353 = vmatpush1.bf16.msra.mxu0 %v1333
        %1354 = vmatprep.subr.bf16.mxu0 0
        %1355 = vmatpush2.bf16.msra.mxu0 0
        %1356 = vmatprep.subr.bf16.mxu0 0
        %1357 = vmatpush2.bf16.msra.mxu0 0
        %1358 = vmatprep.subr.bf16.mxu0 0
        %1359 = vmatpush2.bf16.msra.mxu0 0
        %1360 = vmatprep.subr.bf16.mxu0 0
        %1361 = vmatpush2.bf16.msra.mxu0 0
        %1362 = vmatprep.subr.bf16.mxu0 0
        %1363 = vmatpush2.bf16.msra.mxu0 0
        %1364 = vmatprep.subr.bf16.mxu0 0
        %1365 = vmatpush2.bf16.msra.mxu0 0
        %1366 = vmatprep.subr.bf16.mxu0 0
        %1367 = vmatpush2.bf16.msra.mxu0 0
        %1368 = vmatprep.subr.bf16.mxu0 0
        %1369 = vmatpush2.bf16.msra.mxu0 0
        %1370 = vmatprep.mubr.bf16.mxu0 0
        %1371 = vmatmul.mubr.bf16.gmra.mxu0 %v1336
        %v1372 = vpop.f32.mrf.mxu0
        %v1373 = vadd.f32 0.0, %v1372
        %v1374 = vpop.f32.mrf.mxu0
        %v1375 = vpop.f32.mrf.mxu0
        %v1376 = vadd.f32 0.0, %v1375
        %v1377 = vpop.f32.mrf.mxu0
        %1378 = vdwg.mxu0
        %1379 = vrot.lane.b32.xlu0 %v1002, 80
        %v1380 = vpop.permute.xlu0 %1379
        %1381 = vrot.lane.b32.xlu0 %v1003, 80
        %v1382 = vpop.permute.xlu0 %1381
        %v1384 = vsel %vm1005, %v1380, 0
        %v1387 = vsel %vm1005, %v1382, 0
        %1389 = vmatprep.subr.bf16.mxu0 0
        %1390 = vmatpush1.bf16.xpose.msra.mxu0 0
        %1391 = vmatprep.subr.bf16.mxu0 0
        %1392 = vmatpush1.bf16.xpose.msra.mxu0 0
        %1393 = vmatprep.subr.bf16.mxu0 0
        %1394 = vmatpush1.bf16.xpose.msra.mxu0 0
        %1395 = vmatprep.subr.bf16.mxu0 0
        %1396 = vmatpush1.bf16.xpose.msra.mxu0 0
        %1397 = vmatprep.subr.bf16.mxu0 0
        %1398 = vmatpush1.bf16.xpose.msra.mxu0 0
        %1399 = vmatprep.subr.bf16.mxu0 0
        %1400 = vmatpush1.bf16.xpose.msra.mxu0 0
        %1401 = vmatprep.subr.bf16.mxu0 0
        %1402 = vmatpush1.bf16.xpose.msra.mxu0 0
        %1403 = vmatprep.subr.bf16.mxu0 0
        %1404 = vmatpush1.bf16.xpose.msra.mxu0 %v1387
        %1405 = vmatprep.subr.bf16.mxu0 0
        %1406 = vmatpush2.bf16.xpose.msra.mxu0 0
        %1407 = vmatprep.subr.bf16.mxu0 0
        %1408 = vmatpush2.bf16.xpose.msra.mxu0 0
        %1409 = vmatprep.subr.bf16.mxu0 0
        %1410 = vmatpush2.bf16.xpose.msra.mxu0 0
        %1411 = vmatprep.subr.bf16.mxu0 0
        %1412 = vmatpush2.bf16.xpose.msra.mxu0 0
        %1413 = vmatprep.subr.bf16.mxu0 0
        %1414 = vmatpush2.bf16.xpose.msra.mxu0 0
        %1415 = vmatprep.subr.bf16.mxu0 0
        %1416 = vmatpush2.bf16.xpose.msra.mxu0 0
        %1417 = vmatprep.subr.bf16.mxu0 0
        %1418 = vmatpush2.bf16.xpose.msra.mxu0 0
        %1419 = vmatprep.subr.bf16.mxu0 0
        %1420 = vmatpush2.bf16.xpose.msra.mxu0 0
        %1421 = vmatprep.mubr.bf16.mxu0 0
        %1422 = vmatmul.mubr.bf16.gmra.mxu0 %v1384
        %v1423 = vpop.f32.mrf.mxu0
        %v1424 = vadd.f32 0.0, %v1423
        %v1425 = vpop.f32.mrf.mxu0
        %v1426 = vpop.f32.mrf.mxu0
        %v1427 = vadd.f32 0.0, %v1426
        %v1428 = vpop.f32.mrf.mxu0
        %1429 = vdwg.mxu0
        %v1430 = vmul.f32 %v1424, 0.25
        %v1431 = vmul.f32 %v1427, 0.25
        %v1432 = vsel %vm1056, %v1430, -1e+30
        %v1433 = vsel %vm1056, %v1431, -1e+30
        %v1434 = vsel %vm1005, %v1432, -inf
        %1435 = vmax.xlane.f32.xlu0 %v1434
        %v1436 = vpop.xlane.xlu0 %1435
        %v1437 = vsel %vm1005, %v1433, -inf
        %1438 = vmax.xlane.f32.xlu0 %v1437
        %v1439 = vpop.xlane.xlu0 %1438
        %v1440 = vsub.f32 %v1432, %v1436
        %v1441 = vsub.f32 %v1433, %v1439
        %v1442 = vmul.f32 %v1440, 1.442695
        %v1443 = vpow.pop %v1442
        %v1444 = vmul.f32 %v1441, 1.442695
        %v1445 = vpow.pop %v1444
        %v1446 = vsel %vm1005, %v1443, 0.0
        %1447 = vadd.xlane.f32.xlu0 %v1446
        %v1448 = vpop.xlane.xlu0 %1447
        %v1449 = vsel %vm1005, %v1445, 0.0
        %1450 = vadd.xlane.f32.xlu0 %v1449
        %v1451 = vpop.xlane.xlu0 %1450
        %v1452 = vrcp.pop %v1448
        %v1453 = vrcp.pop %v1451
        %v1454 = vmul.f32 %v1443, %v1452
        %v1455 = vmul.f32 %v1445, %v1453
        %v1456 = vpack.c.bf16 %v1455, %v1454
        %1457 = vrot.lane.b32.xlu0 %v1004, 80
        %v1458 = vpop.permute.xlu0 %1457
        %v1461 = vsel %vm1005, %v1456, 0
        %1463 = vmatprep.subr.bf16.mxu0 0
        %1464 = vmatpush1.bf16.msra.mxu0 0
        %1465 = vmatprep.subr.bf16.mxu0 0
        %1466 = vmatpush1.bf16.msra.mxu0 0
        %1467 = vmatprep.subr.bf16.mxu0 0
        %1468 = vmatpush1.bf16.msra.mxu0 0
        %1469 = vmatprep.subr.bf16.mxu0 0
        %1470 = vmatpush1.bf16.msra.mxu0 0
        %1471 = vmatprep.subr.bf16.mxu0 0
        %1472 = vmatpush1.bf16.msra.mxu0 0
        %1473 = vmatprep.subr.bf16.mxu0 0
        %1474 = vmatpush1.bf16.msra.mxu0 0
        %1475 = vmatprep.subr.bf16.mxu0 0
        %1476 = vmatpush1.bf16.msra.mxu0 0
        %1477 = vmatprep.subr.bf16.mxu0 0
        %1478 = vmatpush1.bf16.msra.mxu0 %v1458
        %1479 = vmatprep.subr.bf16.mxu0 0
        %1480 = vmatpush2.bf16.msra.mxu0 0
        %1481 = vmatprep.subr.bf16.mxu0 0
        %1482 = vmatpush2.bf16.msra.mxu0 0
        %1483 = vmatprep.subr.bf16.mxu0 0
        %1484 = vmatpush2.bf16.msra.mxu0 0
        %1485 = vmatprep.subr.bf16.mxu0 0
        %1486 = vmatpush2.bf16.msra.mxu0 0
        %1487 = vmatprep.subr.bf16.mxu0 0
        %1488 = vmatpush2.bf16.msra.mxu0 0
        %1489 = vmatprep.subr.bf16.mxu0 0
        %1490 = vmatpush2.bf16.msra.mxu0 0
        %1491 = vmatprep.subr.bf16.mxu0 0
        %1492 = vmatpush2.bf16.msra.mxu0 0
        %1493 = vmatprep.subr.bf16.mxu0 0
        %1494 = vmatpush2.bf16.msra.mxu0 0
        %1495 = vmatprep.mubr.bf16.mxu0 0
        %1496 = vmatmul.mubr.bf16.gmra.mxu0 %v1461
        %v1497 = vpop.f32.mrf.mxu0
        %v1498 = vadd.f32 0.0, %v1497
        %v1499 = vpop.f32.mrf.mxu0
        %v1500 = vpop.f32.mrf.mxu0
        %v1501 = vadd.f32 0.0, %v1500
        %v1502 = vpop.f32.mrf.mxu0
        %1503 = vdwg.mxu0
        %1506 = vrot.lane.b32.xlu0 %v1248, 16
        %v1507 = vpop.permute.xlu0 %1506
        %1508 = vrot.lane.b32.xlu0 %v1251, 16
        %v1509 = vpop.permute.xlu0 %1508
        %1514 = vrot.lane.b32.xlu0 %v1373, 32
        %v1515 = vpop.permute.xlu0 %1514
        %1516 = vrot.lane.b32.xlu0 %v1376, 32
        %v1517 = vpop.permute.xlu0 %1516
        %1522 = vrot.lane.b32.xlu0 %v1498, 48
        %v1523 = vpop.permute.xlu0 %1522
        %1524 = vrot.lane.b32.xlu0 %v1501, 48
        %v1525 = vpop.permute.xlu0 %1524
        %v1528 = vsel %vm1005, %v1120, %v1507
        %v1529 = vsel %vm1005, %v1123, %v1509
        %vm1530 = vcmask 261120
        %v1531 = vsel %vm1530, %v1528, %v1515
        %v1532 = vsel %vm1530, %v1529, %v1517
        %vm1533 = vcmask 392192
        %v1534 = vsel %vm1533, %v1531, %v1523
        %v1535 = vsel %vm1533, %v1532, %v1525
        %v1536 = vpack.c.bf16 %v1535, %v1534
        %v1537 = vld [vmem:[%s9] sm:$0xf]
        %v1538 = vld [vmem:[%s9 + $0x4] sm:$0xf]
        %v1539 = vld [vmem:[%s9 + $0x8] sm:$0xf]
        %v1540 = vld [vmem:[%s9 + $0xc] sm:$0xf]
        %v1541 = vld [vmem:[%s9 + $0x10] sm:$0xf]
        %v1542 = vld [vmem:[%s9 + $0x14] sm:$0xf]
        %v1543 = vld [vmem:[%s9 + $0x18] sm:$0xf]
        %v1544 = vld [vmem:[%s9 + $0x1c] sm:$0xf]
        %v1553 = vunpack.c.l.b16 %v1537
        %v1554 = vunpack.c.l.b16 %v1538
        %v1555 = vunpack.c.l.b16 %v1539
        %v1556 = vunpack.c.l.b16 %v1540
        %v1557 = vunpack.c.l.b16 %v1541
        %v1558 = vunpack.c.l.b16 %v1542
        %v1559 = vunpack.c.l.b16 %v1543
        %v1560 = vunpack.c.l.b16 %v1544
        %v1561 = vpack.c.b16 %v1554, %v1553
        %v1562 = vpack.c.b16 %v1556, %v1555
        %v1563 = vpack.c.b16 %v1558, %v1557
        %v1564 = vpack.c.b16 %v1560, %v1559
        %v1570 = vsel %vm714, %v1536, 0
        %1572 = vmatprep.subr.bf16.mxu0 0
        %1573 = vmatpush1.bf16.msra.mxu0 0
        %1574 = vmatprep.subr.bf16.mxu0 0
        %1575 = vmatpush1.bf16.msra.mxu0 0
        %1576 = vmatprep.subr.bf16.mxu0 0
        %1577 = vmatpush1.bf16.msra.mxu0 0
        %1578 = vmatprep.subr.bf16.mxu0 0
        %1579 = vmatpush1.bf16.msra.mxu0 0
        %1580 = vmatprep.subr.bf16.mxu0 0
        %1581 = vmatpush1.bf16.msra.mxu0 %v1564
        %1582 = vmatprep.subr.bf16.mxu0 0
        %1583 = vmatpush1.bf16.msra.mxu0 %v1563
        %1584 = vmatprep.subr.bf16.mxu0 0
        %1585 = vmatpush1.bf16.msra.mxu0 %v1562
        %1586 = vmatprep.subr.bf16.mxu0 0
        %1587 = vmatpush1.bf16.msra.mxu0 %v1561
        %1588 = vmatprep.subr.bf16.mxu0 0
        %1589 = vmatpush2.bf16.msra.mxu0 0
        %1590 = vmatprep.subr.bf16.mxu0 0
        %1591 = vmatpush2.bf16.msra.mxu0 0
        %1592 = vmatprep.subr.bf16.mxu0 0
        %1593 = vmatpush2.bf16.msra.mxu0 0
        %1594 = vmatprep.subr.bf16.mxu0 0
        %1595 = vmatpush2.bf16.msra.mxu0 0
        %1596 = vmatprep.subr.bf16.mxu0 0
        %1597 = vmatpush2.bf16.msra.mxu0 0
        %1598 = vmatprep.subr.bf16.mxu0 0
        %1599 = vmatpush2.bf16.msra.mxu0 0
        %1600 = vmatprep.subr.bf16.mxu0 0
        %1601 = vmatpush2.bf16.msra.mxu0 0
        %1602 = vmatprep.subr.bf16.mxu0 0
        %1603 = vmatpush2.bf16.msra.mxu0 0
        %1604 = vmatprep.mubr.bf16.mxu0 0
        %1605 = vmatmul.mubr.bf16.gmra.mxu0 %v1570
        %v1606 = vpop.f32.mrf.mxu0
        %v1607 = vadd.f32 0.0, %v1606
        %v1608 = vpop.f32.mrf.mxu0
        %v1609 = vpop.f32.mrf.mxu0
        %v1610 = vadd.f32 0.0, %v1609
        %v1611 = vpop.f32.mrf.mxu0
        %1612 = vdwg.mxu0
        %v1613 = vadd.f32 %v710, %v1607
        %v1614 = vadd.f32 %v711, %v1610
        %v1615 = vld [vmem:[%s10] sm:$0x1]
        %v1617 = vlaneseq
        %v1618 = vshrl.u32 %v1617, 7
        %v1619 = vsub.s32 0, %v1618
        %v1620 = vrot.slane %v1615, %v1619
        %v1622 = vadd.f32 %v1613, %v1620
        %v1623 = vadd.f32 %v1614, %v1620
        %v1624 = vld [vmem:[%s11] sm:$0x1]
        %v1625 = vld [vmem:[%s12] sm:$0x1]
        %v1626 = vsel %vm714, %v1622, 0.0
        %1627 = vadd.xlane.f32.xlu0 %v1626
        %v1628 = vpop.xlane.xlu0 %1627
        %v1629 = vsel %vm714, %v1623, 0.0
        %1630 = vadd.xlane.f32.xlu0 %v1629
        %v1631 = vpop.xlane.xlu0 %1630
        %v1632 = vmul.f32 %v1628, %v721
        %v1633 = vmul.f32 %v1631, %v721
        %v1634 = vsub.f32 %v1622, %v1632
        %v1635 = vsub.f32 %v1623, %v1633
        %v1636 = vmul.f32 %v1634, %v1634
        %v1637 = vmul.f32 %v1635, %v1635
        %v1638 = vsel %vm714, %v1636, 0.0
        %1639 = vadd.xlane.f32.xlu0 %v1638
        %v1640 = vpop.xlane.xlu0 %1639
        %v1641 = vsel %vm714, %v1637, 0.0
        %1642 = vadd.xlane.f32.xlu0 %v1641
        %v1643 = vpop.xlane.xlu0 %1642
        %v1644 = vmul.f32 %v1640, %v721
        %v1645 = vmul.f32 %v1643, %v721
        %v1646 = vadd.f32 %v1644, 1e-05
        %v1647 = vadd.f32 %v1645, 1e-05
        %v1648 = vrsqrt.pop %v1646
        %v1649 = vrsqrt.pop %v1647
        %v1650 = vmul.f32 %v1634, %v1648
        %v1651 = vmul.f32 %v1635, %v1649
        %v1653 = vlaneseq
        %v1654 = vshrl.u32 %v1653, 7
        %v1655 = vsub.s32 0, %v1654
        %v1656 = vrot.slane %v1624, %v1655
        %v1658 = vmul.f32 %v1650, %v1656
        %v1659 = vmul.f32 %v1651, %v1656
        %v1661 = vlaneseq
        %v1662 = vshrl.u32 %v1661, 7
        %v1663 = vsub.s32 0, %v1662
        %v1664 = vrot.slane %v1625, %v1663
        %v1666 = vadd.f32 %v1658, %v1664
        %v1667 = vadd.f32 %v1659, %v1664
        %v1668 = vpack.c.bf16 %v1667, %v1666
        %v1669 = vld [vmem:[%s13] sm:$0xff]
        %v1670 = vld [vmem:[%s13 + $0x8] sm:$0xff]
        %v1671 = vld [vmem:[%s13 + $0x10] sm:$0xff]
        %v1672 = vld [vmem:[%s13 + $0x18] sm:$0xff]
        %v1673 = vld [vmem:[%s13 + $0x20] sm:$0xff]
        %v1674 = vld [vmem:[%s13 + $0x28] sm:$0xff]
        %v1675 = vld [vmem:[%s13 + $0x30] sm:$0xff]
        %v1676 = vld [vmem:[%s13 + $0x38] sm:$0xff]
        %v1677 = vld [vmem:[%s14] sm:$0x3]
        %v1679 = vlaneseq
        %v1680 = vshrl.u32 %v1679, 7
        %v1681 = vsub.s32 0, %v1680
        %v1682 = vrot.slane %v1677, %v1681
        %v1683 = vlaneseq
        %v1684 = vshrl.u32 %v1683, 7
        %v1685 = vsub.s32 1, %v1684
        %v1686 = vrot.slane %v1677, %v1685
        %v1697 = vunpack.c.l.b16 %v1669
        %v1698 = vunpack.c.h.b16 %v1669
        %v1699 = vunpack.c.l.b16 %v1670
        %v1700 = vunpack.c.h.b16 %v1670
        %v1701 = vunpack.c.l.b16 %v1671
        %v1702 = vunpack.c.h.b16 %v1671
        %v1703 = vunpack.c.l.b16 %v1672
        %v1704 = vunpack.c.h.b16 %v1672
        %v1705 = vunpack.c.l.b16 %v1673
        %v1706 = vunpack.c.h.b16 %v1673
        %v1707 = vunpack.c.l.b16 %v1674
        %v1708 = vunpack.c.h.b16 %v1674
        %v1709 = vunpack.c.l.b16 %v1675
        %v1710 = vunpack.c.h.b16 %v1675
        %v1711 = vunpack.c.l.b16 %v1676
        %v1712 = vunpack.c.h.b16 %v1676
        %v1713 = vpack.c.b16 %v1699, %v1697
        %v1714 = vpack.c.b16 %v1700, %v1698
        %v1715 = vpack.c.b16 %v1703, %v1701
        %v1716 = vpack.c.b16 %v1704, %v1702
        %v1717 = vpack.c.b16 %v1707, %v1705
        %v1718 = vpack.c.b16 %v1708, %v1706
        %v1719 = vpack.c.b16 %v1711, %v1709
        %v1720 = vpack.c.b16 %v1712, %v1710
        %v1730 = vsel %vm714, %v1668, 0
        %1732 = vmatprep.subr.bf16.mxu0 0
        %1733 = vmatpush1.bf16.msra.mxu0 0
        %1734 = vmatprep.subr.bf16.mxu0 0
        %1735 = vmatpush1.bf16.msra.mxu0 0
        %1736 = vmatprep.subr.bf16.mxu0 0
        %1737 = vmatpush1.bf16.msra.mxu0 0
        %1738 = vmatprep.subr.bf16.mxu0 0
        %1739 = vmatpush1.bf16.msra.mxu0 0
        %1740 = vmatprep.subr.bf16.mxu0 %v1720
        %1741 = vmatpush1.bf16.msra.mxu0 %v1719
        %1742 = vmatprep.subr.bf16.mxu0 %v1718
        %1743 = vmatpush1.bf16.msra.mxu0 %v1717
        %1744 = vmatprep.subr.bf16.mxu0 %v1716
        %1745 = vmatpush1.bf16.msra.mxu0 %v1715
        %1746 = vmatprep.subr.bf16.mxu0 %v1714
        %1747 = vmatpush1.bf16.msra.mxu0 %v1713
        %1748 = vmatprep.subr.bf16.mxu0 0
        %1749 = vmatpush2.bf16.msra.mxu0 0
        %1750 = vmatprep.subr.bf16.mxu0 0
        %1751 = vmatpush2.bf16.msra.mxu0 0
        %1752 = vmatprep.subr.bf16.mxu0 0
        %1753 = vmatpush2.bf16.msra.mxu0 0
        %1754 = vmatprep.subr.bf16.mxu0 0
        %1755 = vmatpush2.bf16.msra.mxu0 0
        %1756 = vmatprep.subr.bf16.mxu0 0
        %1757 = vmatpush2.bf16.msra.mxu0 0
        %1758 = vmatprep.subr.bf16.mxu0 0
        %1759 = vmatpush2.bf16.msra.mxu0 0
        %1760 = vmatprep.subr.bf16.mxu0 0
        %1761 = vmatpush2.bf16.msra.mxu0 0
        %1762 = vmatprep.subr.bf16.mxu0 0
        %1763 = vmatpush2.bf16.msra.mxu0 0
        %1764 = vmatprep.mubr.bf16.mxu0 0
        %1765 = vmatmul.mubr.bf16.gmra.mxu0 %v1730
        %v1766 = vpop.f32.mrf.mxu0
        %v1767 = vadd.f32 %v1682, %v1766
        %v1768 = vpop.f32.mrf.mxu0
        %v1769 = vadd.f32 %v1686, %v1768
        %v1770 = vpop.f32.mrf.mxu0
        %v1771 = vadd.f32 %v1682, %v1770
        %v1772 = vpop.f32.mrf.mxu0
        %v1773 = vadd.f32 %v1686, %v1772
        %1774 = vdwg.mxu0
        %v1775 = vmul.f32 %v1767, %v1767
        %v1776 = vmul.f32 %v1769, %v1769
        %v1777 = vmul.f32 %v1771, %v1771
        %v1778 = vmul.f32 %v1773, %v1773
        %v1779 = vmul.f32 %v1767, %v1775
        %v1780 = vmul.f32 %v1769, %v1776
        %v1781 = vmul.f32 %v1771, %v1777
        %v1782 = vmul.f32 %v1773, %v1778
        %v1783 = vmul.f32 %v1779, 0.044715
        %v1784 = vmul.f32 %v1780, 0.044715
        %v1785 = vmul.f32 %v1781, 0.044715
        %v1786 = vmul.f32 %v1782, 0.044715
        %v1787 = vadd.f32 %v1767, %v1783
        %v1788 = vadd.f32 %v1769, %v1784
        %v1789 = vadd.f32 %v1771, %v1785
        %v1790 = vadd.f32 %v1773, %v1786
        %v1791 = vmul.f32 %v1787, 0.7978846
        %v1792 = vmul.f32 %v1788, 0.7978846
        %v1793 = vmul.f32 %v1789, 0.7978846
        %v1794 = vmul.f32 %v1790, 0.7978846
        %v1795 = vtanh.pop %v1791
        %v1796 = vtanh.pop %v1792
        %v1797 = vtanh.pop %v1793
        %v1798 = vtanh.pop %v1794
        %v1799 = vadd.f32 %v1795, 1.0
        %v1800 = vadd.f32 %v1796, 1.0
        %v1801 = vadd.f32 %v1797, 1.0
        %v1802 = vadd.f32 %v1798, 1.0
        %v1803 = vmul.f32 %v1799, 0.5
        %v1804 = vmul.f32 %v1800, 0.5
        %v1805 = vmul.f32 %v1801, 0.5
        %v1806 = vmul.f32 %v1802, 0.5
        %v1807 = vmul.f32 %v1767, %v1803
        %v1808 = vmul.f32 %v1769, %v1804
        %v1809 = vmul.f32 %v1771, %v1805
        %v1810 = vmul.f32 %v1773, %v1806
        %v1811 = vpack.c.bf16 %v1809, %v1807
        %v1812 = vpack.c.bf16 %v1810, %v1808
        %v1813 = vld [vmem:[%s15] sm:$0xf]
        %v1814 = vld [vmem:[%s15 + $0x4] sm:$0xf]
        %v1815 = vld [vmem:[%s15 + $0x8] sm:$0xf]
        %v1816 = vld [vmem:[%s15 + $0xc] sm:$0xf]
        %v1817 = vld [vmem:[%s15 + $0x10] sm:$0xf]
        %v1818 = vld [vmem:[%s15 + $0x14] sm:$0xf]
        %v1819 = vld [vmem:[%s15 + $0x18] sm:$0xf]
        %v1820 = vld [vmem:[%s15 + $0x1c] sm:$0xf]
        %v1821 = vld [vmem:[%s15 + $0x20] sm:$0xf]
        %v1822 = vld [vmem:[%s15 + $0x24] sm:$0xf]
        %v1823 = vld [vmem:[%s15 + $0x28] sm:$0xf]
        %v1824 = vld [vmem:[%s15 + $0x2c] sm:$0xf]
        %v1825 = vld [vmem:[%s15 + $0x30] sm:$0xf]
        %v1826 = vld [vmem:[%s15 + $0x34] sm:$0xf]
        %v1827 = vld [vmem:[%s15 + $0x38] sm:$0xf]
        %v1828 = vld [vmem:[%s15 + $0x3c] sm:$0xf]
        %v1829 = vld [vmem:[%s15 + $0x40] sm:$0xf]
        %v1830 = vld [vmem:[%s15 + $0x44] sm:$0xf]
        %v1831 = vld [vmem:[%s15 + $0x48] sm:$0xf]
        %v1832 = vld [vmem:[%s15 + $0x4c] sm:$0xf]
        %v1833 = vld [vmem:[%s15 + $0x50] sm:$0xf]
        %v1834 = vld [vmem:[%s15 + $0x54] sm:$0xf]
        %v1835 = vld [vmem:[%s15 + $0x58] sm:$0xf]
        %v1836 = vld [vmem:[%s15 + $0x5c] sm:$0xf]
        %v1837 = vld [vmem:[%s15 + $0x60] sm:$0xf]
        %v1838 = vld [vmem:[%s15 + $0x64] sm:$0xf]
        %v1839 = vld [vmem:[%s15 + $0x68] sm:$0xf]
        %v1840 = vld [vmem:[%s15 + $0x6c] sm:$0xf]
        %v1841 = vld [vmem:[%s15 + $0x70] sm:$0xf]
        %v1842 = vld [vmem:[%s15 + $0x74] sm:$0xf]
        %v1843 = vld [vmem:[%s15 + $0x78] sm:$0xf]
        %v1844 = vld [vmem:[%s15 + $0x7c] sm:$0xf]
        %v1877 = vunpack.c.l.b16 %v1813
        %v1878 = vunpack.c.l.b16 %v1814
        %v1879 = vunpack.c.l.b16 %v1815
        %v1880 = vunpack.c.l.b16 %v1816
        %v1881 = vunpack.c.l.b16 %v1817
        %v1882 = vunpack.c.l.b16 %v1818
        %v1883 = vunpack.c.l.b16 %v1819
        %v1884 = vunpack.c.l.b16 %v1820
        %v1885 = vunpack.c.l.b16 %v1821
        %v1886 = vunpack.c.l.b16 %v1822
        %v1887 = vunpack.c.l.b16 %v1823
        %v1888 = vunpack.c.l.b16 %v1824
        %v1889 = vunpack.c.l.b16 %v1825
        %v1890 = vunpack.c.l.b16 %v1826
        %v1891 = vunpack.c.l.b16 %v1827
        %v1892 = vunpack.c.l.b16 %v1828
        %v1893 = vunpack.c.l.b16 %v1829
        %v1894 = vunpack.c.l.b16 %v1830
        %v1895 = vunpack.c.l.b16 %v1831
        %v1896 = vunpack.c.l.b16 %v1832
        %v1897 = vunpack.c.l.b16 %v1833
        %v1898 = vunpack.c.l.b16 %v1834
        %v1899 = vunpack.c.l.b16 %v1835
        %v1900 = vunpack.c.l.b16 %v1836
        %v1901 = vunpack.c.l.b16 %v1837
        %v1902 = vunpack.c.l.b16 %v1838
        %v1903 = vunpack.c.l.b16 %v1839
        %v1904 = vunpack.c.l.b16 %v1840
        %v1905 = vunpack.c.l.b16 %v1841
        %v1906 = vunpack.c.l.b16 %v1842
        %v1907 = vunpack.c.l.b16 %v1843
        %v1908 = vunpack.c.l.b16 %v1844
        %v1909 = vpack.c.b16 %v1878, %v1877
        %v1910 = vpack.c.b16 %v1880, %v1879
        %v1911 = vpack.c.b16 %v1882, %v1881
        %v1912 = vpack.c.b16 %v1884, %v1883
        %v1913 = vpack.c.b16 %v1886, %v1885
        %v1914 = vpack.c.b16 %v1888, %v1887
        %v1915 = vpack.c.b16 %v1890, %v1889
        %v1916 = vpack.c.b16 %v1892, %v1891
        %v1917 = vpack.c.b16 %v1894, %v1893
        %v1918 = vpack.c.b16 %v1896, %v1895
        %v1919 = vpack.c.b16 %v1898, %v1897
        %v1920 = vpack.c.b16 %v1900, %v1899
        %v1921 = vpack.c.b16 %v1902, %v1901
        %v1922 = vpack.c.b16 %v1904, %v1903
        %v1923 = vpack.c.b16 %v1906, %v1905
        %v1924 = vpack.c.b16 %v1908, %v1907
        %1941 = vmatprep.subr.bf16.mxu0 0
        %1942 = vmatpush1.bf16.msra.mxu0 %v1916
        %1943 = vmatprep.subr.bf16.mxu0 0
        %1944 = vmatpush1.bf16.msra.mxu0 %v1915
        %1945 = vmatprep.subr.bf16.mxu0 0
        %1946 = vmatpush1.bf16.msra.mxu0 %v1914
        %1947 = vmatprep.subr.bf16.mxu0 0
        %1948 = vmatpush1.bf16.msra.mxu0 %v1913
        %1949 = vmatprep.subr.bf16.mxu0 0
        %1950 = vmatpush1.bf16.msra.mxu0 %v1912
        %1951 = vmatprep.subr.bf16.mxu0 0
        %1952 = vmatpush1.bf16.msra.mxu0 %v1911
        %1953 = vmatprep.subr.bf16.mxu0 0
        %1954 = vmatpush1.bf16.msra.mxu0 %v1910
        %1955 = vmatprep.subr.bf16.mxu0 0
        %1956 = vmatpush1.bf16.msra.mxu0 %v1909
        %1957 = vmatprep.subr.bf16.mxu0 0
        %1958 = vmatpush2.bf16.msra.mxu0 %v1924
        %1959 = vmatprep.subr.bf16.mxu0 0
        %1960 = vmatpush2.bf16.msra.mxu0 %v1923
        %1961 = vmatprep.subr.bf16.mxu0 0
        %1962 = vmatpush2.bf16.msra.mxu0 %v1922
        %1963 = vmatprep.subr.bf16.mxu0 0
        %1964 = vmatpush2.bf16.msra.mxu0 %v1921
        %1965 = vmatprep.subr.bf16.mxu0 0
        %1966 = vmatpush2.bf16.msra.mxu0 %v1920
        %1967 = vmatprep.subr.bf16.mxu0 0
        %1968 = vmatpush2.bf16.msra.mxu0 %v1919
        %1969 = vmatprep.subr.bf16.mxu0 0
        %1970 = vmatpush2.bf16.msra.mxu0 %v1918
        %1971 = vmatprep.subr.bf16.mxu0 0
        %1972 = vmatpush2.bf16.msra.mxu0 %v1917
        %1973 = vmatprep.mubr.bf16.mxu0 %v1812
        %1974 = vmatmul.mubr.bf16.gmra.mxu0 %v1811
        %v1975 = vpop.f32.mrf.mxu0
        %v1976 = vadd.f32 0.0, %v1975
        %v1977 = vpop.f32.mrf.mxu0
        %v1978 = vpop.f32.mrf.mxu0
        %v1979 = vadd.f32 0.0, %v1978
        %v1980 = vpop.f32.mrf.mxu0
        %1981 = vdwg.mxu0
        %v1982 = vadd.f32 %v1622, %v1976
        %v1983 = vadd.f32 %v1623, %v1979
        %v1984 = vld [vmem:[%s16] sm:$0x1]
        %v1986 = vlaneseq
        %v1987 = vshrl.u32 %v1986, 7
        %v1988 = vsub.s32 0, %v1987
        %v1989 = vrot.slane %v1984, %v1988
        %v1991 = vadd.f32 %v1982, %v1989
        %v1992 = vadd.f32 %v1983, %v1989
        %s1993 = scalar_lea.vmem [#allocation5], 1
        %v1994 = vld [vmem:[%s1993] sm:$0x1]
        %s1995 = scalar_lea.vmem [#allocation7], 1
        %v1996 = vld [vmem:[%s1995] sm:$0x1]
        %v1997 = vsel %vm714, %v1991, 0.0
        %1998 = vadd.xlane.f32.xlu0 %v1997
        %v1999 = vpop.xlane.xlu0 %1998
        %v2000 = vsel %vm714, %v1992, 0.0
        %2001 = vadd.xlane.f32.xlu0 %v2000
        %v2002 = vpop.xlane.xlu0 %2001
        %v2003 = vmul.f32 %v1999, %v721
        %v2004 = vmul.f32 %v2002, %v721
        %v2005 = vsub.f32 %v1991, %v2003
        %v2006 = vsub.f32 %v1992, %v2004
        %v2007 = vmul.f32 %v2005, %v2005
        %v2008 = vmul.f32 %v2006, %v2006
        %v2009 = vsel %vm714, %v2007, 0.0
        %2010 = vadd.xlane.f32.xlu0 %v2009
        %v2011 = vpop.xlane.xlu0 %2010
        %v2012 = vsel %vm714, %v2008, 0.0
        %2013 = vadd.xlane.f32.xlu0 %v2012
        %v2014 = vpop.xlane.xlu0 %2013
        %v2015 = vmul.f32 %v2011, %v721
        %v2016 = vmul.f32 %v2014, %v721
        %v2017 = vadd.f32 %v2015, 1e-05
        %v2018 = vadd.f32 %v2016, 1e-05
        %v2019 = vrsqrt.pop %v2017
        %v2020 = vrsqrt.pop %v2018
        %v2021 = vmul.f32 %v2005, %v2019
        %v2022 = vmul.f32 %v2006, %v2020
        %v2024 = vlaneseq
        %v2025 = vshrl.u32 %v2024, 7
        %v2026 = vsub.s32 0, %v2025
        %v2027 = vrot.slane %v1994, %v2026
        %v2029 = vmul.f32 %v2021, %v2027
        %v2030 = vmul.f32 %v2022, %v2027
        %v2032 = vlaneseq
        %v2033 = vshrl.u32 %v2032, 7
        %v2034 = vsub.s32 0, %v2033
        %v2035 = vrot.slane %v1996, %v2034
        %v2037 = vadd.f32 %v2029, %v2035
        %v2038 = vadd.f32 %v2030, %v2035
        %v2039 = vpack.c.bf16 %v2038, %v2037
        %s2040 = scalar_lea.vmem %s3, 32
        %v2041 = vld [vmem:[%s2040] sm:$0xf]
        %v2042 = vld [vmem:[%s2040 + $0x4] sm:$0xf]
        %v2043 = vld [vmem:[%s2040 + $0x8] sm:$0xf]
        %v2044 = vld [vmem:[%s2040 + $0xc] sm:$0xf]
        %v2045 = vld [vmem:[%s2040 + $0x10] sm:$0xf]
        %v2046 = vld [vmem:[%s2040 + $0x14] sm:$0xf]
        %v2047 = vld [vmem:[%s2040 + $0x18] sm:$0xf]
        %v2048 = vld [vmem:[%s2040 + $0x1c] sm:$0xf]
        %s2049 = scalar_lea.vmem %s6, 1
        %v2050 = vld [vmem:[%s2049] sm:$0x1]
        %v2052 = vlaneseq
        %v2053 = vshrl.u32 %v2052, 7
        %v2054 = vsub.s32 0, %v2053
        %v2055 = vrot.slane %v2050, %v2054
        %v2065 = vunpack.c.l.b16 %v2041
        %v2066 = vunpack.c.l.b16 %v2042
        %v2067 = vunpack.c.l.b16 %v2043
        %v2068 = vunpack.c.l.b16 %v2044
        %v2069 = vunpack.c.l.b16 %v2045
        %v2070 = vunpack.c.l.b16 %v2046
        %v2071 = vunpack.c.l.b16 %v2047
        %v2072 = vunpack.c.l.b16 %v2048
        %v2073 = vpack.c.b16 %v2066, %v2065
        %v2074 = vpack.c.b16 %v2068, %v2067
        %v2075 = vpack.c.b16 %v2070, %v2069
        %v2076 = vpack.c.b16 %v2072, %v2071
        %v2082 = vsel %vm714, %v2039, 0
        %2084 = vmatprep.subr.bf16.mxu0 0
        %2085 = vmatpush1.bf16.msra.mxu0 0
        %2086 = vmatprep.subr.bf16.mxu0 0
        %2087 = vmatpush1.bf16.msra.mxu0 0
        %2088 = vmatprep.subr.bf16.mxu0 0
        %2089 = vmatpush1.bf16.msra.mxu0 0
        %2090 = vmatprep.subr.bf16.mxu0 0
        %2091 = vmatpush1.bf16.msra.mxu0 0
        %2092 = vmatprep.subr.bf16.mxu0 0
        %2093 = vmatpush1.bf16.msra.mxu0 %v2076
        %2094 = vmatprep.subr.bf16.mxu0 0
        %2095 = vmatpush1.bf16.msra.mxu0 %v2075
        %2096 = vmatprep.subr.bf16.mxu0 0
        %2097 = vmatpush1.bf16.msra.mxu0 %v2074
        %2098 = vmatprep.subr.bf16.mxu0 0
        %2099 = vmatpush1.bf16.msra.mxu0 %v2073
        %2100 = vmatprep.subr.bf16.mxu0 0
        %2101 = vmatpush2.bf16.msra.mxu0 0
        %2102 = vmatprep.subr.bf16.mxu0 0
        %2103 = vmatpush2.bf16.msra.mxu0 0
        %2104 = vmatprep.subr.bf16.mxu0 0
        %2105 = vmatpush2.bf16.msra.mxu0 0
        %2106 = vmatprep.subr.bf16.mxu0 0
        %2107 = vmatpush2.bf16.msra.mxu0 0
        %2108 = vmatprep.subr.bf16.mxu0 0
        %2109 = vmatpush2.bf16.msra.mxu0 0
        %2110 = vmatprep.subr.bf16.mxu0 0
        %2111 = vmatpush2.bf16.msra.mxu0 0
        %2112 = vmatprep.subr.bf16.mxu0 0
        %2113 = vmatpush2.bf16.msra.mxu0 0
        %2114 = vmatprep.subr.bf16.mxu0 0
        %2115 = vmatpush2.bf16.msra.mxu0 0
        %2116 = vmatprep.mubr.bf16.mxu0 0
        %2117 = vmatmul.mubr.bf16.gmra.mxu0 %v2082
        %v2118 = vpop.f32.mrf.mxu0
        %v2119 = vadd.f32 %v2055, %v2118
        %v2120 = vpop.f32.mrf.mxu0
        %v2121 = vpop.f32.mrf.mxu0
        %v2122 = vadd.f32 %v2055, %v2121
        %v2123 = vpop.f32.mrf.mxu0
        %2124 = vdwg.mxu0
        %s2125 = scalar_lea.vmem %s4, 32
        %v2126 = vld [vmem:[%s2125] sm:$0xf]
        %v2127 = vld [vmem:[%s2125 + $0x4] sm:$0xf]
        %v2128 = vld [vmem:[%s2125 + $0x8] sm:$0xf]
        %v2129 = vld [vmem:[%s2125 + $0xc] sm:$0xf]
        %v2130 = vld [vmem:[%s2125 + $0x10] sm:$0xf]
        %v2131 = vld [vmem:[%s2125 + $0x14] sm:$0xf]
        %v2132 = vld [vmem:[%s2125 + $0x18] sm:$0xf]
        %v2133 = vld [vmem:[%s2125 + $0x1c] sm:$0xf]
        %s2134 = scalar_lea.vmem %s7, 1
        %v2135 = vld [vmem:[%s2134] sm:$0x1]
        %v2137 = vlaneseq
        %v2138 = vshrl.u32 %v2137, 7
        %v2139 = vsub.s32 0, %v2138
        %v2140 = vrot.slane %v2135, %v2139
        %v2150 = vunpack.c.l.b16 %v2126
        %v2151 = vunpack.c.l.b16 %v2127
        %v2152 = vunpack.c.l.b16 %v2128
        %v2153 = vunpack.c.l.b16 %v2129
        %v2154 = vunpack.c.l.b16 %v2130
        %v2155 = vunpack.c.l.b16 %v2131
        %v2156 = vunpack.c.l.b16 %v2132
        %v2157 = vunpack.c.l.b16 %v2133
        %v2158 = vpack.c.b16 %v2151, %v2150
        %v2159 = vpack.c.b16 %v2153, %v2152
        %v2160 = vpack.c.b16 %v2155, %v2154
        %v2161 = vpack.c.b16 %v2157, %v2156
        %2166 = vmatprep.subr.bf16.mxu0 0
        %2167 = vmatpush1.bf16.msra.mxu0 0
        %2168 = vmatprep.subr.bf16.mxu0 0
        %2169 = vmatpush1.bf16.msra.mxu0 0
        %2170 = vmatprep.subr.bf16.mxu0 0
        %2171 = vmatpush1.bf16.msra.mxu0 0
        %2172 = vmatprep.subr.bf16.mxu0 0
        %2173 = vmatpush1.bf16.msra.mxu0 0
        %2174 = vmatprep.subr.bf16.mxu0 0
        %2175 = vmatpush1.bf16.msra.mxu0 %v2161
        %2176 = vmatprep.subr.bf16.mxu0 0
        %2177 = vmatpush1.bf16.msra.mxu0 %v2160
        %2178 = vmatprep.subr.bf16.mxu0 0
        %2179 = vmatpush1.bf16.msra.mxu0 %v2159
        %2180 = vmatprep.subr.bf16.mxu0 0
        %2181 = vmatpush1.bf16.msra.mxu0 %v2158
        %2182 = vmatprep.subr.bf16.mxu0 0
        %2183 = vmatpush2.bf16.msra.mxu0 0
        %2184 = vmatprep.subr.bf16.mxu0 0
        %2185 = vmatpush2.bf16.msra.mxu0 0
        %2186 = vmatprep.subr.bf16.mxu0 0
        %2187 = vmatpush2.bf16.msra.mxu0 0
        %2188 = vmatprep.subr.bf16.mxu0 0
        %2189 = vmatpush2.bf16.msra.mxu0 0
        %2190 = vmatprep.subr.bf16.mxu0 0
        %2191 = vmatpush2.bf16.msra.mxu0 0
        %2192 = vmatprep.subr.bf16.mxu0 0
        %2193 = vmatpush2.bf16.msra.mxu0 0
        %2194 = vmatprep.subr.bf16.mxu0 0
        %2195 = vmatpush2.bf16.msra.mxu0 0
        %2196 = vmatprep.subr.bf16.mxu0 0
        %2197 = vmatpush2.bf16.msra.mxu0 0
        %2198 = vmatprep.mubr.bf16.mxu0 0
        %2199 = vmatmul.mubr.bf16.gmra.mxu0 %v2082
        %v2200 = vpop.f32.mrf.mxu0
        %v2201 = vadd.f32 %v2140, %v2200
        %v2202 = vpop.f32.mrf.mxu0
        %v2203 = vpop.f32.mrf.mxu0
        %v2204 = vadd.f32 %v2140, %v2203
        %v2205 = vpop.f32.mrf.mxu0
        %2206 = vdwg.mxu0
        %s2207 = scalar_lea.vmem %s5, 32
        %v2208 = vld [vmem:[%s2207] sm:$0xf]
        %v2209 = vld [vmem:[%s2207 + $0x4] sm:$0xf]
        %v2210 = vld [vmem:[%s2207 + $0x8] sm:$0xf]
        %v2211 = vld [vmem:[%s2207 + $0xc] sm:$0xf]
        %v2212 = vld [vmem:[%s2207 + $0x10] sm:$0xf]
        %v2213 = vld [vmem:[%s2207 + $0x14] sm:$0xf]
        %v2214 = vld [vmem:[%s2207 + $0x18] sm:$0xf]
        %v2215 = vld [vmem:[%s2207 + $0x1c] sm:$0xf]
        %s2216 = scalar_lea.vmem %s8, 1
        %v2217 = vld [vmem:[%s2216] sm:$0x1]
        %v2219 = vlaneseq
        %v2220 = vshrl.u32 %v2219, 7
        %v2221 = vsub.s32 0, %v2220
        %v2222 = vrot.slane %v2217, %v2221
        %v2232 = vunpack.c.l.b16 %v2208
        %v2233 = vunpack.c.l.b16 %v2209
        %v2234 = vunpack.c.l.b16 %v2210
        %v2235 = vunpack.c.l.b16 %v2211
        %v2236 = vunpack.c.l.b16 %v2212
        %v2237 = vunpack.c.l.b16 %v2213
        %v2238 = vunpack.c.l.b16 %v2214
        %v2239 = vunpack.c.l.b16 %v2215
        %v2240 = vpack.c.b16 %v2233, %v2232
        %v2241 = vpack.c.b16 %v2235, %v2234
        %v2242 = vpack.c.b16 %v2237, %v2236
        %v2243 = vpack.c.b16 %v2239, %v2238
        %2248 = vmatprep.subr.bf16.mxu0 0
        %2249 = vmatpush1.bf16.msra.mxu0 0
        %2250 = vmatprep.subr.bf16.mxu0 0
        %2251 = vmatpush1.bf16.msra.mxu0 0
        %2252 = vmatprep.subr.bf16.mxu0 0
        %2253 = vmatpush1.bf16.msra.mxu0 0
        %2254 = vmatprep.subr.bf16.mxu0 0
        %2255 = vmatpush1.bf16.msra.mxu0 0
        %2256 = vmatprep.subr.bf16.mxu0 0
        %2257 = vmatpush1.bf16.msra.mxu0 %v2243
        %2258 = vmatprep.subr.bf16.mxu0 0
        %2259 = vmatpush1.bf16.msra.mxu0 %v2242
        %2260 = vmatprep.subr.bf16.mxu0 0
        %2261 = vmatpush1.bf16.msra.mxu0 %v2241
        %2262 = vmatprep.subr.bf16.mxu0 0
        %2263 = vmatpush1.bf16.msra.mxu0 %v2240
        %2264 = vmatprep.subr.bf16.mxu0 0
        %2265 = vmatpush2.bf16.msra.mxu0 0
        %2266 = vmatprep.subr.bf16.mxu0 0
        %2267 = vmatpush2.bf16.msra.mxu0 0
        %2268 = vmatprep.subr.bf16.mxu0 0
        %2269 = vmatpush2.bf16.msra.mxu0 0
        %2270 = vmatprep.subr.bf16.mxu0 0
        %2271 = vmatpush2.bf16.msra.mxu0 0
        %2272 = vmatprep.subr.bf16.mxu0 0
        %2273 = vmatpush2.bf16.msra.mxu0 0
        %2274 = vmatprep.subr.bf16.mxu0 0
        %2275 = vmatpush2.bf16.msra.mxu0 0
        %2276 = vmatprep.subr.bf16.mxu0 0
        %2277 = vmatpush2.bf16.msra.mxu0 0
        %2278 = vmatprep.subr.bf16.mxu0 0
        %2279 = vmatpush2.bf16.msra.mxu0 0
        %2280 = vmatprep.mubr.bf16.mxu0 0
        %2281 = vmatmul.mubr.bf16.gmra.mxu0 %v2082
        %v2282 = vpop.f32.mrf.mxu0
        %v2283 = vadd.f32 %v2222, %v2282
        %v2284 = vpop.f32.mrf.mxu0
        %v2285 = vpop.f32.mrf.mxu0
        %v2286 = vadd.f32 %v2222, %v2285
        %v2287 = vpop.f32.mrf.mxu0
        %2288 = vdwg.mxu0
        %v2289 = vpack.c.bf16 %v2122, %v2119
        %v2290 = vpack.c.bf16 %v2204, %v2201
        %v2291 = vpack.c.bf16 %v2286, %v2283
        %v2293 = vsel %vm1005, %v2289, 0
        %v2296 = vsel %vm1005, %v2290, 0
        %2298 = vmatprep.subr.bf16.mxu0 0
        %2299 = vmatpush1.bf16.xpose.msra.mxu0 0
        %2300 = vmatprep.subr.bf16.mxu0 0
        %2301 = vmatpush1.bf16.xpose.msra.mxu0 0
        %2302 = vmatprep.subr.bf16.mxu0 0
        %2303 = vmatpush1.bf16.xpose.msra.mxu0 0
        %2304 = vmatprep.subr.bf16.mxu0 0
        %2305 = vmatpush1.bf16.xpose.msra.mxu0 0
        %2306 = vmatprep.subr.bf16.mxu0 0
        %2307 = vmatpush1.bf16.xpose.msra.mxu0 0
        %2308 = vmatprep.subr.bf16.mxu0 0
        %2309 = vmatpush1.bf16.xpose.msra.mxu0 0
        %2310 = vmatprep.subr.bf16.mxu0 0
        %2311 = vmatpush1.bf16.xpose.msra.mxu0 0
        %2312 = vmatprep.subr.bf16.mxu0 0
        %2313 = vmatpush1.bf16.xpose.msra.mxu0 %v2296
        %2314 = vmatprep.subr.bf16.mxu0 0
        %2315 = vmatpush2.bf16.xpose.msra.mxu0 0
        %2316 = vmatprep.subr.bf16.mxu0 0
        %2317 = vmatpush2.bf16.xpose.msra.mxu0 0
        %2318 = vmatprep.subr.bf16.mxu0 0
        %2319 = vmatpush2.bf16.xpose.msra.mxu0 0
        %2320 = vmatprep.subr.bf16.mxu0 0
        %2321 = vmatpush2.bf16.xpose.msra.mxu0 0
        %2322 = vmatprep.subr.bf16.mxu0 0
        %2323 = vmatpush2.bf16.xpose.msra.mxu0 0
        %2324 = vmatprep.subr.bf16.mxu0 0
        %2325 = vmatpush2.bf16.xpose.msra.mxu0 0
        %2326 = vmatprep.subr.bf16.mxu0 0
        %2327 = vmatpush2.bf16.xpose.msra.mxu0 0
        %2328 = vmatprep.subr.bf16.mxu0 0
        %2329 = vmatpush2.bf16.xpose.msra.mxu0 0
        %2330 = vmatprep.mubr.bf16.mxu0 0
        %2331 = vmatmul.mubr.bf16.gmra.mxu0 %v2293
        %v2332 = vpop.f32.mrf.mxu0
        %v2333 = vadd.f32 0.0, %v2332
        %v2334 = vpop.f32.mrf.mxu0
        %v2335 = vpop.f32.mrf.mxu0
        %v2336 = vadd.f32 0.0, %v2335
        %v2337 = vpop.f32.mrf.mxu0
        %2338 = vdwg.mxu0
        %v2339 = vmul.f32 %v2333, 0.25
        %v2340 = vmul.f32 %v2336, 0.25
        %v2341 = vsel %vm1056, %v2339, -1e+30
        %v2342 = vsel %vm1056, %v2340, -1e+30
        %v2343 = vsel %vm1005, %v2341, -inf
        %2344 = vmax.xlane.f32.xlu0 %v2343
        %v2345 = vpop.xlane.xlu0 %2344
        %v2346 = vsel %vm1005, %v2342, -inf
        %2347 = vmax.xlane.f32.xlu0 %v2346
        %v2348 = vpop.xlane.xlu0 %2347
        %v2349 = vsub.f32 %v2341, %v2345
        %v2350 = vsub.f32 %v2342, %v2348
        %v2351 = vmul.f32 %v2349, 1.442695
        %v2352 = vpow.pop %v2351
        %v2353 = vmul.f32 %v2350, 1.442695
        %v2354 = vpow.pop %v2353
        %v2355 = vsel %vm1005, %v2352, 0.0
        %2356 = vadd.xlane.f32.xlu0 %v2355
        %v2357 = vpop.xlane.xlu0 %2356
        %v2358 = vsel %vm1005, %v2354, 0.0
        %2359 = vadd.xlane.f32.xlu0 %v2358
        %v2360 = vpop.xlane.xlu0 %2359
        %v2361 = vrcp.pop %v2357
        %v2362 = vrcp.pop %v2360
        %v2363 = vmul.f32 %v2352, %v2361
        %v2364 = vmul.f32 %v2354, %v2362
        %v2365 = vpack.c.bf16 %v2364, %v2363
        %v2367 = vsel %vm1005, %v2365, 0
        %2369 = vmatprep.subr.bf16.mxu0 0
        %2370 = vmatpush1.bf16.msra.mxu0 0
        %2371 = vmatprep.subr.bf16.mxu0 0
        %2372 = vmatpush1.bf16.msra.mxu0 0
        %2373 = vmatprep.subr.bf16.mxu0 0
        %2374 = vmatpush1.bf16.msra.mxu0 0
        %2375 = vmatprep.subr.bf16.mxu0 0
        %2376 = vmatpush1.bf16.msra.mxu0 0
        %2377 = vmatprep.subr.bf16.mxu0 0
        %2378 = vmatpush1.bf16.msra.mxu0 0
        %2379 = vmatprep.subr.bf16.mxu0 0
        %2380 = vmatpush1.bf16.msra.mxu0 0
        %2381 = vmatprep.subr.bf16.mxu0 0
        %2382 = vmatpush1.bf16.msra.mxu0 0
        %2383 = vmatprep.subr.bf16.mxu0 0
        %2384 = vmatpush1.bf16.msra.mxu0 %v2291
        %2385 = vmatprep.subr.bf16.mxu0 0
        %2386 = vmatpush2.bf16.msra.mxu0 0
        %2387 = vmatprep.subr.bf16.mxu0 0
        %2388 = vmatpush2.bf16.msra.mxu0 0
        %2389 = vmatprep.subr.bf16.mxu0 0
        %2390 = vmatpush2.bf16.msra.mxu0 0
        %2391 = vmatprep.subr.bf16.mxu0 0
        %2392 = vmatpush2.bf16.msra.mxu0 0
        %2393 = vmatprep.subr.bf16.mxu0 0
        %2394 = vmatpush2.bf16.msra.mxu0 0
        %2395 = vmatprep.subr.bf16.mxu0 0
        %2396 = vmatpush2.bf16.msra.mxu0 0
        %2397 = vmatprep.subr.bf16.mxu0 0
        %2398 = vmatpush2.bf16.msra.mxu0 0
        %2399 = vmatprep.subr.bf16.mxu0 0
        %2400 = vmatpush2.bf16.msra.mxu0 0
        %2401 = vmatprep.mubr.bf16.mxu0 0
        %2402 = vmatmul.mubr.bf16.gmra.mxu0 %v2367
        %v2403 = vpop.f32.mrf.mxu0
        %v2404 = vadd.f32 0.0, %v2403
        %v2405 = vpop.f32.mrf.mxu0
        %v2406 = vpop.f32.mrf.mxu0
        %v2407 = vadd.f32 0.0, %v2406
        %v2408 = vpop.f32.mrf.mxu0
        %2409 = vdwg.mxu0
        %2411 = vrot.lane.b32.xlu0 %v2289, 112
        %v2412 = vpop.permute.xlu0 %2411
        %2414 = vrot.lane.b32.xlu0 %v2290, 112
        %v2415 = vpop.permute.xlu0 %2414
        %v2417 = vsel %vm1005, %v2412, 0
        %v2420 = vsel %vm1005, %v2415, 0
        %2422 = vmatprep.subr.bf16.mxu0 0
        %2423 = vmatpush1.bf16.xpose.msra.mxu0 0
        %2424 = vmatprep.subr.bf16.mxu0 0
        %2425 = vmatpush1.bf16.xpose.msra.mxu0 0
        %2426 = vmatprep.subr.bf16.mxu0 0
        %2427 = vmatpush1.bf16.xpose.msra.mxu0 0
        %2428 = vmatprep.subr.bf16.mxu0 0
        %2429 = vmatpush1.bf16.xpose.msra.mxu0 0
        %2430 = vmatprep.subr.bf16.mxu0 0
        %2431 = vmatpush1.bf16.xpose.msra.mxu0 0
        %2432 = vmatprep.subr.bf16.mxu0 0
        %2433 = vmatpush1.bf16.xpose.msra.mxu0 0
        %2434 = vmatprep.subr.bf16.mxu0 0
        %2435 = vmatpush1.bf16.xpose.msra.mxu0 0
        %2436 = vmatprep.subr.bf16.mxu0 0
        %2437 = vmatpush1.bf16.xpose.msra.mxu0 %v2420
        %2438 = vmatprep.subr.bf16.mxu0 0
        %2439 = vmatpush2.bf16.xpose.msra.mxu0 0
        %2440 = vmatprep.subr.bf16.mxu0 0
        %2441 = vmatpush2.bf16.xpose.msra.mxu0 0
        %2442 = vmatprep.subr.bf16.mxu0 0
        %2443 = vmatpush2.bf16.xpose.msra.mxu0 0
        %2444 = vmatprep.subr.bf16.mxu0 0
        %2445 = vmatpush2.bf16.xpose.msra.mxu0 0
        %2446 = vmatprep.subr.bf16.mxu0 0
        %2447 = vmatpush2.bf16.xpose.msra.mxu0 0
        %2448 = vmatprep.subr.bf16.mxu0 0
        %2449 = vmatpush2.bf16.xpose.msra.mxu0 0
        %2450 = vmatprep.subr.bf16.mxu0 0
        %2451 = vmatpush2.bf16.xpose.msra.mxu0 0
        %2452 = vmatprep.subr.bf16.mxu0 0
        %2453 = vmatpush2.bf16.xpose.msra.mxu0 0
        %2454 = vmatprep.mubr.bf16.mxu0 0
        %2455 = vmatmul.mubr.bf16.gmra.mxu0 %v2417
        %v2456 = vpop.f32.mrf.mxu0
        %v2457 = vadd.f32 0.0, %v2456
        %v2458 = vpop.f32.mrf.mxu0
        %v2459 = vpop.f32.mrf.mxu0
        %v2460 = vadd.f32 0.0, %v2459
        %v2461 = vpop.f32.mrf.mxu0
        %2462 = vdwg.mxu0
        %v2463 = vmul.f32 %v2457, 0.25
        %v2464 = vmul.f32 %v2460, 0.25
        %v2465 = vsel %vm1056, %v2463, -1e+30
        %v2466 = vsel %vm1056, %v2464, -1e+30
        %v2467 = vsel %vm1005, %v2465, -inf
        %2468 = vmax.xlane.f32.xlu0 %v2467
        %v2469 = vpop.xlane.xlu0 %2468
        %v2470 = vsel %vm1005, %v2466, -inf
        %2471 = vmax.xlane.f32.xlu0 %v2470
        %v2472 = vpop.xlane.xlu0 %2471
        %v2473 = vsub.f32 %v2465, %v2469
        %v2474 = vsub.f32 %v2466, %v2472
        %v2475 = vmul.f32 %v2473, 1.442695
        %v2476 = vpow.pop %v2475
        %v2477 = vmul.f32 %v2474, 1.442695
        %v2478 = vpow.pop %v2477
        %v2479 = vsel %vm1005, %v2476, 0.0
        %2480 = vadd.xlane.f32.xlu0 %v2479
        %v2481 = vpop.xlane.xlu0 %2480
        %v2482 = vsel %vm1005, %v2478, 0.0
        %2483 = vadd.xlane.f32.xlu0 %v2482
        %v2484 = vpop.xlane.xlu0 %2483
        %v2485 = vrcp.pop %v2481
        %v2486 = vrcp.pop %v2484
        %v2487 = vmul.f32 %v2476, %v2485
        %v2488 = vmul.f32 %v2478, %v2486
        %v2489 = vpack.c.bf16 %v2488, %v2487
        %2491 = vrot.lane.b32.xlu0 %v2291, 112
        %v2492 = vpop.permute.xlu0 %2491
        %v2495 = vsel %vm1005, %v2489, 0
        %2497 = vmatprep.subr.bf16.mxu0 0
        %2498 = vmatpush1.bf16.msra.mxu0 0
        %2499 = vmatprep.subr.bf16.mxu0 0
        %2500 = vmatpush1.bf16.msra.mxu0 0
        %2501 = vmatprep.subr.bf16.mxu0 0
        %2502 = vmatpush1.bf16.msra.mxu0 0
        %2503 = vmatprep.subr.bf16.mxu0 0
        %2504 = vmatpush1.bf16.msra.mxu0 0
        %2505 = vmatprep.subr.bf16.mxu0 0
        %2506 = vmatpush1.bf16.msra.mxu0 0
        %2507 = vmatprep.subr.bf16.mxu0 0
        %2508 = vmatpush1.bf16.msra.mxu0 0
        %2509 = vmatprep.subr.bf16.mxu0 0
        %2510 = vmatpush1.bf16.msra.mxu0 0
        %2511 = vmatprep.subr.bf16.mxu0 0
        %2512 = vmatpush1.bf16.msra.mxu0 %v2492
        %2513 = vmatprep.subr.bf16.mxu0 0
        %2514 = vmatpush2.bf16.msra.mxu0 0
        %2515 = vmatprep.subr.bf16.mxu0 0
        %2516 = vmatpush2.bf16.msra.mxu0 0
        %2517 = vmatprep.subr.bf16.mxu0 0
        %2518 = vmatpush2.bf16.msra.mxu0 0
        %2519 = vmatprep.subr.bf16.mxu0 0
        %2520 = vmatpush2.bf16.msra.mxu0 0
        %2521 = vmatprep.subr.bf16.mxu0 0
        %2522 = vmatpush2.bf16.msra.mxu0 0
        %2523 = vmatprep.subr.bf16.mxu0 0
        %2524 = vmatpush2.bf16.msra.mxu0 0
        %2525 = vmatprep.subr.bf16.mxu0 0
        %2526 = vmatpush2.bf16.msra.mxu0 0
        %2527 = vmatprep.subr.bf16.mxu0 0
        %2528 = vmatpush2.bf16.msra.mxu0 0
        %2529 = vmatprep.mubr.bf16.mxu0 0
        %2530 = vmatmul.mubr.bf16.gmra.mxu0 %v2495
        %v2531 = vpop.f32.mrf.mxu0
        %v2532 = vadd.f32 0.0, %v2531
        %v2533 = vpop.f32.mrf.mxu0
        %v2534 = vpop.f32.mrf.mxu0
        %v2535 = vadd.f32 0.0, %v2534
        %v2536 = vpop.f32.mrf.mxu0
        %2537 = vdwg.mxu0
        %2538 = vrot.lane.b32.xlu0 %v2289, 96
        %v2539 = vpop.permute.xlu0 %2538
        %2540 = vrot.lane.b32.xlu0 %v2290, 96
        %v2541 = vpop.permute.xlu0 %2540
        %v2543 = vsel %vm1005, %v2539, 0
        %v2546 = vsel %vm1005, %v2541, 0
        %2548 = vmatprep.subr.bf16.mxu0 0
        %2549 = vmatpush1.bf16.xpose.msra.mxu0 0
        %2550 = vmatprep.subr.bf16.mxu0 0
        %2551 = vmatpush1.bf16.xpose.msra.mxu0 0
        %2552 = vmatprep.subr.bf16.mxu0 0
        %2553 = vmatpush1.bf16.xpose.msra.mxu0 0
        %2554 = vmatprep.subr.bf16.mxu0 0
        %2555 = vmatpush1.bf16.xpose.msra.mxu0 0
        %2556 = vmatprep.subr.bf16.mxu0 0
        %2557 = vmatpush1.bf16.xpose.msra.mxu0 0
        %2558 = vmatprep.subr.bf16.mxu0 0
        %2559 = vmatpush1.bf16.xpose.msra.mxu0 0
        %2560 = vmatprep.subr.bf16.mxu0 0
        %2561 = vmatpush1.bf16.xpose.msra.mxu0 0
        %2562 = vmatprep.subr.bf16.mxu0 0
        %2563 = vmatpush1.bf16.xpose.msra.mxu0 %v2546
        %2564 = vmatprep.subr.bf16.mxu0 0
        %2565 = vmatpush2.bf16.xpose.msra.mxu0 0
        %2566 = vmatprep.subr.bf16.mxu0 0
        %2567 = vmatpush2.bf16.xpose.msra.mxu0 0
        %2568 = vmatprep.subr.bf16.mxu0 0
        %2569 = vmatpush2.bf16.xpose.msra.mxu0 0
        %2570 = vmatprep.subr.bf16.mxu0 0
        %2571 = vmatpush2.bf16.xpose.msra.mxu0 0
        %2572 = vmatprep.subr.bf16.mxu0 0
        %2573 = vmatpush2.bf16.xpose.msra.mxu0 0
        %2574 = vmatprep.subr.bf16.mxu0 0
        %2575 = vmatpush2.bf16.xpose.msra.mxu0 0
        %2576 = vmatprep.subr.bf16.mxu0 0
        %2577 = vmatpush2.bf16.xpose.msra.mxu0 0
        %2578 = vmatprep.subr.bf16.mxu0 0
        %2579 = vmatpush2.bf16.xpose.msra.mxu0 0
        %2580 = vmatprep.mubr.bf16.mxu0 0
        %2581 = vmatmul.mubr.bf16.gmra.mxu0 %v2543
        %v2582 = vpop.f32.mrf.mxu0
        %v2583 = vadd.f32 0.0, %v2582
        %v2584 = vpop.f32.mrf.mxu0
        %v2585 = vpop.f32.mrf.mxu0
        %v2586 = vadd.f32 0.0, %v2585
        %v2587 = vpop.f32.mrf.mxu0
        %2588 = vdwg.mxu0
        %v2589 = vmul.f32 %v2583, 0.25
        %v2590 = vmul.f32 %v2586, 0.25
        %v2591 = vsel %vm1056, %v2589, -1e+30
        %v2592 = vsel %vm1056, %v2590, -1e+30
        %v2593 = vsel %vm1005, %v2591, -inf
        %2594 = vmax.xlane.f32.xlu0 %v2593
        %v2595 = vpop.xlane.xlu0 %2594
        %v2596 = vsel %vm1005, %v2592, -inf
        %2597 = vmax.xlane.f32.xlu0 %v2596
        %v2598 = vpop.xlane.xlu0 %2597
        %v2599 = vsub.f32 %v2591, %v2595
        %v2600 = vsub.f32 %v2592, %v2598
        %v2601 = vmul.f32 %v2599, 1.442695
        %v2602 = vpow.pop %v2601
        %v2603 = vmul.f32 %v2600, 1.442695
        %v2604 = vpow.pop %v2603
        %v2605 = vsel %vm1005, %v2602, 0.0
        %2606 = vadd.xlane.f32.xlu0 %v2605
        %v2607 = vpop.xlane.xlu0 %2606
        %v2608 = vsel %vm1005, %v2604, 0.0
        %2609 = vadd.xlane.f32.xlu0 %v2608
        %v2610 = vpop.xlane.xlu0 %2609
        %v2611 = vrcp.pop %v2607
        %v2612 = vrcp.pop %v2610
        %v2613 = vmul.f32 %v2602, %v2611
        %v2614 = vmul.f32 %v2604, %v2612
        %v2615 = vpack.c.bf16 %v2614, %v2613
        %2616 = vrot.lane.b32.xlu0 %v2291, 96
        %v2617 = vpop.permute.xlu0 %2616
        %v2620 = vsel %vm1005, %v2615, 0
        %2622 = vmatprep.subr.bf16.mxu0 0
        %2623 = vmatpush1.bf16.msra.mxu0 0
        %2624 = vmatprep.subr.bf16.mxu0 0
        %2625 = vmatpush1.bf16.msra.mxu0 0
        %2626 = vmatprep.subr.bf16.mxu0 0
        %2627 = vmatpush1.bf16.msra.mxu0 0
        %2628 = vmatprep.subr.bf16.mxu0 0
        %2629 = vmatpush1.bf16.msra.mxu0 0
        %2630 = vmatprep.subr.bf16.mxu0 0
        %2631 = vmatpush1.bf16.msra.mxu0 0
        %2632 = vmatprep.subr.bf16.mxu0 0
        %2633 = vmatpush1.bf16.msra.mxu0 0
        %2634 = vmatprep.subr.bf16.mxu0 0
        %2635 = vmatpush1.bf16.msra.mxu0 0
        %2636 = vmatprep.subr.bf16.mxu0 0
        %2637 = vmatpush1.bf16.msra.mxu0 %v2617
        %2638 = vmatprep.subr.bf16.mxu0 0
        %2639 = vmatpush2.bf16.msra.mxu0 0
        %2640 = vmatprep.subr.bf16.mxu0 0
        %2641 = vmatpush2.bf16.msra.mxu0 0
        %2642 = vmatprep.subr.bf16.mxu0 0
        %2643 = vmatpush2.bf16.msra.mxu0 0
        %2644 = vmatprep.subr.bf16.mxu0 0
        %2645 = vmatpush2.bf16.msra.mxu0 0
        %2646 = vmatprep.subr.bf16.mxu0 0
        %2647 = vmatpush2.bf16.msra.mxu0 0
        %2648 = vmatprep.subr.bf16.mxu0 0
        %2649 = vmatpush2.bf16.msra.mxu0 0
        %2650 = vmatprep.subr.bf16.mxu0 0
        %2651 = vmatpush2.bf16.msra.mxu0 0
        %2652 = vmatprep.subr.bf16.mxu0 0
        %2653 = vmatpush2.bf16.msra.mxu0 0
        %2654 = vmatprep.mubr.bf16.mxu0 0
        %2655 = vmatmul.mubr.bf16.gmra.mxu0 %v2620
        %v2656 = vpop.f32.mrf.mxu0
        %v2657 = vadd.f32 0.0, %v2656
        %v2658 = vpop.f32.mrf.mxu0
        %v2659 = vpop.f32.mrf.mxu0
        %v2660 = vadd.f32 0.0, %v2659
        %v2661 = vpop.f32.mrf.mxu0
        %2662 = vdwg.mxu0
        %2663 = vrot.lane.b32.xlu0 %v2289, 80
        %v2664 = vpop.permute.xlu0 %2663
        %2665 = vrot.lane.b32.xlu0 %v2290, 80
        %v2666 = vpop.permute.xlu0 %2665
        %v2668 = vsel %vm1005, %v2664, 0
        %v2671 = vsel %vm1005, %v2666, 0
        %2673 = vmatprep.subr.bf16.mxu0 0
        %2674 = vmatpush1.bf16.xpose.msra.mxu0 0
        %2675 = vmatprep.subr.bf16.mxu0 0
        %2676 = vmatpush1.bf16.xpose.msra.mxu0 0
        %2677 = vmatprep.subr.bf16.mxu0 0
        %2678 = vmatpush1.bf16.xpose.msra.mxu0 0
        %2679 = vmatprep.subr.bf16.mxu0 0
        %2680 = vmatpush1.bf16.xpose.msra.mxu0 0
        %2681 = vmatprep.subr.bf16.mxu0 0
        %2682 = vmatpush1.bf16.xpose.msra.mxu0 0
        %2683 = vmatprep.subr.bf16.mxu0 0
        %2684 = vmatpush1.bf16.xpose.msra.mxu0 0
        %2685 = vmatprep.subr.bf16.mxu0 0
        %2686 = vmatpush1.bf16.xpose.msra.mxu0 0
        %2687 = vmatprep.subr.bf16.mxu0 0
        %2688 = vmatpush1.bf16.xpose.msra.mxu0 %v2671
        %2689 = vmatprep.subr.bf16.mxu0 0
        %2690 = vmatpush2.bf16.xpose.msra.mxu0 0
        %2691 = vmatprep.subr.bf16.mxu0 0
        %2692 = vmatpush2.bf16.xpose.msra.mxu0 0
        %2693 = vmatprep.subr.bf16.mxu0 0
        %2694 = vmatpush2.bf16.xpose.msra.mxu0 0
        %2695 = vmatprep.subr.bf16.mxu0 0
        %2696 = vmatpush2.bf16.xpose.msra.mxu0 0
        %2697 = vmatprep.subr.bf16.mxu0 0
        %2698 = vmatpush2.bf16.xpose.msra.mxu0 0
        %2699 = vmatprep.subr.bf16.mxu0 0
        %2700 = vmatpush2.bf16.xpose.msra.mxu0 0
        %2701 = vmatprep.subr.bf16.mxu0 0
        %2702 = vmatpush2.bf16.xpose.msra.mxu0 0
        %2703 = vmatprep.subr.bf16.mxu0 0
        %2704 = vmatpush2.bf16.xpose.msra.mxu0 0
        %2705 = vmatprep.mubr.bf16.mxu0 0
        %2706 = vmatmul.mubr.bf16.gmra.mxu0 %v2668
        %v2707 = vpop.f32.mrf.mxu0
        %v2708 = vadd.f32 0.0, %v2707
        %v2709 = vpop.f32.mrf.mxu0
        %v2710 = vpop.f32.mrf.mxu0
        %v2711 = vadd.f32 0.0, %v2710
        %v2712 = vpop.f32.mrf.mxu0
        %2713 = vdwg.mxu0
        %v2714 = vmul.f32 %v2708, 0.25
        %v2715 = vmul.f32 %v2711, 0.25
        %v2716 = vsel %vm1056, %v2714, -1e+30
        %v2717 = vsel %vm1056, %v2715, -1e+30
        %v2718 = vsel %vm1005, %v2716, -inf
        %2719 = vmax.xlane.f32.xlu0 %v2718
        %v2720 = vpop.xlane.xlu0 %2719
        %v2721 = vsel %vm1005, %v2717, -inf
        %2722 = vmax.xlane.f32.xlu0 %v2721
        %v2723 = vpop.xlane.xlu0 %2722
        %v2724 = vsub.f32 %v2716, %v2720
        %v2725 = vsub.f32 %v2717, %v2723
        %v2726 = vmul.f32 %v2724, 1.442695
        %v2727 = vpow.pop %v2726
        %v2728 = vmul.f32 %v2725, 1.442695
        %v2729 = vpow.pop %v2728
        %v2730 = vsel %vm1005, %v2727, 0.0
        %2731 = vadd.xlane.f32.xlu0 %v2730
        %v2732 = vpop.xlane.xlu0 %2731
        %v2733 = vsel %vm1005, %v2729, 0.0
        %2734 = vadd.xlane.f32.xlu0 %v2733
        %v2735 = vpop.xlane.xlu0 %2734
        %v2736 = vrcp.pop %v2732
        %v2737 = vrcp.pop %v2735
        %v2738 = vmul.f32 %v2727, %v2736
        %v2739 = vmul.f32 %v2729, %v2737
        %v2740 = vpack.c.bf16 %v2739, %v2738
        %2741 = vrot.lane.b32.xlu0 %v2291, 80
        %v2742 = vpop.permute.xlu0 %2741
        %v2745 = vsel %vm1005, %v2740, 0
        %2747 = vmatprep.subr.bf16.mxu0 0
        %2748 = vmatpush1.bf16.msra.mxu0 0
        %2749 = vmatprep.subr.bf16.mxu0 0
        %2750 = vmatpush1.bf16.msra.mxu0 0
        %2751 = vmatprep.subr.bf16.mxu0 0
        %2752 = vmatpush1.bf16.msra.mxu0 0
        %2753 = vmatprep.subr.bf16.mxu0 0
        %2754 = vmatpush1.bf16.msra.mxu0 0
        %2755 = vmatprep.subr.bf16.mxu0 0
        %2756 = vmatpush1.bf16.msra.mxu0 0
        %2757 = vmatprep.subr.bf16.mxu0 0
        %2758 = vmatpush1.bf16.msra.mxu0 0
        %2759 = vmatprep.subr.bf16.mxu0 0
        %2760 = vmatpush1.bf16.msra.mxu0 0
        %2761 = vmatprep.subr.bf16.mxu0 0
        %2762 = vmatpush1.bf16.msra.mxu0 %v2742
        %2763 = vmatprep.subr.bf16.mxu0 0
        %2764 = vmatpush2.bf16.msra.mxu0 0
        %2765 = vmatprep.subr.bf16.mxu0 0
        %2766 = vmatpush2.bf16.msra.mxu0 0
        %2767 = vmatprep.subr.bf16.mxu0 0
        %2768 = vmatpush2.bf16.msra.mxu0 0
        %2769 = vmatprep.subr.bf16.mxu0 0
        %2770 = vmatpush2.bf16.msra.mxu0 0
        %2771 = vmatprep.subr.bf16.mxu0 0
        %2772 = vmatpush2.bf16.msra.mxu0 0
        %2773 = vmatprep.subr.bf16.mxu0 0
        %2774 = vmatpush2.bf16.msra.mxu0 0
        %2775 = vmatprep.subr.bf16.mxu0 0
        %2776 = vmatpush2.bf16.msra.mxu0 0
        %2777 = vmatprep.subr.bf16.mxu0 0
        %2778 = vmatpush2.bf16.msra.mxu0 0
        %2779 = vmatprep.mubr.bf16.mxu0 0
        %2780 = vmatmul.mubr.bf16.gmra.mxu0 %v2745
        %v2781 = vpop.f32.mrf.mxu0
        %v2782 = vadd.f32 0.0, %v2781
        %v2783 = vpop.f32.mrf.mxu0
        %v2784 = vpop.f32.mrf.mxu0
        %v2785 = vadd.f32 0.0, %v2784
        %v2786 = vpop.f32.mrf.mxu0
        %2787 = vdwg.mxu0
        %2790 = vrot.lane.b32.xlu0 %v2532, 16
        %v2791 = vpop.permute.xlu0 %2790
        %2792 = vrot.lane.b32.xlu0 %v2535, 16
        %v2793 = vpop.permute.xlu0 %2792
        %2798 = vrot.lane.b32.xlu0 %v2657, 32
        %v2799 = vpop.permute.xlu0 %2798
        %2800 = vrot.lane.b32.xlu0 %v2660, 32
        %v2801 = vpop.permute.xlu0 %2800
        %2806 = vrot.lane.b32.xlu0 %v2782, 48
        %v2807 = vpop.permute.xlu0 %2806
        %2808 = vrot.lane.b32.xlu0 %v2785, 48
        %v2809 = vpop.permute.xlu0 %2808
        %v2812 = vsel %vm1005, %v2404, %v2791
        %v2813 = vsel %vm1005, %v2407, %v2793
        %v2814 = vsel %vm1530, %v2812, %v2799
        %v2815 = vsel %vm1530, %v2813, %v2801
        %v2816 = vsel %vm1533, %v2814, %v2807
        %v2817 = vsel %vm1533, %v2815, %v2809
        %v2818 = vpack.c.bf16 %v2817, %v2816
        %s2819 = scalar_lea.vmem %s9, 32
        %v2820 = vld [vmem:[%s2819] sm:$0xf]
        %v2821 = vld [vmem:[%s2819 + $0x4] sm:$0xf]
        %v2822 = vld [vmem:[%s2819 + $0x8] sm:$0xf]
        %v2823 = vld [vmem:[%s2819 + $0xc] sm:$0xf]
        %v2824 = vld [vmem:[%s2819 + $0x10] sm:$0xf]
        %v2825 = vld [vmem:[%s2819 + $0x14] sm:$0xf]
        %v2826 = vld [vmem:[%s2819 + $0x18] sm:$0xf]
        %v2827 = vld [vmem:[%s2819 + $0x1c] sm:$0xf]
        %v2836 = vunpack.c.l.b16 %v2820
        %v2837 = vunpack.c.l.b16 %v2821
        %v2838 = vunpack.c.l.b16 %v2822
        %v2839 = vunpack.c.l.b16 %v2823
        %v2840 = vunpack.c.l.b16 %v2824
        %v2841 = vunpack.c.l.b16 %v2825
        %v2842 = vunpack.c.l.b16 %v2826
        %v2843 = vunpack.c.l.b16 %v2827
        %v2844 = vpack.c.b16 %v2837, %v2836
        %v2845 = vpack.c.b16 %v2839, %v2838
        %v2846 = vpack.c.b16 %v2841, %v2840
        %v2847 = vpack.c.b16 %v2843, %v2842
        %v2853 = vsel %vm714, %v2818, 0
        %2855 = vmatprep.subr.bf16.mxu0 0
        %2856 = vmatpush1.bf16.msra.mxu0 0
        %2857 = vmatprep.subr.bf16.mxu0 0
        %2858 = vmatpush1.bf16.msra.mxu0 0
        %2859 = vmatprep.subr.bf16.mxu0 0
        %2860 = vmatpush1.bf16.msra.mxu0 0
        %2861 = vmatprep.subr.bf16.mxu0 0
        %2862 = vmatpush1.bf16.msra.mxu0 0
        %2863 = vmatprep.subr.bf16.mxu0 0
        %2864 = vmatpush1.bf16.msra.mxu0 %v2847
        %2865 = vmatprep.subr.bf16.mxu0 0
        %2866 = vmatpush1.bf16.msra.mxu0 %v2846
        %2867 = vmatprep.subr.bf16.mxu0 0
        %2868 = vmatpush1.bf16.msra.mxu0 %v2845
        %2869 = vmatprep.subr.bf16.mxu0 0
        %2870 = vmatpush1.bf16.msra.mxu0 %v2844
        %2871 = vmatprep.subr.bf16.mxu0 0
        %2872 = vmatpush2.bf16.msra.mxu0 0
        %2873 = vmatprep.subr.bf16.mxu0 0
        %2874 = vmatpush2.bf16.msra.mxu0 0
        %2875 = vmatprep.subr.bf16.mxu0 0
        %2876 = vmatpush2.bf16.msra.mxu0 0
        %2877 = vmatprep.subr.bf16.mxu0 0
        %2878 = vmatpush2.bf16.msra.mxu0 0
        %2879 = vmatprep.subr.bf16.mxu0 0
        %2880 = vmatpush2.bf16.msra.mxu0 0
        %2881 = vmatprep.subr.bf16.mxu0 0
        %2882 = vmatpush2.bf16.msra.mxu0 0
        %2883 = vmatprep.subr.bf16.mxu0 0
        %2884 = vmatpush2.bf16.msra.mxu0 0
        %2885 = vmatprep.subr.bf16.mxu0 0
        %2886 = vmatpush2.bf16.msra.mxu0 0
        %2887 = vmatprep.mubr.bf16.mxu0 0
        %2888 = vmatmul.mubr.bf16.gmra.mxu0 %v2853
        %v2889 = vpop.f32.mrf.mxu0
        %v2890 = vadd.f32 0.0, %v2889
        %v2891 = vpop.f32.mrf.mxu0
        %v2892 = vpop.f32.mrf.mxu0
        %v2893 = vadd.f32 0.0, %v2892
        %v2894 = vpop.f32.mrf.mxu0
        %2895 = vdwg.mxu0
        %v2896 = vadd.f32 %v1991, %v2890
        %v2897 = vadd.f32 %v1992, %v2893
        %s2898 = scalar_lea.vmem %s10, 1
        %v2899 = vld [vmem:[%s2898] sm:$0x1]
        %v2901 = vlaneseq
        %v2902 = vshrl.u32 %v2901, 7
        %v2903 = vsub.s32 0, %v2902
        %v2904 = vrot.slane %v2899, %v2903
        %v2906 = vadd.f32 %v2896, %v2904
        %v2907 = vadd.f32 %v2897, %v2904
        %s2908 = scalar_lea.vmem %s11, 1
        %v2909 = vld [vmem:[%s2908] sm:$0x1]
        %s2910 = scalar_lea.vmem %s12, 1
        %v2911 = vld [vmem:[%s2910] sm:$0x1]
        %v2912 = vsel %vm714, %v2906, 0.0
        %2913 = vadd.xlane.f32.xlu0 %v2912
        %v2914 = vpop.xlane.xlu0 %2913
        %v2915 = vsel %vm714, %v2907, 0.0
        %2916 = vadd.xlane.f32.xlu0 %v2915
        %v2917 = vpop.xlane.xlu0 %2916
        %v2918 = vmul.f32 %v2914, %v721
        %v2919 = vmul.f32 %v2917, %v721
        %v2920 = vsub.f32 %v2906, %v2918
        %v2921 = vsub.f32 %v2907, %v2919
        %v2922 = vmul.f32 %v2920, %v2920
        %v2923 = vmul.f32 %v2921, %v2921
        %v2924 = vsel %vm714, %v2922, 0.0
        %2925 = vadd.xlane.f32.xlu0 %v2924
        %v2926 = vpop.xlane.xlu0 %2925
        %v2927 = vsel %vm714, %v2923, 0.0
        %2928 = vadd.xlane.f32.xlu0 %v2927
        %v2929 = vpop.xlane.xlu0 %2928
        %v2930 = vmul.f32 %v2926, %v721
        %v2931 = vmul.f32 %v2929, %v721
        %v2932 = vadd.f32 %v2930, 1e-05
        %v2933 = vadd.f32 %v2931, 1e-05
        %v2934 = vrsqrt.pop %v2932
        %v2935 = vrsqrt.pop %v2933
        %v2936 = vmul.f32 %v2920, %v2934
        %v2937 = vmul.f32 %v2921, %v2935
        %v2939 = vlaneseq
        %v2940 = vshrl.u32 %v2939, 7
        %v2941 = vsub.s32 0, %v2940
        %v2942 = vrot.slane %v2909, %v2941
        %v2944 = vmul.f32 %v2936, %v2942
        %v2945 = vmul.f32 %v2937, %v2942
        %v2947 = vlaneseq
        %v2948 = vshrl.u32 %v2947, 7
        %v2949 = vsub.s32 0, %v2948
        %v2950 = vrot.slane %v2911, %v2949
        %v2952 = vadd.f32 %v2944, %v2950
        %v2953 = vadd.f32 %v2945, %v2950
        %v2954 = vpack.c.bf16 %v2953, %v2952
        %s2955 = scalar_lea.vmem %s13, 64
        %v2956 = vld [vmem:[%s2955] sm:$0xff]
        %v2957 = vld [vmem:[%s2955 + $0x8] sm:$0xff]
        %v2958 = vld [vmem:[%s2955 + $0x10] sm:$0xff]
        %v2959 = vld [vmem:[%s2955 + $0x18] sm:$0xff]
        %v2960 = vld [vmem:[%s2955 + $0x20] sm:$0xff]
        %v2961 = vld [vmem:[%s2955 + $0x28] sm:$0xff]
        %v2962 = vld [vmem:[%s2955 + $0x30] sm:$0xff]
        %v2963 = vld [vmem:[%s2955 + $0x38] sm:$0xff]
        %s2964 = scalar_lea.vmem %s14, 2
        %v2965 = vld [vmem:[%s2964] sm:$0x3]
        %v2967 = vlaneseq
        %v2968 = vshrl.u32 %v2967, 7
        %v2969 = vsub.s32 0, %v2968
        %v2970 = vrot.slane %v2965, %v2969
        %v2971 = vlaneseq
        %v2972 = vshrl.u32 %v2971, 7
        %v2973 = vsub.s32 1, %v2972
        %v2974 = vrot.slane %v2965, %v2973
        %v2985 = vunpack.c.l.b16 %v2956
        %v2986 = vunpack.c.h.b16 %v2956
        %v2987 = vunpack.c.l.b16 %v2957
        %v2988 = vunpack.c.h.b16 %v2957
        %v2989 = vunpack.c.l.b16 %v2958
        %v2990 = vunpack.c.h.b16 %v2958
        %v2991 = vunpack.c.l.b16 %v2959
        %v2992 = vunpack.c.h.b16 %v2959
        %v2993 = vunpack.c.l.b16 %v2960
        %v2994 = vunpack.c.h.b16 %v2960
        %v2995 = vunpack.c.l.b16 %v2961
        %v2996 = vunpack.c.h.b16 %v2961
        %v2997 = vunpack.c.l.b16 %v2962
        %v2998 = vunpack.c.h.b16 %v2962
        %v2999 = vunpack.c.l.b16 %v2963
        %v3000 = vunpack.c.h.b16 %v2963
        %v3001 = vpack.c.b16 %v2987, %v2985
        %v3002 = vpack.c.b16 %v2988, %v2986
        %v3003 = vpack.c.b16 %v2991, %v2989
        %v3004 = vpack.c.b16 %v2992, %v2990
        %v3005 = vpack.c.b16 %v2995, %v2993
        %v3006 = vpack.c.b16 %v2996, %v2994
        %v3007 = vpack.c.b16 %v2999, %v2997
        %v3008 = vpack.c.b16 %v3000, %v2998
        %v3018 = vsel %vm714, %v2954, 0
        %3020 = vmatprep.subr.bf16.mxu0 0
        %3021 = vmatpush1.bf16.msra.mxu0 0
        %3022 = vmatprep.subr.bf16.mxu0 0
        %3023 = vmatpush1.bf16.msra.mxu0 0
        %3024 = vmatprep.subr.bf16.mxu0 0
        %3025 = vmatpush1.bf16.msra.mxu0 0
        %3026 = vmatprep.subr.bf16.mxu0 0
        %3027 = vmatpush1.bf16.msra.mxu0 0
        %3028 = vmatprep.subr.bf16.mxu0 %v3008
        %3029 = vmatpush1.bf16.msra.mxu0 %v3007
        %3030 = vmatprep.subr.bf16.mxu0 %v3006
        %3031 = vmatpush1.bf16.msra.mxu0 %v3005
        %3032 = vmatprep.subr.bf16.mxu0 %v3004
        %3033 = vmatpush1.bf16.msra.mxu0 %v3003
        %3034 = vmatprep.subr.bf16.mxu0 %v3002
        %3035 = vmatpush1.bf16.msra.mxu0 %v3001
        %3036 = vmatprep.subr.bf16.mxu0 0
        %3037 = vmatpush2.bf16.msra.mxu0 0
        %3038 = vmatprep.subr.bf16.mxu0 0
        %3039 = vmatpush2.bf16.msra.mxu0 0
        %3040 = vmatprep.subr.bf16.mxu0 0
        %3041 = vmatpush2.bf16.msra.mxu0 0
        %3042 = vmatprep.subr.bf16.mxu0 0
        %3043 = vmatpush2.bf16.msra.mxu0 0
        %3044 = vmatprep.subr.bf16.mxu0 0
        %3045 = vmatpush2.bf16.msra.mxu0 0
        %3046 = vmatprep.subr.bf16.mxu0 0
        %3047 = vmatpush2.bf16.msra.mxu0 0
        %3048 = vmatprep.subr.bf16.mxu0 0
        %3049 = vmatpush2.bf16.msra.mxu0 0
        %3050 = vmatprep.subr.bf16.mxu0 0
        %3051 = vmatpush2.bf16.msra.mxu0 0
        %3052 = vmatprep.mubr.bf16.mxu0 0
        %3053 = vmatmul.mubr.bf16.gmra.mxu0 %v3018
        %v3054 = vpop.f32.mrf.mxu0
        %v3055 = vadd.f32 %v2970, %v3054
        %v3056 = vpop.f32.mrf.mxu0
        %v3057 = vadd.f32 %v2974, %v3056
        %v3058 = vpop.f32.mrf.mxu0
        %v3059 = vadd.f32 %v2970, %v3058
        %v3060 = vpop.f32.mrf.mxu0
        %v3061 = vadd.f32 %v2974, %v3060
        %3062 = vdwg.mxu0
        %v3063 = vmul.f32 %v3055, %v3055
        %v3064 = vmul.f32 %v3057, %v3057
        %v3065 = vmul.f32 %v3059, %v3059
        %v3066 = vmul.f32 %v3061, %v3061
        %v3067 = vmul.f32 %v3055, %v3063
        %v3068 = vmul.f32 %v3057, %v3064
        %v3069 = vmul.f32 %v3059, %v3065
        %v3070 = vmul.f32 %v3061, %v3066
        %v3071 = vmul.f32 %v3067, 0.044715
        %v3072 = vmul.f32 %v3068, 0.044715
        %v3073 = vmul.f32 %v3069, 0.044715
        %v3074 = vmul.f32 %v3070, 0.044715
        %v3075 = vadd.f32 %v3055, %v3071
        %v3076 = vadd.f32 %v3057, %v3072
        %v3077 = vadd.f32 %v3059, %v3073
        %v3078 = vadd.f32 %v3061, %v3074
        %v3079 = vmul.f32 %v3075, 0.7978846
        %v3080 = vmul.f32 %v3076, 0.7978846
        %v3081 = vmul.f32 %v3077, 0.7978846
        %v3082 = vmul.f32 %v3078, 0.7978846
        %v3083 = vtanh.pop %v3079
        %v3084 = vtanh.pop %v3080
        %v3085 = vtanh.pop %v3081
        %v3086 = vtanh.pop %v3082
        %v3087 = vadd.f32 %v3083, 1.0
        %v3088 = vadd.f32 %v3084, 1.0
        %v3089 = vadd.f32 %v3085, 1.0
        %v3090 = vadd.f32 %v3086, 1.0
        %v3091 = vmul.f32 %v3087, 0.5
        %v3092 = vmul.f32 %v3088, 0.5
        %v3093 = vmul.f32 %v3089, 0.5
        %v3094 = vmul.f32 %v3090, 0.5
        %v3095 = vmul.f32 %v3055, %v3091
        %v3096 = vmul.f32 %v3057, %v3092
        %v3097 = vmul.f32 %v3059, %v3093
        %v3098 = vmul.f32 %v3061, %v3094
        %v3099 = vpack.c.bf16 %v3097, %v3095
        %v3100 = vpack.c.bf16 %v3098, %v3096
        %s3101 = scalar_lea.vmem %s15, 128
        %v3102 = vld [vmem:[%s3101] sm:$0xf]
        %v3103 = vld [vmem:[%s3101 + $0x4] sm:$0xf]
        %v3104 = vld [vmem:[%s3101 + $0x8] sm:$0xf]
        %v3105 = vld [vmem:[%s3101 + $0xc] sm:$0xf]
        %v3106 = vld [vmem:[%s3101 + $0x10] sm:$0xf]
        %v3107 = vld [vmem:[%s3101 + $0x14] sm:$0xf]
        %v3108 = vld [vmem:[%s3101 + $0x18] sm:$0xf]
        %v3109 = vld [vmem:[%s3101 + $0x1c] sm:$0xf]
        %v3110 = vld [vmem:[%s3101 + $0x20] sm:$0xf]
        %v3111 = vld [vmem:[%s3101 + $0x24] sm:$0xf]
        %v3112 = vld [vmem:[%s3101 + $0x28] sm:$0xf]
        %v3113 = vld [vmem:[%s3101 + $0x2c] sm:$0xf]
        %v3114 = vld [vmem:[%s3101 + $0x30] sm:$0xf]
        %v3115 = vld [vmem:[%s3101 + $0x34] sm:$0xf]
        %v3116 = vld [vmem:[%s3101 + $0x38] sm:$0xf]
        %v3117 = vld [vmem:[%s3101 + $0x3c] sm:$0xf]
        %v3118 = vld [vmem:[%s3101 + $0x40] sm:$0xf]
        %v3119 = vld [vmem:[%s3101 + $0x44] sm:$0xf]
        %v3120 = vld [vmem:[%s3101 + $0x48] sm:$0xf]
        %v3121 = vld [vmem:[%s3101 + $0x4c] sm:$0xf]
        %v3122 = vld [vmem:[%s3101 + $0x50] sm:$0xf]
        %v3123 = vld [vmem:[%s3101 + $0x54] sm:$0xf]
        %v3124 = vld [vmem:[%s3101 + $0x58] sm:$0xf]
        %v3125 = vld [vmem:[%s3101 + $0x5c] sm:$0xf]
        %v3126 = vld [vmem:[%s3101 + $0x60] sm:$0xf]
        %v3127 = vld [vmem:[%s3101 + $0x64] sm:$0xf]
        %v3128 = vld [vmem:[%s3101 + $0x68] sm:$0xf]
        %v3129 = vld [vmem:[%s3101 + $0x6c] sm:$0xf]
        %v3130 = vld [vmem:[%s3101 + $0x70] sm:$0xf]
        %v3131 = vld [vmem:[%s3101 + $0x74] sm:$0xf]
        %v3132 = vld [vmem:[%s3101 + $0x78] sm:$0xf]
        %v3133 = vld [vmem:[%s3101 + $0x7c] sm:$0xf]
        %v3166 = vunpack.c.l.b16 %v3102
        %v3167 = vunpack.c.l.b16 %v3103
        %v3168 = vunpack.c.l.b16 %v3104
        %v3169 = vunpack.c.l.b16 %v3105
        %v3170 = vunpack.c.l.b16 %v3106
        %v3171 = vunpack.c.l.b16 %v3107
        %v3172 = vunpack.c.l.b16 %v3108
        %v3173 = vunpack.c.l.b16 %v3109
        %v3174 = vunpack.c.l.b16 %v3110
        %v3175 = vunpack.c.l.b16 %v3111
        %v3176 = vunpack.c.l.b16 %v3112
        %v3177 = vunpack.c.l.b16 %v3113
        %v3178 = vunpack.c.l.b16 %v3114
        %v3179 = vunpack.c.l.b16 %v3115
        %v3180 = vunpack.c.l.b16 %v3116
        %v3181 = vunpack.c.l.b16 %v3117
        %v3182 = vunpack.c.l.b16 %v3118
        %v3183 = vunpack.c.l.b16 %v3119
        %v3184 = vunpack.c.l.b16 %v3120
        %v3185 = vunpack.c.l.b16 %v3121
        %v3186 = vunpack.c.l.b16 %v3122
        %v3187 = vunpack.c.l.b16 %v3123
        %v3188 = vunpack.c.l.b16 %v3124
        %v3189 = vunpack.c.l.b16 %v3125
        %v3190 = vunpack.c.l.b16 %v3126
        %v3191 = vunpack.c.l.b16 %v3127
        %v3192 = vunpack.c.l.b16 %v3128
        %v3193 = vunpack.c.l.b16 %v3129
        %v3194 = vunpack.c.l.b16 %v3130
        %v3195 = vunpack.c.l.b16 %v3131
        %v3196 = vunpack.c.l.b16 %v3132
        %v3197 = vunpack.c.l.b16 %v3133
        %v3198 = vpack.c.b16 %v3167, %v3166
        %v3199 = vpack.c.b16 %v3169, %v3168
        %v3200 = vpack.c.b16 %v3171, %v3170
        %v3201 = vpack.c.b16 %v3173, %v3172
        %v3202 = vpack.c.b16 %v3175, %v3174
        %v3203 = vpack.c.b16 %v3177, %v3176
        %v3204 = vpack.c.b16 %v3179, %v3178
        %v3205 = vpack.c.b16 %v3181, %v3180
        %v3206 = vpack.c.b16 %v3183, %v3182
        %v3207 = vpack.c.b16 %v3185, %v3184
        %v3208 = vpack.c.b16 %v3187, %v3186
        %v3209 = vpack.c.b16 %v3189, %v3188
        %v3210 = vpack.c.b16 %v3191, %v3190
        %v3211 = vpack.c.b16 %v3193, %v3192
        %v3212 = vpack.c.b16 %v3195, %v3194
        %v3213 = vpack.c.b16 %v3197, %v3196
        %3230 = vmatprep.subr.bf16.mxu0 0
        %3231 = vmatpush1.bf16.msra.mxu0 %v3205
        %3232 = vmatprep.subr.bf16.mxu0 0
        %3233 = vmatpush1.bf16.msra.mxu0 %v3204
        %3234 = vmatprep.subr.bf16.mxu0 0
        %3235 = vmatpush1.bf16.msra.mxu0 %v3203
        %3236 = vmatprep.subr.bf16.mxu0 0
        %3237 = vmatpush1.bf16.msra.mxu0 %v3202
        %3238 = vmatprep.subr.bf16.mxu0 0
        %3239 = vmatpush1.bf16.msra.mxu0 %v3201
        %3240 = vmatprep.subr.bf16.mxu0 0
        %3241 = vmatpush1.bf16.msra.mxu0 %v3200
        %3242 = vmatprep.subr.bf16.mxu0 0
        %3243 = vmatpush1.bf16.msra.mxu0 %v3199
        %3244 = vmatprep.subr.bf16.mxu0 0
        %3245 = vmatpush1.bf16.msra.mxu0 %v3198
        %3246 = vmatprep.subr.bf16.mxu0 0
        %3247 = vmatpush2.bf16.msra.mxu0 %v3213
        %3248 = vmatprep.subr.bf16.mxu0 0
        %3249 = vmatpush2.bf16.msra.mxu0 %v3212
        %3250 = vmatprep.subr.bf16.mxu0 0
        %3251 = vmatpush2.bf16.msra.mxu0 %v3211
        %3252 = vmatprep.subr.bf16.mxu0 0
        %3253 = vmatpush2.bf16.msra.mxu0 %v3210
        %3254 = vmatprep.subr.bf16.mxu0 0
        %3255 = vmatpush2.bf16.msra.mxu0 %v3209
        %3256 = vmatprep.subr.bf16.mxu0 0
        %3257 = vmatpush2.bf16.msra.mxu0 %v3208
        %3258 = vmatprep.subr.bf16.mxu0 0
        %3259 = vmatpush2.bf16.msra.mxu0 %v3207
        %3260 = vmatprep.subr.bf16.mxu0 0
        %3261 = vmatpush2.bf16.msra.mxu0 %v3206
        %3262 = vmatprep.mubr.bf16.mxu0 %v3100
        %3263 = vmatmul.mubr.bf16.gmra.mxu0 %v3099
        %v3264 = vpop.f32.mrf.mxu0
        %v3265 = vadd.f32 0.0, %v3264
        %v3266 = vpop.f32.mrf.mxu0
        %v3267 = vpop.f32.mrf.mxu0
        %v3268 = vadd.f32 0.0, %v3267
        %v3269 = vpop.f32.mrf.mxu0
        %3270 = vdwg.mxu0
        %v3271 = vadd.f32 %v2906, %v3265
        %v3272 = vadd.f32 %v2907, %v3268
        %s3273 = scalar_lea.vmem %s16, 1
        %v3274 = vld [vmem:[%s3273] sm:$0x1]
        %v3276 = vlaneseq
        %v3277 = vshrl.u32 %v3276, 7
        %v3278 = vsub.s32 0, %v3277
        %v3279 = vrot.slane %v3274, %v3278
        %v3281 = vadd.f32 %v3271, %v3279
        %v3282 = vadd.f32 %v3272, %v3279
        %3283 = vst.msk [vmem:[%s695] sm:$0xff] %vm714, %v3281
        %3284 = vst.msk [vmem:[%s695 + $0x8] sm:$0xff] %vm714, %v3282
        %v3285 = vpack.c.bf16 %v3282, %v3281
        %v3286 = vld [vmem:[#allocation8] sm:$0xf]
        %v3287 = vld [vmem:[#allocation8 + $0x4] sm:$0xf]
        %v3288 = vld [vmem:[#allocation8 + $0x8] sm:$0xf]
        %v3289 = vld [vmem:[#allocation8 + $0xc] sm:$0xf]
        %v3290 = vld [vmem:[#allocation8 + $0x10] sm:$0xf]
        %v3291 = vld [vmem:[#allocation8 + $0x14] sm:$0xf]
        %v3292 = vld [vmem:[#allocation8 + $0x18] sm:$0xf]
        %v3293 = vld [vmem:[#allocation8 + $0x1c] sm:$0xf]
        %v3294 = vld [vmem:[%s18] sm:$0x1]
        %v3296 = vlaneseq
        %v3297 = vshrl.u32 %v3296, 7
        %v3298 = vsub.s32 0, %v3297
        %v3299 = vrot.slane %v3294, %v3298
        %v3309 = vunpack.c.l.b16 %v3286
        %v3310 = vunpack.c.l.b16 %v3287
        %v3311 = vunpack.c.l.b16 %v3288
        %v3312 = vunpack.c.l.b16 %v3289
        %v3313 = vunpack.c.l.b16 %v3290
        %v3314 = vunpack.c.l.b16 %v3291
        %v3315 = vunpack.c.l.b16 %v3292
        %v3316 = vunpack.c.l.b16 %v3293
        %v3317 = vpack.c.b16 %v3310, %v3309
        %v3318 = vpack.c.b16 %v3312, %v3311
        %v3319 = vpack.c.b16 %v3314, %v3313
        %v3320 = vpack.c.b16 %v3316, %v3315
        %v3326 = vsel %vm714, %v3285, 0
        %3328 = vmatprep.subr.bf16.mxu0 0
        %3329 = vmatpush1.bf16.msra.mxu0 0
        %3330 = vmatprep.subr.bf16.mxu0 0
        %3331 = vmatpush1.bf16.msra.mxu0 0
        %3332 = vmatprep.subr.bf16.mxu0 0
        %3333 = vmatpush1.bf16.msra.mxu0 0
        %3334 = vmatprep.subr.bf16.mxu0 0
        %3335 = vmatpush1.bf16.msra.mxu0 0
        %3336 = vmatprep.subr.bf16.mxu0 0
        %3337 = vmatpush1.bf16.msra.mxu0 %v3320
        %3338 = vmatprep.subr.bf16.mxu0 0
        %3339 = vmatpush1.bf16.msra.mxu0 %v3319
        %3340 = vmatprep.subr.bf16.mxu0 0
        %3341 = vmatpush1.bf16.msra.mxu0 %v3318
        %3342 = vmatprep.subr.bf16.mxu0 0
        %3343 = vmatpush1.bf16.msra.mxu0 %v3317
        %3344 = vmatprep.subr.bf16.mxu0 0
        %3345 = vmatpush2.bf16.msra.mxu0 0
        %3346 = vmatprep.subr.bf16.mxu0 0
        %3347 = vmatpush2.bf16.msra.mxu0 0
        %3348 = vmatprep.subr.bf16.mxu0 0
        %3349 = vmatpush2.bf16.msra.mxu0 0
        %3350 = vmatprep.subr.bf16.mxu0 0
        %3351 = vmatpush2.bf16.msra.mxu0 0
        %3352 = vmatprep.subr.bf16.mxu0 0
        %3353 = vmatpush2.bf16.msra.mxu0 0
        %3354 = vmatprep.subr.bf16.mxu0 0
        %3355 = vmatpush2.bf16.msra.mxu0 0
        %3356 = vmatprep.subr.bf16.mxu0 0
        %3357 = vmatpush2.bf16.msra.mxu0 0
        %3358 = vmatprep.subr.bf16.mxu0 0
        %3359 = vmatpush2.bf16.msra.mxu0 0
        %3360 = vmatprep.mubr.bf16.mxu0 0
        %3361 = vmatmul.mubr.bf16.gmra.mxu0 %v3326
        %v3362 = vpop.f32.mrf.mxu0
        %v3363 = vadd.f32 %v3299, %v3362
        %v3364 = vpop.f32.mrf.mxu0
        %v3365 = vpop.f32.mrf.mxu0
        %v3366 = vadd.f32 %v3299, %v3365
        %v3367 = vpop.f32.mrf.mxu0
        %3368 = vdwg.mxu0
        %3369 = vst [vmem:[%s702] sm:$0xff] %v3363
        %3370 = vst [vmem:[%s702 + $0x8] sm:$0xff] %v3366
        %s3371 = sand.u32 %s455, 1
        %s3372 = scalar_lea.sflag [#allocation4], %s3371
        %s3373 = sand.u32 %s455, 1
        %s3374 = smul.addr %s3373, 16
        %s3375 = scalar_lea.vmem [#allocation10], %s3374
        %s3376 = sand.u32 %s481, 1
        %s3377 = scalar_lea.sflag [#allocation12], %s3376
        %s3378 = sand.u32 %s481, 1
        %s3379 = smul.addr %s3378, 16
        %s3380 = scalar_lea.vmem [#allocation11], %s3379
        // Predicated region
        $region113: #{tpu_custom_call.1} parent=95 // pred_check
          %p3381 = pneg %p465
        $region114: #{tpu_custom_call.1} parent=95 // pred_check_branch
          %3383 = sbr.rel (%p3381) target = $region116
        $region115: #{tpu_custom_call.1} parent=95 // pred_region
          %s3384 = smul.u32 2, %s43
          %s3386 = ssub.s32 256, 256
          %3387 = vsyncadd %s3372, %s3386
          %s3388 = smul.addr %s3384, 128
          %s3389 = scalar_lea.hbm %s19, %s3388
          %s3390 = sshll.u32 %s3375, 4
          %s3391 = int_to_ptr.vmem [resolvable:$true] %s3390
          %3396 = dma.vmem_to_hbm [thread:$0]  %s3391, 256, %s3389, %s3372, 128, 128, 8
        $region116: #{tpu_custom_call.1} parent=95 // pred_fallthru
          _
        // Predicated region
        $region117: #{tpu_custom_call.1} parent=95 // pred_check
          %p3397 = pneg %p491
        $region118: #{tpu_custom_call.1} parent=95 // pred_check_branch
          %3399 = sbr.rel (%p3397) target = $region120
        $region119: #{tpu_custom_call.1} parent=95 // pred_region
          %s3400 = smul.u32 2, %s43
          %s3402 = ssub.s32 256, 256
          %3403 = vsyncadd %s3377, %s3402
          %s3404 = smul.addr %s3400, 128
          %s3405 = scalar_lea.hbm %s20, %s3404
          %s3406 = sshll.u32 %s3380, 4
          %s3407 = int_to_ptr.vmem [resolvable:$true] %s3406
          %3412 = dma.vmem_to_hbm [thread:$0]  %s3407, 256, %s3405, %s3377, 128, 128, 8
        $region120: #{tpu_custom_call.1} parent=95 // pred_fallthru
          _
      $region96: #{tpu_custom_call.1} parent=5 // pred_fallthru
        _
      %p3413 = scmp.le.s32.totalorder 2, %s38
      // Predicated region
      $region121: #{tpu_custom_call.1} parent=5 // pred_check
        %p3414 = pneg %p3413
      $region122: #{tpu_custom_call.1} parent=5 // pred_check_branch
        %3416 = sbr.rel (%p3414) target = $region124
      $region123: #{tpu_custom_call.1} parent=5 // pred_region
        %s3417 = ssub.s32 %s38, 2
        // Predicated region
        $region125: #{tpu_custom_call.1} parent=123 // pred_check
          %p3418 = pneg %p471
        $region126: #{tpu_custom_call.1} parent=123 // pred_check_branch
          %3420 = sbr.rel (%p3418) target = $region128
        $region127: #{tpu_custom_call.1} parent=123 // pred_region
          %s3421 = sand.u32 %s456, 1
          %s3422 = scalar_lea.sflag [#allocation4], %s3421
          %s3423 = sand.u32 %s456, 1
          %s3424 = smul.addr %s3423, 16
          %s3425 = scalar_lea.vmem [#allocation10], %s3424
          %3426 = dma.done %s3422, 256
        $region128: #{tpu_custom_call.1} parent=123 // pred_fallthru
          _
        // Predicated region
        $region129: #{tpu_custom_call.1} parent=123 // pred_check
          %p3427 = pneg %p497
        $region130: #{tpu_custom_call.1} parent=123 // pred_check_branch
          %3429 = sbr.rel (%p3427) target = $region132
        $region131: #{tpu_custom_call.1} parent=123 // pred_region
          %s3430 = sand.u32 %s482, 1
          %s3431 = scalar_lea.sflag [#allocation12], %s3430
          %s3432 = sand.u32 %s482, 1
          %s3433 = smul.addr %s3432, 16
          %s3434 = scalar_lea.vmem [#allocation11], %s3433
          %3435 = dma.done %s3431, 256
        $region132: #{tpu_custom_call.1} parent=123 // pred_fallthru
          _
      $region124: #{tpu_custom_call.1} parent=5 // pred_fallthru
        _
    $region6: #{tpu_custom_call.1} parent=1 // loop_footer
      %s42 = sadd.s32 1, %s38
    $region7: #{tpu_custom_call.1} parent=1 // loop_footer_branch
      %37 = sbr.rel target = $region3
    $region8: #{tpu_custom_call.1} parent=1 // loop_exit
      _
    %3436 = vsyncpa [#allocation3], 1
    %s3437 = scalar_lea.sflag [#allocation3], 1
    %3438 = vsyncpa %s3437, 1
    %3439 = vsyncpa [#allocation6], 1
    %3440 = vsyncpa [#allocation9], 1
    %3441 = vsyncpa [#allocation4], 1
    %s3442 = scalar_lea.sflag [#allocation4], 1
    %3443 = vsyncpa %s3442, 1
    %3444 = vsyncpa [#allocation12], 1
    %s3445 = scalar_lea.sflag [#allocation12], 1
    %3446 = vsyncpa %s3445, 1

</llo_original>
